<compile_context>
chip_gen: v5e
topology: v5e:2x2
jax: 0.10.0
libtpu: 0.0.40
codegen_flags: <defaults>
</compile_context>

<pallas_src>
import functools
import math

import jax
import jax.numpy as jnp
from jax.experimental import pallas as pl
from jax.experimental.pallas import tpu as pltpu


# ---------------------------------------------------------------------------
# In-kernel helpers (traced inside the fused decoder-layer kernel)
# ---------------------------------------------------------------------------
def _layer_norm(x, gamma, beta, eps=1e-5):
    mu = jnp.mean(x, axis=-1, keepdims=True)
    var = jnp.mean(jnp.square(x - mu), axis=-1, keepdims=True)
    return (x - mu) * jax.lax.rsqrt(var + eps) * gamma + beta


def _mha_block(x2d, kv2d, wqkv_ref, bqkv_ref, wo_ref, bo_ref, *,
               block_b, sq, sk, num_heads, causal, fused_qkv):
    """Multi-head attention over a block of `block_b` batch rows.

    x2d : (block_b*sq, D) f32 query-side rows (stacked); kv2d likewise for k/v.
    wqkv_ref: (D, 3D) bf16 fused [Wq | Wk | Wv] Ref; bqkv_ref: (1, 3D) f32 Ref.
    wo_ref:   (D, D) bf16 Ref; bo_ref: (1, D) f32 Ref.
    """
    d = x2d.shape[-1]
    dh = d // num_heads
    scale = 1.0 / math.sqrt(dh)

    # --- projections: fat-M (block_b*S rows), K = D, bf16 MXU / f32 accum ----
    if fused_qkv:
        # q_in is kv_in: single (Bb*S, D) @ (D, 3D) MXU pass.
        qkv = jnp.dot(x2d.astype(jnp.bfloat16), wqkv_ref[...],
                      preferred_element_type=jnp.float32) + bqkv_ref[...]
        q2d, k2d, v2d = qkv[:, :d], qkv[:, d:2 * d], qkv[:, 2 * d:]
    else:
        # Static Ref slices of the fused weight (no materialized weight copy).
        q2d = jnp.dot(x2d.astype(jnp.bfloat16), wqkv_ref[:, :d],
                      preferred_element_type=jnp.float32) + bqkv_ref[:, :d]
        kv = jnp.dot(kv2d.astype(jnp.bfloat16), wqkv_ref[:, d:],
                     preferred_element_type=jnp.float32) + bqkv_ref[:, d:]
        k2d, v2d = kv[:, :d], kv[:, d:]

    # bf16 casts hoisted out of the head loop; rows become a leading batch dim.
    qb = q2d.astype(jnp.bfloat16).reshape(block_b, sq, d)
    kb = k2d.astype(jnp.bfloat16).reshape(block_b, sk, d)
    vb = v2d.astype(jnp.bfloat16).reshape(block_b, sk, d)

    if causal:
        qi = jax.lax.broadcasted_iota(jnp.int32, (sq, sk), 0)
        ki = jax.lax.broadcasted_iota(jnp.int32, (sq, sk), 1)
        keep = qi >= ki

    # Per-head attention, batched across the block's rows with 3-D einsums
    # (flash-style 'bqd,bkd->bqk').  Head outputs are concatenated back onto
    # the contiguous feature (lane) axis so the output projection is ONE
    # (block_b*S, D) @ (D, D) matmul instead of num_heads K=Dh accumulations.
    head_outs = []
    for h in range(num_heads):
        sl = slice(h * dh, (h + 1) * dh)
        s = jnp.einsum("bqd,bkd->bqk", qb[:, :, sl], kb[:, :, sl],
                       preferred_element_type=jnp.float32) * scale
        if causal:
            s = jnp.where(keep[None], s, jnp.float32(-1e9))
        s = s - jnp.max(s, axis=-1, keepdims=True)
        p = jnp.exp(s)
        p = p * pl.reciprocal(jnp.sum(p, axis=-1, keepdims=True), approx=True)
        head_outs.append(
            jnp.einsum("bqk,bkd->bqd", p.astype(jnp.bfloat16), vb[:, :, sl],
                       preferred_element_type=jnp.float32))      # (Bb, Sq, Dh)

    o2d = jnp.concatenate(head_outs, axis=-1).reshape(block_b * sq, d)

    # --- single output projection: (Bb*Sq, D) @ (D, D), K = D ----------------
    return jnp.dot(o2d.astype(jnp.bfloat16), wo_ref[...],
                   preferred_element_type=jnp.float32) + bo_ref[...]


# ---------------------------------------------------------------------------
# Fused decoder-layer kernel: one grid step == `block_b` (permuted) batch rows
# ---------------------------------------------------------------------------
def _decoder_layer_kernel(
        tgt_ref, mem_ref,
        sa_wqkv, sa_bqkv, sa_wo, sa_bo,
        ca_wqkv, ca_bqkv, ca_wo, ca_bo,
        ff_w1, ff_b1, ff_w2, ff_b2,
        n1_g, n1_b, n2_g, n2_b, n3_g, n3_b,
        out_ref,
        *, num_heads, causal_tgt_mask):
    block_b, sq, d = tgt_ref.shape
    sk = mem_ref.shape[1]

    # Rows are already permuted (gather done outside); stack rows -> fat M.
    x = tgt_ref[...].reshape(block_b * sq, d)       # (Bb*S_tgt, D) f32
    mem = mem_ref[...].reshape(block_b * sk, d)     # (Bb*S_mem, D) f32

    # --- self-attention (causal) + residual + LayerNorm ----------------------
    a = _mha_block(x, x, sa_wqkv, sa_bqkv, sa_wo, sa_bo,
                   block_b=block_b, sq=sq, sk=sq, num_heads=num_heads,
                   causal=causal_tgt_mask, fused_qkv=True)
    x = _layer_norm(x + a, n1_g[...], n1_b[...])

    # --- cross-attention (src_mask=None) + residual + LayerNorm --------------
    a = _mha_block(x, mem, ca_wqkv, ca_bqkv, ca_wo, ca_bo,
                   block_b=block_b, sq=sq, sk=sk, num_heads=num_heads,
                   causal=False, fused_qkv=False)
    x = _layer_norm(x + a, n2_g[...], n2_b[...])

    # --- position-wise FFN + residual + LayerNorm -----------------------------
    h = jnp.dot(x.astype(jnp.bfloat16), ff_w1[...],
                preferred_element_type=jnp.float32) + ff_b1[...]
    h = jnp.maximum(h, 0.0)
    f = jnp.dot(h.astype(jnp.bfloat16), ff_w2[...],
                preferred_element_type=jnp.float32) + ff_b2[...]
    x = _layer_norm(x + f, n3_g[...], n3_b[...])

    # TODO(synk): dropout layers are identity (eval mode); no in-kernel RNG.
    out_ref[...] = x.reshape(block_b, sq, d).astype(out_ref.dtype)


# ---------------------------------------------------------------------------
# Host-side wrapper
# ---------------------------------------------------------------------------
def transformer_decoder_forward(tgt, memory, permutation, params, num_heads,
                                *, block_b=None, causal_tgt_mask=True):
    b, s_tgt, d = tgt.shape
    s_mem = memory.shape[1]
    d_ff = params["ff_w1"].shape[1]

    # Bigger batch blocks -> fatter matmuls; keep >= 2 grid steps so the
    # 'parallel' batch axis can split evenly across v7x's two TensorCores.
    if block_b is None:
        block_b = 1
        for cand in (8, 4, 2):
            if b % cand == 0 and (b // cand) >= 2:
                block_b = cand
                break
    assert b % block_b == 0, "batch must be divisible by block_b"
    n_steps = b // block_b

    # The batch permutation is one cheap HBM gather outside the fused kernel
    # (inverse applied to the output below); kernel blocks stay data-independent.
    tgt_p = jnp.take(tgt, permutation, axis=0)

    bf16 = lambda w: w.astype(jnp.bfloat16)
    weight_args = (
        bf16(params["self_wqkv"]), params["self_bqkv"],
        bf16(params["self_wo"]), params["self_bo"],
        bf16(params["cross_wqkv"]), params["cross_bqkv"],
        bf16(params["cross_wo"]), params["cross_bo"],
        bf16(params["ff_w1"]), params["ff_b1"],
        bf16(params["ff_w2"]), params["ff_b2"],
        params["norm1_g"], params["norm1_b"],
        params["norm2_g"], params["norm2_b"],
        params["norm3_g"], params["norm3_b"],
    )

    # Weights: whole-array blocks with constant index_maps -> DMA'd once,
    # resident in VMEM across the whole grid.
    const_map = lambda i: (0, 0)
    weight_specs = [pl.BlockSpec(w.shape, const_map) for w in weight_args]

    grid_spec = pltpu.PrefetchScalarGridSpec(
        num_scalar_prefetch=0,
        grid=(n_steps,),
        in_specs=[
            pl.BlockSpec((block_b, s_tgt, d), lambda i: (i, 0, 0)),
            pl.BlockSpec((block_b, s_mem, d), lambda i: (i, 0, 0)),
            *weight_specs,
        ],
        out_specs=pl.BlockSpec((block_b, s_tgt, d), lambda i: (i, 0, 0)),
    )

    # Explicit VMEM budget: resident weights + double-buffered activation
    # blocks + in-kernel temporaries, with headroom (clamped to 128 MiB).
    weight_bytes = sum(int(w.size) * w.dtype.itemsize for w in weight_args)
    block_bytes = 4 * block_b * (2 * s_tgt * d + s_mem * d)
    temp_bytes = (4 * block_b * s_tgt * (4 * d + d_ff)
                  + 4 * block_b * num_heads * s_tgt * max(s_tgt, s_mem))
    vmem_limit = weight_bytes + 2 * block_bytes + 4 * temp_bytes + (16 << 20)
    vmem_limit = int(max(32 << 20, min(vmem_limit, 128 << 20)))

    # FLOP / byte estimate so XLA schedules around the long fused custom call.
    flops = (2 * b * s_tgt * d * (3 * d)          # self qkv proj
             + 4 * b * s_tgt * s_tgt * d          # self-attn QK^T + PV
             + 2 * b * s_tgt * d * d              # self out-proj
             + 2 * b * s_tgt * d * d              # cross q proj
             + 2 * b * s_mem * d * (2 * d)        # cross kv proj
             + 4 * b * s_tgt * s_mem * d          # cross-attn QK^T + PV
             + 2 * b * s_tgt * d * d              # cross out-proj
             + 4 * b * s_tgt * d * d_ff)          # FFN
    transcendentals = b * num_heads * s_tgt * (s_tgt + s_mem) + 6 * b * s_tgt
    bytes_accessed = 4 * b * (2 * s_tgt + s_mem) * d + weight_bytes

    kernel = functools.partial(_decoder_layer_kernel, num_heads=num_heads,
                               causal_tgt_mask=causal_tgt_mask)
    out_p = pl.pallas_call(
        kernel,
        grid_spec=grid_spec,
        out_shape=jax.ShapeDtypeStruct((b, s_tgt, d), jnp.float32),
        compiler_params=pltpu.CompilerParams(
            dimension_semantics=("parallel",),     # megacore-shard on v7x
            vmem_limit_bytes=vmem_limit,
        ),
        cost_estimate=pl.CostEstimate(
            flops=int(flops),
            transcendentals=int(transcendentals),
            bytes_accessed=int(bytes_accessed),
        ),
    )(tgt_p, memory, *weight_args)

    # Undo the permutation (tgt[argsort(permutation)] in the reference module).
    return jnp.take(out_p, jnp.argsort(permutation), axis=0)


# ---------------------------------------------------------------------------
# Deterministic synthetic parameters (shapes from the module __init__)
# ---------------------------------------------------------------------------
def init_params(key, d_model, d_ff):
    ks = jax.random.split(key, 18)

    def mat(k, din, dout, scale=0.02):
        return jax.random.normal(k, (din, dout), jnp.float32) * scale

    def vec(k, dout, scale=0.02):
        return jax.random.normal(k, (1, dout), jnp.float32) * scale

    return {
        "self_wqkv": mat(ks[0], d_model, 3 * d_model),
        "self_bqkv": vec(ks[1], 3 * d_model),
        "self_wo": mat(ks[2], d_model, d_model),
        "self_bo": vec(ks[3], d_model),
        "cross_wqkv": mat(ks[4], d_model, 3 * d_model),
        "cross_bqkv": vec(ks[5], 3 * d_model),
        "cross_wo": mat(ks[6], d_model, d_model),
        "cross_bo": vec(ks[7], d_model),
        "ff_w1": mat(ks[8], d_model, d_ff),
        "ff_b1": vec(ks[9], d_ff),
        "ff_w2": mat(ks[10], d_ff, d_model),
        "ff_b2": vec(ks[11], d_model),
        "norm1_g": 1.0 + vec(ks[12], d_model, 0.1),
        "norm1_b": vec(ks[13], d_model, 0.1),
        "norm2_g": 1.0 + vec(ks[14], d_model, 0.1),
        "norm2_b": vec(ks[15], d_model, 0.1),
        "norm3_g": 1.0 + vec(ks[16], d_model, 0.1),
        "norm3_b": vec(ks[17], d_model, 0.1),
    }


# ---------------------------------------------------------------------------
# Pure-JAX reference (mirrors the PyTorch module semantics)
# ---------------------------------------------------------------------------
def reference_forward(tgt, memory, permutation, params, num_heads,
                      causal_tgt_mask=True):
    d = tgt.shape[-1]
    dh = d // num_heads

    def ln(x, g, b, eps=1e-5):
        mu = x.mean(-1, keepdims=True)
        var = ((x - mu) ** 2).mean(-1, keepdims=True)
        return (x - mu) / jnp.sqrt(var + eps) * g + b

    def mha(q_in, kv_in, wqkv, bqkv, wo, bo, causal):
        b_, sq, _ = q_in.shape
        sk = kv_in.shape[1]
        q = q_in @ wqkv[:, :d] + bqkv[:, :d]
        k = kv_in @ wqkv[:, d:2 * d] + bqkv[:, d:2 * d]
        v = kv_in @ wqkv[:, 2 * d:] + bqkv[:, 2 * d:]
        split = lambda x, s: x.reshape(b_, s, num_heads, dh).transpose(0, 2, 1, 3)
        q, k, v = split(q, sq), split(k, sk), split(v, sk)
        s = jnp.einsum("bhqd,bhkd->bhqk", q, k) / jnp.sqrt(float(dh))
        if causal:
            keep = jnp.tril(jnp.ones((sq, sk), bool))
            s = jnp.where(keep, s, -1e9)
        p = jax.nn.softmax(s, axis=-1)
        o = jnp.einsum("bhqk,bhkd->bhqd", p, v)
        o = o.transpose(0, 2, 1, 3).reshape(b_, sq, d)
        return o @ wo + bo

    x = tgt[permutation]
    x = ln(x + mha(x, x, params["self_wqkv"], params["self_bqkv"],
                   params["self_wo"], params["self_bo"], causal_tgt_mask),
           params["norm1_g"], params["norm1_b"])
    x = ln(x + mha(x, memory, params["cross_wqkv"], params["cross_bqkv"],
                   params["cross_wo"], params["cross_bo"], False),
           params["norm2_g"], params["norm2_b"])
    h = jax.nn.relu(x @ params["ff_w1"] + params["ff_b1"])
    f = h @ params["ff_w2"] + params["ff_b2"]
    x = ln(x + f, params["norm3_g"], params["norm3_b"])
    return x[jnp.argsort(permutation)]


# ---------------------------------------------------------------------------
if __name__ == "__main__":
    B, S_TGT, S_MEM = 4, 16, 16
    D_MODEL, NUM_HEADS, D_FF = 128, 4, 256

    key = jax.random.PRNGKey(0)
    k_tgt, k_mem, k_param = jax.random.split(key, 3)

    tgt = jax.random.normal(k_tgt, (B, S_TGT, D_MODEL), jnp.float32)
    memory = jax.random.normal(k_mem, (B, S_MEM, D_MODEL), jnp.float32)
    permutation = jnp.array([2, 0, 3, 1], dtype=jnp.int32)  # batch permutation

    params = init_params(k_param, D_MODEL, D_FF)

    # TODO(synk): arbitrary user-supplied src_mask/tgt_mask are not plumbed in;
    # the kernel hardcodes the causal tgt_mask (in-kernel iota) and src_mask=None.
    out = transformer_decoder_forward(tgt, memory, permutation, params, NUM_HEADS)
    out = jax.block_until_ready(out)

    ref = reference_forward(tgt, memory, permutation, params, NUM_HEADS)

    assert out.shape == (B, S_TGT, D_MODEL)
    assert bool(jnp.all(jnp.isfinite(out)))
    max_err = float(jnp.max(jnp.abs(out - ref)))
    assert max_err < 0.1, f"max |err| vs reference = {max_err}"
    print("KERNEL_OK")
</pallas_src>

<mosaic_0001>
module attributes {stable_mosaic.version = 11 : i64} {
  func.func @_decoder_layer_kernel(%arg0: i32, %arg1: memref<2x16x128xf32, #tpu.memory_space<vmem>>, %arg2: memref<2x16x128xf32, #tpu.memory_space<vmem>>, %arg3: memref<128x384xbf16, #tpu.memory_space<vmem>>, %arg4: memref<1x384xf32, #tpu.memory_space<vmem>>, %arg5: memref<128x128xbf16, #tpu.memory_space<vmem>>, %arg6: memref<1x128xf32, #tpu.memory_space<vmem>>, %arg7: memref<128x384xbf16, #tpu.memory_space<vmem>>, %arg8: memref<1x384xf32, #tpu.memory_space<vmem>>, %arg9: memref<128x128xbf16, #tpu.memory_space<vmem>>, %arg10: memref<1x128xf32, #tpu.memory_space<vmem>>, %arg11: memref<128x256xbf16, #tpu.memory_space<vmem>>, %arg12: memref<1x256xf32, #tpu.memory_space<vmem>>, %arg13: memref<256x128xbf16, #tpu.memory_space<vmem>>, %arg14: memref<1x128xf32, #tpu.memory_space<vmem>>, %arg15: memref<1x128xf32, #tpu.memory_space<vmem>>, %arg16: memref<1x128xf32, #tpu.memory_space<vmem>>, %arg17: memref<1x128xf32, #tpu.memory_space<vmem>>, %arg18: memref<1x128xf32, #tpu.memory_space<vmem>>, %arg19: memref<1x128xf32, #tpu.memory_space<vmem>>, %arg20: memref<1x128xf32, #tpu.memory_space<vmem>>, %arg21: memref<2x16x128xf32, #tpu.memory_space<vmem>>) attributes {dimension_semantics = [#tpu.dimension_semantics<parallel>], iteration_bounds = array<i64: 2>, scalar_prefetch = 0 : i64, scratch_operands = 0 : i64, tpu.core_type = #tpu.core_type<tc>, window_params = [{transform_indices = @transform_0, window_bounds = array<i64: 2, 16, 128>}, {transform_indices = @transform_1, window_bounds = array<i64: 2, 16, 128>}, {pipeline_mode = #tpu.pipeline_mode<synchronous>, transform_indices = @transform_2, window_bounds = array<i64: 128, 384>}, {pipeline_mode = #tpu.pipeline_mode<synchronous>, transform_indices = @transform_3, window_bounds = array<i64: 1, 384>}, {pipeline_mode = #tpu.pipeline_mode<synchronous>, transform_indices = @transform_4, window_bounds = array<i64: 128, 128>}, {pipeline_mode = #tpu.pipeline_mode<synchronous>, transform_indices = @transform_5, window_bounds = array<i64: 1, 128>}, {pipeline_mode = #tpu.pipeline_mode<synchronous>, transform_indices = @transform_6, window_bounds = array<i64: 128, 384>}, {pipeline_mode = #tpu.pipeline_mode<synchronous>, transform_indices = @transform_7, window_bounds = array<i64: 1, 384>}, {pipeline_mode = #tpu.pipeline_mode<synchronous>, transform_indices = @transform_8, window_bounds = array<i64: 128, 128>}, {pipeline_mode = #tpu.pipeline_mode<synchronous>, transform_indices = @transform_9, window_bounds = array<i64: 1, 128>}, {pipeline_mode = #tpu.pipeline_mode<synchronous>, transform_indices = @transform_10, window_bounds = array<i64: 128, 256>}, {pipeline_mode = #tpu.pipeline_mode<synchronous>, transform_indices = @transform_11, window_bounds = array<i64: 1, 256>}, {pipeline_mode = #tpu.pipeline_mode<synchronous>, transform_indices = @transform_12, window_bounds = array<i64: 256, 128>}, {pipeline_mode = #tpu.pipeline_mode<synchronous>, transform_indices = @transform_13, window_bounds = array<i64: 1, 128>}, {pipeline_mode = #tpu.pipeline_mode<synchronous>, transform_indices = @transform_14, window_bounds = array<i64: 1, 128>}, {pipeline_mode = #tpu.pipeline_mode<synchronous>, transform_indices = @transform_15, window_bounds = array<i64: 1, 128>}, {pipeline_mode = #tpu.pipeline_mode<synchronous>, transform_indices = @transform_16, window_bounds = array<i64: 1, 128>}, {pipeline_mode = #tpu.pipeline_mode<synchronous>, transform_indices = @transform_17, window_bounds = array<i64: 1, 128>}, {pipeline_mode = #tpu.pipeline_mode<synchronous>, transform_indices = @transform_18, window_bounds = array<i64: 1, 128>}, {pipeline_mode = #tpu.pipeline_mode<synchronous>, transform_indices = @transform_19, window_bounds = array<i64: 1, 128>}, {transform_indices = @transform_20, window_bounds = array<i64: 2, 16, 128>}]} {
    %c0 = arith.constant 0 : index
    %c0_0 = arith.constant 0 : index
    %c0_1 = arith.constant 0 : index
    %0 = vector.load %arg1[%c0, %c0_0, %c0_1] : memref<2x16x128xf32, #tpu.memory_space<vmem>>, vector<2x16x128xf32>
    %1 = vector.shape_cast %0 : vector<2x16x128xf32> to vector<32x128xf32>
    %c0_2 = arith.constant 0 : index
    %c0_3 = arith.constant 0 : index
    %c0_4 = arith.constant 0 : index
    %2 = vector.load %arg2[%c0_2, %c0_3, %c0_4] : memref<2x16x128xf32, #tpu.memory_space<vmem>>, vector<2x16x128xf32>
    %3 = vector.shape_cast %2 : vector<2x16x128xf32> to vector<32x128xf32>
    %4 = arith.truncf %1 : vector<32x128xf32> to vector<32x128xbf16>
    %c0_5 = arith.constant 0 : index
    %c0_6 = arith.constant 0 : index
    %5 = vector.load %arg3[%c0_5, %c0_6] : memref<128x384xbf16, #tpu.memory_space<vmem>>, vector<128x384xbf16>
    %cst = arith.constant dense<0.000000e+00> : vector<32x384xf32>
    %6 = tpu.matmul %4, %5, %cst {dimension_numbers = #tpu.dot_dimension_numbers<[1], [0], [0], [1], [0, 0, 1, 1], [], []>} : vector<32x128xbf16>, vector<128x384xbf16>, vector<32x384xf32> -> vector<32x384xf32>
    %c0_7 = arith.constant 0 : index
    %c0_8 = arith.constant 0 : index
    %7 = vector.load %arg4[%c0_7, %c0_8] : memref<1x384xf32, #tpu.memory_space<vmem>>, vector<1x384xf32>
    %8 = vector.broadcast %7 : vector<1x384xf32> to vector<32x384xf32>
    %9 = arith.addf %6, %8 : vector<32x384xf32>
    %10 = vector.extract_strided_slice %9 {offsets = [0, 0], sizes = [32, 128], strides = [1, 1]} : vector<32x384xf32> to vector<32x128xf32>
    %11 = vector.extract_strided_slice %9 {offsets = [0, 128], sizes = [32, 128], strides = [1, 1]} : vector<32x384xf32> to vector<32x128xf32>
    %12 = vector.extract_strided_slice %9 {offsets = [0, 256], sizes = [32, 128], strides = [1, 1]} : vector<32x384xf32> to vector<32x128xf32>
    %13 = arith.truncf %10 : vector<32x128xf32> to vector<32x128xbf16>
    %14 = vector.shape_cast %13 : vector<32x128xbf16> to vector<2x16x128xbf16>
    %15 = arith.truncf %11 : vector<32x128xf32> to vector<32x128xbf16>
    %16 = vector.shape_cast %15 : vector<32x128xbf16> to vector<2x16x128xbf16>
    %17 = arith.truncf %12 : vector<32x128xf32> to vector<32x128xbf16>
    %18 = vector.shape_cast %17 : vector<32x128xbf16> to vector<2x16x128xbf16>
    %19 = tpu.iota {dimensions = array<i32: 0>} : vector<16x16xi32>
    %20 = tpu.iota {dimensions = array<i32: 1>} : vector<16x16xi32>
    %21 = arith.cmpi sge, %19, %20 : vector<16x16xi32>
    %22 = vector.extract_strided_slice %14 {offsets = [0, 0, 0], sizes = [2, 16, 32], strides = [1, 1, 1]} : vector<2x16x128xbf16> to vector<2x16x32xbf16>
    %23 = vector.extract_strided_slice %16 {offsets = [0, 0, 0], sizes = [2, 16, 32], strides = [1, 1, 1]} : vector<2x16x128xbf16> to vector<2x16x32xbf16>
    "tpu.trace_start"() <{level = 10 : i32, message = "bqd,bkd->bqk"}> : () -> ()
    %cst_9 = arith.constant dense<0.000000e+00> : vector<2x16x16xf32>
    %24 = tpu.matmul %22, %23, %cst_9 {dimension_numbers = #tpu.dot_dimension_numbers<[2], [2], [1], [1], [0, 0, 0, 1, 1, 1], [0], [0]>} : vector<2x16x32xbf16>, vector<2x16x32xbf16>, vector<2x16x16xf32> -> vector<2x16x16xf32>
    "tpu.trace_stop"() : () -> ()
    %cst_10 = arith.constant 0.176776692 : f32
    %25 = vector.broadcast %cst_10 : f32 to vector<2x16x16xf32>
    %26 = arith.mulf %24, %25 : vector<2x16x16xf32>
    %27 = vector.shape_cast %21 : vector<16x16xi1> to vector<1x16x16xi1>
    %cst_11 = arith.constant -1.000000e+09 : f32
    %28 = vector.shape_cast %27 : vector<1x16x16xi1> to vector<1x16x16xi1>
    %29 = vector.broadcast %28 : vector<1x16x16xi1> to vector<2x16x16xi1>
    %30 = vector.broadcast %cst_11 : f32 to vector<2x16x16xf32>
    %31 = arith.select %29, %26, %30 : vector<2x16x16xi1>, vector<2x16x16xf32>
    %cst_12 = arith.constant dense<0xFF800000> : vector<2x16xf32>
    %32 = vector.multi_reduction <maximumf>, %31, %cst_12 [2] : vector<2x16x16xf32> to vector<2x16xf32>
    %33 = vector.shape_cast %32 : vector<2x16xf32> to vector<2x16x1xf32>
    %34 = vector.broadcast %33 : vector<2x16x1xf32> to vector<2x16x16xf32>
    %35 = arith.subf %31, %34 : vector<2x16x16xf32>
    %36 = math.exp %35 : vector<2x16x16xf32>
    %cst_13 = arith.constant dense<0.000000e+00> : vector<2x16xf32>
    %37 = vector.multi_reduction <add>, %36, %cst_13 [2] : vector<2x16x16xf32> to vector<2x16xf32>
    %38 = vector.shape_cast %37 : vector<2x16xf32> to vector<2x16x1xf32>
    %39 = tpu.reciprocal %38 {approx = true} : vector<2x16x1xf32> -> vector<2x16x1xf32>
    %40 = vector.broadcast %39 : vector<2x16x1xf32> to vector<2x16x16xf32>
    %41 = arith.mulf %36, %40 : vector<2x16x16xf32>
    %42 = arith.truncf %41 : vector<2x16x16xf32> to vector<2x16x16xbf16>
    %43 = vector.extract_strided_slice %18 {offsets = [0, 0, 0], sizes = [2, 16, 32], strides = [1, 1, 1]} : vector<2x16x128xbf16> to vector<2x16x32xbf16>
    "tpu.trace_start"() <{level = 10 : i32, message = "bqk,bkd->bqd"}> : () -> ()
    %cst_14 = arith.constant dense<0.000000e+00> : vector<2x16x32xf32>
    %44 = tpu.matmul %42, %43, %cst_14 {dimension_numbers = #tpu.dot_dimension_numbers<[2], [1], [1], [2], [0, 0, 0, 1, 1, 2], [0], [0]>} : vector<2x16x16xbf16>, vector<2x16x32xbf16>, vector<2x16x32xf32> -> vector<2x16x32xf32>
    "tpu.trace_stop"() : () -> ()
    %45 = vector.extract_strided_slice %14 {offsets = [0, 0, 32], sizes = [2, 16, 32], strides = [1, 1, 1]} : vector<2x16x128xbf16> to vector<2x16x32xbf16>
    %46 = vector.extract_strided_slice %16 {offsets = [0, 0, 32], sizes = [2, 16, 32], strides = [1, 1, 1]} : vector<2x16x128xbf16> to vector<2x16x32xbf16>
    "tpu.trace_start"() <{level = 10 : i32, message = "bqd,bkd->bqk"}> : () -> ()
    %cst_15 = arith.constant dense<0.000000e+00> : vector<2x16x16xf32>
    %47 = tpu.matmul %45, %46, %cst_15 {dimension_numbers = #tpu.dot_dimension_numbers<[2], [2], [1], [1], [0, 0, 0, 1, 1, 1], [0], [0]>} : vector<2x16x32xbf16>, vector<2x16x32xbf16>, vector<2x16x16xf32> -> vector<2x16x16xf32>
    "tpu.trace_stop"() : () -> ()
    %cst_16 = arith.constant 0.176776692 : f32
    %48 = vector.broadcast %cst_16 : f32 to vector<2x16x16xf32>
    %49 = arith.mulf %47, %48 : vector<2x16x16xf32>
    %50 = vector.shape_cast %21 : vector<16x16xi1> to vector<1x16x16xi1>
    %cst_17 = arith.constant -1.000000e+09 : f32
    %51 = vector.shape_cast %50 : vector<1x16x16xi1> to vector<1x16x16xi1>
    %52 = vector.broadcast %51 : vector<1x16x16xi1> to vector<2x16x16xi1>
    %53 = vector.broadcast %cst_17 : f32 to vector<2x16x16xf32>
    %54 = arith.select %52, %49, %53 : vector<2x16x16xi1>, vector<2x16x16xf32>
    %cst_18 = arith.constant dense<0xFF800000> : vector<2x16xf32>
    %55 = vector.multi_reduction <maximumf>, %54, %cst_18 [2] : vector<2x16x16xf32> to vector<2x16xf32>
    %56 = vector.shape_cast %55 : vector<2x16xf32> to vector<2x16x1xf32>
    %57 = vector.broadcast %56 : vector<2x16x1xf32> to vector<2x16x16xf32>
    %58 = arith.subf %54, %57 : vector<2x16x16xf32>
    %59 = math.exp %58 : vector<2x16x16xf32>
    %cst_19 = arith.constant dense<0.000000e+00> : vector<2x16xf32>
    %60 = vector.multi_reduction <add>, %59, %cst_19 [2] : vector<2x16x16xf32> to vector<2x16xf32>
    %61 = vector.shape_cast %60 : vector<2x16xf32> to vector<2x16x1xf32>
    %62 = tpu.reciprocal %61 {approx = true} : vector<2x16x1xf32> -> vector<2x16x1xf32>
    %63 = vector.broadcast %62 : vector<2x16x1xf32> to vector<2x16x16xf32>
    %64 = arith.mulf %59, %63 : vector<2x16x16xf32>
    %65 = arith.truncf %64 : vector<2x16x16xf32> to vector<2x16x16xbf16>
    %66 = vector.extract_strided_slice %18 {offsets = [0, 0, 32], sizes = [2, 16, 32], strides = [1, 1, 1]} : vector<2x16x128xbf16> to vector<2x16x32xbf16>
    "tpu.trace_start"() <{level = 10 : i32, message = "bqk,bkd->bqd"}> : () -> ()
    %cst_20 = arith.constant dense<0.000000e+00> : vector<2x16x32xf32>
    %67 = tpu.matmul %65, %66, %cst_20 {dimension_numbers = #tpu.dot_dimension_numbers<[2], [1], [1], [2], [0, 0, 0, 1, 1, 2], [0], [0]>} : vector<2x16x16xbf16>, vector<2x16x32xbf16>, vector<2x16x32xf32> -> vector<2x16x32xf32>
    "tpu.trace_stop"() : () -> ()
    %68 = vector.extract_strided_slice %14 {offsets = [0, 0, 64], sizes = [2, 16, 32], strides = [1, 1, 1]} : vector<2x16x128xbf16> to vector<2x16x32xbf16>
    %69 = vector.extract_strided_slice %16 {offsets = [0, 0, 64], sizes = [2, 16, 32], strides = [1, 1, 1]} : vector<2x16x128xbf16> to vector<2x16x32xbf16>
    "tpu.trace_start"() <{level = 10 : i32, message = "bqd,bkd->bqk"}> : () -> ()
    %cst_21 = arith.constant dense<0.000000e+00> : vector<2x16x16xf32>
    %70 = tpu.matmul %68, %69, %cst_21 {dimension_numbers = #tpu.dot_dimension_numbers<[2], [2], [1], [1], [0, 0, 0, 1, 1, 1], [0], [0]>} : vector<2x16x32xbf16>, vector<2x16x32xbf16>, vector<2x16x16xf32> -> vector<2x16x16xf32>
    "tpu.trace_stop"() : () -> ()
    %cst_22 = arith.constant 0.176776692 : f32
    %71 = vector.broadcast %cst_22 : f32 to vector<2x16x16xf32>
    %72 = arith.mulf %70, %71 : vector<2x16x16xf32>
    %73 = vector.shape_cast %21 : vector<16x16xi1> to vector<1x16x16xi1>
    %cst_23 = arith.constant -1.000000e+09 : f32
    %74 = vector.shape_cast %73 : vector<1x16x16xi1> to vector<1x16x16xi1>
    %75 = vector.broadcast %74 : vector<1x16x16xi1> to vector<2x16x16xi1>
    %76 = vector.broadcast %cst_23 : f32 to vector<2x16x16xf32>
    %77 = arith.select %75, %72, %76 : vector<2x16x16xi1>, vector<2x16x16xf32>
    %cst_24 = arith.constant dense<0xFF800000> : vector<2x16xf32>
    %78 = vector.multi_reduction <maximumf>, %77, %cst_24 [2] : vector<2x16x16xf32> to vector<2x16xf32>
    %79 = vector.shape_cast %78 : vector<2x16xf32> to vector<2x16x1xf32>
    %80 = vector.broadcast %79 : vector<2x16x1xf32> to vector<2x16x16xf32>
    %81 = arith.subf %77, %80 : vector<2x16x16xf32>
    %82 = math.exp %81 : vector<2x16x16xf32>
    %cst_25 = arith.constant dense<0.000000e+00> : vector<2x16xf32>
    %83 = vector.multi_reduction <add>, %82, %cst_25 [2] : vector<2x16x16xf32> to vector<2x16xf32>
    %84 = vector.shape_cast %83 : vector<2x16xf32> to vector<2x16x1xf32>
    %85 = tpu.reciprocal %84 {approx = true} : vector<2x16x1xf32> -> vector<2x16x1xf32>
    %86 = vector.broadcast %85 : vector<2x16x1xf32> to vector<2x16x16xf32>
    %87 = arith.mulf %82, %86 : vector<2x16x16xf32>
    %88 = arith.truncf %87 : vector<2x16x16xf32> to vector<2x16x16xbf16>
    %89 = vector.extract_strided_slice %18 {offsets = [0, 0, 64], sizes = [2, 16, 32], strides = [1, 1, 1]} : vector<2x16x128xbf16> to vector<2x16x32xbf16>
    "tpu.trace_start"() <{level = 10 : i32, message = "bqk,bkd->bqd"}> : () -> ()
    %cst_26 = arith.constant dense<0.000000e+00> : vector<2x16x32xf32>
    %90 = tpu.matmul %88, %89, %cst_26 {dimension_numbers = #tpu.dot_dimension_numbers<[2], [1], [1], [2], [0, 0, 0, 1, 1, 2], [0], [0]>} : vector<2x16x16xbf16>, vector<2x16x32xbf16>, vector<2x16x32xf32> -> vector<2x16x32xf32>
    "tpu.trace_stop"() : () -> ()
    %91 = vector.extract_strided_slice %14 {offsets = [0, 0, 96], sizes = [2, 16, 32], strides = [1, 1, 1]} : vector<2x16x128xbf16> to vector<2x16x32xbf16>
    %92 = vector.extract_strided_slice %16 {offsets = [0, 0, 96], sizes = [2, 16, 32], strides = [1, 1, 1]} : vector<2x16x128xbf16> to vector<2x16x32xbf16>
    "tpu.trace_start"() <{level = 10 : i32, message = "bqd,bkd->bqk"}> : () -> ()
    %cst_27 = arith.constant dense<0.000000e+00> : vector<2x16x16xf32>
    %93 = tpu.matmul %91, %92, %cst_27 {dimension_numbers = #tpu.dot_dimension_numbers<[2], [2], [1], [1], [0, 0, 0, 1, 1, 1], [0], [0]>} : vector<2x16x32xbf16>, vector<2x16x32xbf16>, vector<2x16x16xf32> -> vector<2x16x16xf32>
    "tpu.trace_stop"() : () -> ()
    %cst_28 = arith.constant 0.176776692 : f32
    %94 = vector.broadcast %cst_28 : f32 to vector<2x16x16xf32>
    %95 = arith.mulf %93, %94 : vector<2x16x16xf32>
    %96 = vector.shape_cast %21 : vector<16x16xi1> to vector<1x16x16xi1>
    %cst_29 = arith.constant -1.000000e+09 : f32
    %97 = vector.shape_cast %96 : vector<1x16x16xi1> to vector<1x16x16xi1>
    %98 = vector.broadcast %97 : vector<1x16x16xi1> to vector<2x16x16xi1>
    %99 = vector.broadcast %cst_29 : f32 to vector<2x16x16xf32>
    %100 = arith.select %98, %95, %99 : vector<2x16x16xi1>, vector<2x16x16xf32>
    %cst_30 = arith.constant dense<0xFF800000> : vector<2x16xf32>
    %101 = vector.multi_reduction <maximumf>, %100, %cst_30 [2] : vector<2x16x16xf32> to vector<2x16xf32>
    %102 = vector.shape_cast %101 : vector<2x16xf32> to vector<2x16x1xf32>
    %103 = vector.broadcast %102 : vector<2x16x1xf32> to vector<2x16x16xf32>
    %104 = arith.subf %100, %103 : vector<2x16x16xf32>
    %105 = math.exp %104 : vector<2x16x16xf32>
    %cst_31 = arith.constant dense<0.000000e+00> : vector<2x16xf32>
    %106 = vector.multi_reduction <add>, %105, %cst_31 [2] : vector<2x16x16xf32> to vector<2x16xf32>
    %107 = vector.shape_cast %106 : vector<2x16xf32> to vector<2x16x1xf32>
    %108 = tpu.reciprocal %107 {approx = true} : vector<2x16x1xf32> -> vector<2x16x1xf32>
    %109 = vector.broadcast %108 : vector<2x16x1xf32> to vector<2x16x16xf32>
    %110 = arith.mulf %105, %109 : vector<2x16x16xf32>
    %111 = arith.truncf %110 : vector<2x16x16xf32> to vector<2x16x16xbf16>
    %112 = vector.extract_strided_slice %18 {offsets = [0, 0, 96], sizes = [2, 16, 32], strides = [1, 1, 1]} : vector<2x16x128xbf16> to vector<2x16x32xbf16>
    "tpu.trace_start"() <{level = 10 : i32, message = "bqk,bkd->bqd"}> : () -> ()
    %cst_32 = arith.constant dense<0.000000e+00> : vector<2x16x32xf32>
    %113 = tpu.matmul %111, %112, %cst_32 {dimension_numbers = #tpu.dot_dimension_numbers<[2], [1], [1], [2], [0, 0, 0, 1, 1, 2], [0], [0]>} : vector<2x16x16xbf16>, vector<2x16x32xbf16>, vector<2x16x32xf32> -> vector<2x16x32xf32>
    "tpu.trace_stop"() : () -> ()
    %114 = tpu.concatenate %44, %67, %90, %113 in 2 : vector<2x16x32xf32>, vector<2x16x32xf32>, vector<2x16x32xf32>, vector<2x16x32xf32> -> vector<2x16x128xf32>
    %115 = vector.shape_cast %114 : vector<2x16x128xf32> to vector<32x128xf32>
    %116 = arith.truncf %115 : vector<32x128xf32> to vector<32x128xbf16>
    %c0_33 = arith.constant 0 : index
    %c0_34 = arith.constant 0 : index
    %117 = vector.load %arg5[%c0_33, %c0_34] : memref<128x128xbf16, #tpu.memory_space<vmem>>, vector<128x128xbf16>
    %cst_35 = arith.constant dense<0.000000e+00> : vector<32x128xf32>
    %118 = tpu.matmul %116, %117, %cst_35 {dimension_numbers = #tpu.dot_dimension_numbers<[1], [0], [0], [1], [0, 0, 1, 1], [], []>} : vector<32x128xbf16>, vector<128x128xbf16>, vector<32x128xf32> -> vector<32x128xf32>
    %c0_36 = arith.constant 0 : index
    %c0_37 = arith.constant 0 : index
    %119 = vector.load %arg6[%c0_36, %c0_37] : memref<1x128xf32, #tpu.memory_space<vmem>>, vector<1x128xf32>
    %120 = vector.broadcast %119 : vector<1x128xf32> to vector<32x128xf32>
    %121 = arith.addf %118, %120 : vector<32x128xf32>
    %122 = arith.addf %1, %121 : vector<32x128xf32>
    %c0_38 = arith.constant 0 : index
    %c0_39 = arith.constant 0 : index
    %123 = vector.load %arg15[%c0_38, %c0_39] : memref<1x128xf32, #tpu.memory_space<vmem>>, vector<1x128xf32>
    %c0_40 = arith.constant 0 : index
    %c0_41 = arith.constant 0 : index
    %124 = vector.load %arg16[%c0_40, %c0_41] : memref<1x128xf32, #tpu.memory_space<vmem>>, vector<1x128xf32>
    %cst_42 = arith.constant dense<0.000000e+00> : vector<32xf32>
    %125 = vector.multi_reduction <add>, %122, %cst_42 [1] : vector<32x128xf32> to vector<32xf32>
    %126 = vector.shape_cast %125 : vector<32xf32> to vector<32x1xf32>
    %cst_43 = arith.constant 1.280000e+02 : f32
    %127 = vector.broadcast %cst_43 : f32 to vector<32x1xf32>
    %128 = arith.divf %126, %127 : vector<32x1xf32>
    %129 = vector.broadcast %128 : vector<32x1xf32> to vector<32x128xf32>
    %130 = arith.subf %122, %129 : vector<32x128xf32>
    %131 = arith.mulf %130, %130 : vector<32x128xf32>
    %cst_44 = arith.constant dense<0.000000e+00> : vector<32xf32>
    %132 = vector.multi_reduction <add>, %131, %cst_44 [1] : vector<32x128xf32> to vector<32xf32>
    %133 = vector.shape_cast %132 : vector<32xf32> to vector<32x1xf32>
    %cst_45 = arith.constant 1.280000e+02 : f32
    %134 = vector.broadcast %cst_45 : f32 to vector<32x1xf32>
    %135 = arith.divf %133, %134 : vector<32x1xf32>
    %136 = vector.broadcast %128 : vector<32x1xf32> to vector<32x128xf32>
    %137 = arith.subf %122, %136 : vector<32x128xf32>
    %cst_46 = arith.constant 9.99999974E-6 : f32
    %138 = vector.broadcast %cst_46 : f32 to vector<32x1xf32>
    %139 = arith.addf %135, %138 : vector<32x1xf32>
    %140 = math.rsqrt %139 : vector<32x1xf32>
    %141 = vector.broadcast %140 : vector<32x1xf32> to vector<32x128xf32>
    %142 = arith.mulf %137, %141 : vector<32x128xf32>
    %143 = vector.broadcast %123 : vector<1x128xf32> to vector<32x128xf32>
    %144 = arith.mulf %142, %143 : vector<32x128xf32>
    %145 = vector.broadcast %124 : vector<1x128xf32> to vector<32x128xf32>
    %146 = arith.addf %144, %145 : vector<32x128xf32>
    %147 = arith.truncf %146 : vector<32x128xf32> to vector<32x128xbf16>
    %c0_47 = arith.constant 0 : index
    %c0_48 = arith.constant 0 : index
    %148 = vector.load %arg7[%c0_47, %c0_48] : memref<128x384xbf16, #tpu.memory_space<vmem>>, vector<128x128xbf16>
    %cst_49 = arith.constant dense<0.000000e+00> : vector<32x128xf32>
    %149 = tpu.matmul %147, %148, %cst_49 {dimension_numbers = #tpu.dot_dimension_numbers<[1], [0], [0], [1], [0, 0, 1, 1], [], []>} : vector<32x128xbf16>, vector<128x128xbf16>, vector<32x128xf32> -> vector<32x128xf32>
    %c0_50 = arith.constant 0 : index
    %c0_51 = arith.constant 0 : index
    %150 = vector.load %arg8[%c0_50, %c0_51] : memref<1x384xf32, #tpu.memory_space<vmem>>, vector<1x128xf32>
    %151 = vector.broadcast %150 : vector<1x128xf32> to vector<32x128xf32>
    %152 = arith.addf %149, %151 : vector<32x128xf32>
    %153 = arith.truncf %3 : vector<32x128xf32> to vector<32x128xbf16>
    %c0_52 = arith.constant 0 : index
    %c128 = arith.constant 128 : index
    %154 = vector.load %arg7[%c0_52, %c128] : memref<128x384xbf16, #tpu.memory_space<vmem>>, vector<128x256xbf16>
    %cst_53 = arith.constant dense<0.000000e+00> : vector<32x256xf32>
    %155 = tpu.matmul %153, %154, %cst_53 {dimension_numbers = #tpu.dot_dimension_numbers<[1], [0], [0], [1], [0, 0, 1, 1], [], []>} : vector<32x128xbf16>, vector<128x256xbf16>, vector<32x256xf32> -> vector<32x256xf32>
    %c0_54 = arith.constant 0 : index
    %c128_55 = arith.constant 128 : index
    %156 = vector.load %arg8[%c0_54, %c128_55] : memref<1x384xf32, #tpu.memory_space<vmem>>, vector<1x256xf32>
    %157 = vector.broadcast %156 : vector<1x256xf32> to vector<32x256xf32>
    %158 = arith.addf %155, %157 : vector<32x256xf32>
    %159 = vector.extract_strided_slice %158 {offsets = [0, 0], sizes = [32, 128], strides = [1, 1]} : vector<32x256xf32> to vector<32x128xf32>
    %160 = vector.extract_strided_slice %158 {offsets = [0, 128], sizes = [32, 128], strides = [1, 1]} : vector<32x256xf32> to vector<32x128xf32>
    %161 = arith.truncf %152 : vector<32x128xf32> to vector<32x128xbf16>
    %162 = vector.shape_cast %161 : vector<32x128xbf16> to vector<2x16x128xbf16>
    %163 = arith.truncf %159 : vector<32x128xf32> to vector<32x128xbf16>
    %164 = vector.shape_cast %163 : vector<32x128xbf16> to vector<2x16x128xbf16>
    %165 = arith.truncf %160 : vector<32x128xf32> to vector<32x128xbf16>
    %166 = vector.shape_cast %165 : vector<32x128xbf16> to vector<2x16x128xbf16>
    %167 = vector.extract_strided_slice %162 {offsets = [0, 0, 0], sizes = [2, 16, 32], strides = [1, 1, 1]} : vector<2x16x128xbf16> to vector<2x16x32xbf16>
    %168 = vector.extract_strided_slice %164 {offsets = [0, 0, 0], sizes = [2, 16, 32], strides = [1, 1, 1]} : vector<2x16x128xbf16> to vector<2x16x32xbf16>
    "tpu.trace_start"() <{level = 10 : i32, message = "bqd,bkd->bqk"}> : () -> ()
    %cst_56 = arith.constant dense<0.000000e+00> : vector<2x16x16xf32>
    %169 = tpu.matmul %167, %168, %cst_56 {dimension_numbers = #tpu.dot_dimension_numbers<[2], [2], [1], [1], [0, 0, 0, 1, 1, 1], [0], [0]>} : vector<2x16x32xbf16>, vector<2x16x32xbf16>, vector<2x16x16xf32> -> vector<2x16x16xf32>
    "tpu.trace_stop"() : () -> ()
    %cst_57 = arith.constant 0.176776692 : f32
    %170 = vector.broadcast %cst_57 : f32 to vector<2x16x16xf32>
    %171 = arith.mulf %169, %170 : vector<2x16x16xf32>
    %cst_58 = arith.constant dense<0xFF800000> : vector<2x16xf32>
    %172 = vector.multi_reduction <maximumf>, %171, %cst_58 [2] : vector<2x16x16xf32> to vector<2x16xf32>
    %173 = vector.shape_cast %172 : vector<2x16xf32> to vector<2x16x1xf32>
    %174 = vector.broadcast %173 : vector<2x16x1xf32> to vector<2x16x16xf32>
    %175 = arith.subf %171, %174 : vector<2x16x16xf32>
    %176 = math.exp %175 : vector<2x16x16xf32>
    %cst_59 = arith.constant dense<0.000000e+00> : vector<2x16xf32>
    %177 = vector.multi_reduction <add>, %176, %cst_59 [2] : vector<2x16x16xf32> to vector<2x16xf32>
    %178 = vector.shape_cast %177 : vector<2x16xf32> to vector<2x16x1xf32>
    %179 = tpu.reciprocal %178 {approx = true} : vector<2x16x1xf32> -> vector<2x16x1xf32>
    %180 = vector.broadcast %179 : vector<2x16x1xf32> to vector<2x16x16xf32>
    %181 = arith.mulf %176, %180 : vector<2x16x16xf32>
    %182 = arith.truncf %181 : vector<2x16x16xf32> to vector<2x16x16xbf16>
    %183 = vector.extract_strided_slice %166 {offsets = [0, 0, 0], sizes = [2, 16, 32], strides = [1, 1, 1]} : vector<2x16x128xbf16> to vector<2x16x32xbf16>
    "tpu.trace_start"() <{level = 10 : i32, message = "bqk,bkd->bqd"}> : () -> ()
    %cst_60 = arith.constant dense<0.000000e+00> : vector<2x16x32xf32>
    %184 = tpu.matmul %182, %183, %cst_60 {dimension_numbers = #tpu.dot_dimension_numbers<[2], [1], [1], [2], [0, 0, 0, 1, 1, 2], [0], [0]>} : vector<2x16x16xbf16>, vector<2x16x32xbf16>, vector<2x16x32xf32> -> vector<2x16x32xf32>
    "tpu.trace_stop"() : () -> ()
    %185 = vector.extract_strided_slice %162 {offsets = [0, 0, 32], sizes = [2, 16, 32], strides = [1, 1, 1]} : vector<2x16x128xbf16> to vector<2x16x32xbf16>
    %186 = vector.extract_strided_slice %164 {offsets = [0, 0, 32], sizes = [2, 16, 32], strides = [1, 1, 1]} : vector<2x16x128xbf16> to vector<2x16x32xbf16>
    "tpu.trace_start"() <{level = 10 : i32, message = "bqd,bkd->bqk"}> : () -> ()
    %cst_61 = arith.constant dense<0.000000e+00> : vector<2x16x16xf32>
    %187 = tpu.matmul %185, %186, %cst_61 {dimension_numbers = #tpu.dot_dimension_numbers<[2], [2], [1], [1], [0, 0, 0, 1, 1, 1], [0], [0]>} : vector<2x16x32xbf16>, vector<2x16x32xbf16>, vector<2x16x16xf32> -> vector<2x16x16xf32>
    "tpu.trace_stop"() : () -> ()
    %cst_62 = arith.constant 0.176776692 : f32
    %188 = vector.broadcast %cst_62 : f32 to vector<2x16x16xf32>
    %189 = arith.mulf %187, %188 : vector<2x16x16xf32>
    %cst_63 = arith.constant dense<0xFF800000> : vector<2x16xf32>
    %190 = vector.multi_reduction <maximumf>, %189, %cst_63 [2] : vector<2x16x16xf32> to vector<2x16xf32>
    %191 = vector.shape_cast %190 : vector<2x16xf32> to vector<2x16x1xf32>
    %192 = vector.broadcast %191 : vector<2x16x1xf32> to vector<2x16x16xf32>
    %193 = arith.subf %189, %192 : vector<2x16x16xf32>
    %194 = math.exp %193 : vector<2x16x16xf32>
    %cst_64 = arith.constant dense<0.000000e+00> : vector<2x16xf32>
    %195 = vector.multi_reduction <add>, %194, %cst_64 [2] : vector<2x16x16xf32> to vector<2x16xf32>
    %196 = vector.shape_cast %195 : vector<2x16xf32> to vector<2x16x1xf32>
    %197 = tpu.reciprocal %196 {approx = true} : vector<2x16x1xf32> -> vector<2x16x1xf32>
    %198 = vector.broadcast %197 : vector<2x16x1xf32> to vector<2x16x16xf32>
    %199 = arith.mulf %194, %198 : vector<2x16x16xf32>
    %200 = arith.truncf %199 : vector<2x16x16xf32> to vector<2x16x16xbf16>
    %201 = vector.extract_strided_slice %166 {offsets = [0, 0, 32], sizes = [2, 16, 32], strides = [1, 1, 1]} : vector<2x16x128xbf16> to vector<2x16x32xbf16>
    "tpu.trace_start"() <{level = 10 : i32, message = "bqk,bkd->bqd"}> : () -> ()
    %cst_65 = arith.constant dense<0.000000e+00> : vector<2x16x32xf32>
    %202 = tpu.matmul %200, %201, %cst_65 {dimension_numbers = #tpu.dot_dimension_numbers<[2], [1], [1], [2], [0, 0, 0, 1, 1, 2], [0], [0]>} : vector<2x16x16xbf16>, vector<2x16x32xbf16>, vector<2x16x32xf32> -> vector<2x16x32xf32>
    "tpu.trace_stop"() : () -> ()
    %203 = vector.extract_strided_slice %162 {offsets = [0, 0, 64], sizes = [2, 16, 32], strides = [1, 1, 1]} : vector<2x16x128xbf16> to vector<2x16x32xbf16>
    %204 = vector.extract_strided_slice %164 {offsets = [0, 0, 64], sizes = [2, 16, 32], strides = [1, 1, 1]} : vector<2x16x128xbf16> to vector<2x16x32xbf16>
    "tpu.trace_start"() <{level = 10 : i32, message = "bqd,bkd->bqk"}> : () -> ()
    %cst_66 = arith.constant dense<0.000000e+00> : vector<2x16x16xf32>
    %205 = tpu.matmul %203, %204, %cst_66 {dimension_numbers = #tpu.dot_dimension_numbers<[2], [2], [1], [1], [0, 0, 0, 1, 1, 1], [0], [0]>} : vector<2x16x32xbf16>, vector<2x16x32xbf16>, vector<2x16x16xf32> -> vector<2x16x16xf32>
    "tpu.trace_stop"() : () -> ()
    %cst_67 = arith.constant 0.176776692 : f32
    %206 = vector.broadcast %cst_67 : f32 to vector<2x16x16xf32>
    %207 = arith.mulf %205, %206 : vector<2x16x16xf32>
    %cst_68 = arith.constant dense<0xFF800000> : vector<2x16xf32>
    %208 = vector.multi_reduction <maximumf>, %207, %cst_68 [2] : vector<2x16x16xf32> to vector<2x16xf32>
    %209 = vector.shape_cast %208 : vector<2x16xf32> to vector<2x16x1xf32>
    %210 = vector.broadcast %209 : vector<2x16x1xf32> to vector<2x16x16xf32>
    %211 = arith.subf %207, %210 : vector<2x16x16xf32>
    %212 = math.exp %211 : vector<2x16x16xf32>
    %cst_69 = arith.constant dense<0.000000e+00> : vector<2x16xf32>
    %213 = vector.multi_reduction <add>, %212, %cst_69 [2] : vector<2x16x16xf32> to vector<2x16xf32>
    %214 = vector.shape_cast %213 : vector<2x16xf32> to vector<2x16x1xf32>
    %215 = tpu.reciprocal %214 {approx = true} : vector<2x16x1xf32> -> vector<2x16x1xf32>
    %216 = vector.broadcast %215 : vector<2x16x1xf32> to vector<2x16x16xf32>
    %217 = arith.mulf %212, %216 : vector<2x16x16xf32>
    %218 = arith.truncf %217 : vector<2x16x16xf32> to vector<2x16x16xbf16>
    %219 = vector.extract_strided_slice %166 {offsets = [0, 0, 64], sizes = [2, 16, 32], strides = [1, 1, 1]} : vector<2x16x128xbf16> to vector<2x16x32xbf16>
    "tpu.trace_start"() <{level = 10 : i32, message = "bqk,bkd->bqd"}> : () -> ()
    %cst_70 = arith.constant dense<0.000000e+00> : vector<2x16x32xf32>
    %220 = tpu.matmul %218, %219, %cst_70 {dimension_numbers = #tpu.dot_dimension_numbers<[2], [1], [1], [2], [0, 0, 0, 1, 1, 2], [0], [0]>} : vector<2x16x16xbf16>, vector<2x16x32xbf16>, vector<2x16x32xf32> -> vector<2x16x32xf32>
    "tpu.trace_stop"() : () -> ()
    %221 = vector.extract_strided_slice %162 {offsets = [0, 0, 96], sizes = [2, 16, 32], strides = [1, 1, 1]} : vector<2x16x128xbf16> to vector<2x16x32xbf16>
    %222 = vector.extract_strided_slice %164 {offsets = [0, 0, 96], sizes = [2, 16, 32], strides = [1, 1, 1]} : vector<2x16x128xbf16> to vector<2x16x32xbf16>
    "tpu.trace_start"() <{level = 10 : i32, message = "bqd,bkd->bqk"}> : () -> ()
    %cst_71 = arith.constant dense<0.000000e+00> : vector<2x16x16xf32>
    %223 = tpu.matmul %221, %222, %cst_71 {dimension_numbers = #tpu.dot_dimension_numbers<[2], [2], [1], [1], [0, 0, 0, 1, 1, 1], [0], [0]>} : vector<2x16x32xbf16>, vector<2x16x32xbf16>, vector<2x16x16xf32> -> vector<2x16x16xf32>
    "tpu.trace_stop"() : () -> ()
    %cst_72 = arith.constant 0.176776692 : f32
    %224 = vector.broadcast %cst_72 : f32 to vector<2x16x16xf32>
    %225 = arith.mulf %223, %224 : vector<2x16x16xf32>
    %cst_73 = arith.constant dense<0xFF800000> : vector<2x16xf32>
    %226 = vector.multi_reduction <maximumf>, %225, %cst_73 [2] : vector<2x16x16xf32> to vector<2x16xf32>
    %227 = vector.shape_cast %226 : vector<2x16xf32> to vector<2x16x1xf32>
    %228 = vector.broadcast %227 : vector<2x16x1xf32> to vector<2x16x16xf32>
    %229 = arith.subf %225, %228 : vector<2x16x16xf32>
    %230 = math.exp %229 : vector<2x16x16xf32>
    %cst_74 = arith.constant dense<0.000000e+00> : vector<2x16xf32>
    %231 = vector.multi_reduction <add>, %230, %cst_74 [2] : vector<2x16x16xf32> to vector<2x16xf32>
    %232 = vector.shape_cast %231 : vector<2x16xf32> to vector<2x16x1xf32>
    %233 = tpu.reciprocal %232 {approx = true} : vector<2x16x1xf32> -> vector<2x16x1xf32>
    %234 = vector.broadcast %233 : vector<2x16x1xf32> to vector<2x16x16xf32>
    %235 = arith.mulf %230, %234 : vector<2x16x16xf32>
    %236 = arith.truncf %235 : vector<2x16x16xf32> to vector<2x16x16xbf16>
    %237 = vector.extract_strided_slice %166 {offsets = [0, 0, 96], sizes = [2, 16, 32], strides = [1, 1, 1]} : vector<2x16x128xbf16> to vector<2x16x32xbf16>
    "tpu.trace_start"() <{level = 10 : i32, message = "bqk,bkd->bqd"}> : () -> ()
    %cst_75 = arith.constant dense<0.000000e+00> : vector<2x16x32xf32>
    %238 = tpu.matmul %236, %237, %cst_75 {dimension_numbers = #tpu.dot_dimension_numbers<[2], [1], [1], [2], [0, 0, 0, 1, 1, 2], [0], [0]>} : vector<2x16x16xbf16>, vector<2x16x32xbf16>, vector<2x16x32xf32> -> vector<2x16x32xf32>
    "tpu.trace_stop"() : () -> ()
    %239 = tpu.concatenate %184, %202, %220, %238 in 2 : vector<2x16x32xf32>, vector<2x16x32xf32>, vector<2x16x32xf32>, vector<2x16x32xf32> -> vector<2x16x128xf32>
    %240 = vector.shape_cast %239 : vector<2x16x128xf32> to vector<32x128xf32>
    %241 = arith.truncf %240 : vector<32x128xf32> to vector<32x128xbf16>
    %c0_76 = arith.constant 0 : index
    %c0_77 = arith.constant 0 : index
    %242 = vector.load %arg9[%c0_76, %c0_77] : memref<128x128xbf16, #tpu.memory_space<vmem>>, vector<128x128xbf16>
    %cst_78 = arith.constant dense<0.000000e+00> : vector<32x128xf32>
    %243 = tpu.matmul %241, %242, %cst_78 {dimension_numbers = #tpu.dot_dimension_numbers<[1], [0], [0], [1], [0, 0, 1, 1], [], []>} : vector<32x128xbf16>, vector<128x128xbf16>, vector<32x128xf32> -> vector<32x128xf32>
    %c0_79 = arith.constant 0 : index
    %c0_80 = arith.constant 0 : index
    %244 = vector.load %arg10[%c0_79, %c0_80] : memref<1x128xf32, #tpu.memory_space<vmem>>, vector<1x128xf32>
    %245 = vector.broadcast %244 : vector<1x128xf32> to vector<32x128xf32>
    %246 = arith.addf %243, %245 : vector<32x128xf32>
    %247 = arith.addf %146, %246 : vector<32x128xf32>
    %c0_81 = arith.constant 0 : index
    %c0_82 = arith.constant 0 : index
    %248 = vector.load %arg17[%c0_81, %c0_82] : memref<1x128xf32, #tpu.memory_space<vmem>>, vector<1x128xf32>
    %c0_83 = arith.constant 0 : index
    %c0_84 = arith.constant 0 : index
    %249 = vector.load %arg18[%c0_83, %c0_84] : memref<1x128xf32, #tpu.memory_space<vmem>>, vector<1x128xf32>
    %cst_85 = arith.constant dense<0.000000e+00> : vector<32xf32>
    %250 = vector.multi_reduction <add>, %247, %cst_85 [1] : vector<32x128xf32> to vector<32xf32>
    %251 = vector.shape_cast %250 : vector<32xf32> to vector<32x1xf32>
    %cst_86 = arith.constant 1.280000e+02 : f32
    %252 = vector.broadcast %cst_86 : f32 to vector<32x1xf32>
    %253 = arith.divf %251, %252 : vector<32x1xf32>
    %254 = vector.broadcast %253 : vector<32x1xf32> to vector<32x128xf32>
    %255 = arith.subf %247, %254 : vector<32x128xf32>
    %256 = arith.mulf %255, %255 : vector<32x128xf32>
    %cst_87 = arith.constant dense<0.000000e+00> : vector<32xf32>
    %257 = vector.multi_reduction <add>, %256, %cst_87 [1] : vector<32x128xf32> to vector<32xf32>
    %258 = vector.shape_cast %257 : vector<32xf32> to vector<32x1xf32>
    %cst_88 = arith.constant 1.280000e+02 : f32
    %259 = vector.broadcast %cst_88 : f32 to vector<32x1xf32>
    %260 = arith.divf %258, %259 : vector<32x1xf32>
    %261 = vector.broadcast %253 : vector<32x1xf32> to vector<32x128xf32>
    %262 = arith.subf %247, %261 : vector<32x128xf32>
    %cst_89 = arith.constant 9.99999974E-6 : f32
    %263 = vector.broadcast %cst_89 : f32 to vector<32x1xf32>
    %264 = arith.addf %260, %263 : vector<32x1xf32>
    %265 = math.rsqrt %264 : vector<32x1xf32>
    %266 = vector.broadcast %265 : vector<32x1xf32> to vector<32x128xf32>
    %267 = arith.mulf %262, %266 : vector<32x128xf32>
    %268 = vector.broadcast %248 : vector<1x128xf32> to vector<32x128xf32>
    %269 = arith.mulf %267, %268 : vector<32x128xf32>
    %270 = vector.broadcast %249 : vector<1x128xf32> to vector<32x128xf32>
    %271 = arith.addf %269, %270 : vector<32x128xf32>
    %272 = arith.truncf %271 : vector<32x128xf32> to vector<32x128xbf16>
    %c0_90 = arith.constant 0 : index
    %c0_91 = arith.constant 0 : index
    %273 = vector.load %arg11[%c0_90, %c0_91] : memref<128x256xbf16, #tpu.memory_space<vmem>>, vector<128x256xbf16>
    %cst_92 = arith.constant dense<0.000000e+00> : vector<32x256xf32>
    %274 = tpu.matmul %272, %273, %cst_92 {dimension_numbers = #tpu.dot_dimension_numbers<[1], [0], [0], [1], [0, 0, 1, 1], [], []>} : vector<32x128xbf16>, vector<128x256xbf16>, vector<32x256xf32> -> vector<32x256xf32>
    %c0_93 = arith.constant 0 : index
    %c0_94 = arith.constant 0 : index
    %275 = vector.load %arg12[%c0_93, %c0_94] : memref<1x256xf32, #tpu.memory_space<vmem>>, vector<1x256xf32>
    %276 = vector.broadcast %275 : vector<1x256xf32> to vector<32x256xf32>
    %277 = arith.addf %274, %276 : vector<32x256xf32>
    %cst_95 = arith.constant 0.000000e+00 : f32
    %278 = vector.broadcast %cst_95 : f32 to vector<32x256xf32>
    %279 = arith.maximumf %277, %278 : vector<32x256xf32>
    %280 = arith.truncf %279 : vector<32x256xf32> to vector<32x256xbf16>
    %c0_96 = arith.constant 0 : index
    %c0_97 = arith.constant 0 : index
    %281 = vector.load %arg13[%c0_96, %c0_97] : memref<256x128xbf16, #tpu.memory_space<vmem>>, vector<256x128xbf16>
    %cst_98 = arith.constant dense<0.000000e+00> : vector<32x128xf32>
    %282 = tpu.matmul %280, %281, %cst_98 {dimension_numbers = #tpu.dot_dimension_numbers<[1], [0], [0], [1], [0, 0, 1, 1], [], []>} : vector<32x256xbf16>, vector<256x128xbf16>, vector<32x128xf32> -> vector<32x128xf32>
    %c0_99 = arith.constant 0 : index
    %c0_100 = arith.constant 0 : index
    %283 = vector.load %arg14[%c0_99, %c0_100] : memref<1x128xf32, #tpu.memory_space<vmem>>, vector<1x128xf32>
    %284 = vector.broadcast %283 : vector<1x128xf32> to vector<32x128xf32>
    %285 = arith.addf %282, %284 : vector<32x128xf32>
    %286 = arith.addf %271, %285 : vector<32x128xf32>
    %c0_101 = arith.constant 0 : index
    %c0_102 = arith.constant 0 : index
    %287 = vector.load %arg19[%c0_101, %c0_102] : memref<1x128xf32, #tpu.memory_space<vmem>>, vector<1x128xf32>
    %c0_103 = arith.constant 0 : index
    %c0_104 = arith.constant 0 : index
    %288 = vector.load %arg20[%c0_103, %c0_104] : memref<1x128xf32, #tpu.memory_space<vmem>>, vector<1x128xf32>
    %cst_105 = arith.constant dense<0.000000e+00> : vector<32xf32>
    %289 = vector.multi_reduction <add>, %286, %cst_105 [1] : vector<32x128xf32> to vector<32xf32>
    %290 = vector.shape_cast %289 : vector<32xf32> to vector<32x1xf32>
    %cst_106 = arith.constant 1.280000e+02 : f32
    %291 = vector.broadcast %cst_106 : f32 to vector<32x1xf32>
    %292 = arith.divf %290, %291 : vector<32x1xf32>
    %293 = vector.broadcast %292 : vector<32x1xf32> to vector<32x128xf32>
    %294 = arith.subf %286, %293 : vector<32x128xf32>
    %295 = arith.mulf %294, %294 : vector<32x128xf32>
    %cst_107 = arith.constant dense<0.000000e+00> : vector<32xf32>
    %296 = vector.multi_reduction <add>, %295, %cst_107 [1] : vector<32x128xf32> to vector<32xf32>
    %297 = vector.shape_cast %296 : vector<32xf32> to vector<32x1xf32>
    %cst_108 = arith.constant 1.280000e+02 : f32
    %298 = vector.broadcast %cst_108 : f32 to vector<32x1xf32>
    %299 = arith.divf %297, %298 : vector<32x1xf32>
    %300 = vector.broadcast %292 : vector<32x1xf32> to vector<32x128xf32>
    %301 = arith.subf %286, %300 : vector<32x128xf32>
    %cst_109 = arith.constant 9.99999974E-6 : f32
    %302 = vector.broadcast %cst_109 : f32 to vector<32x1xf32>
    %303 = arith.addf %299, %302 : vector<32x1xf32>
    %304 = math.rsqrt %303 : vector<32x1xf32>
    %305 = vector.broadcast %304 : vector<32x1xf32> to vector<32x128xf32>
    %306 = arith.mulf %301, %305 : vector<32x128xf32>
    %307 = vector.broadcast %287 : vector<1x128xf32> to vector<32x128xf32>
    %308 = arith.mulf %306, %307 : vector<32x128xf32>
    %309 = vector.broadcast %288 : vector<1x128xf32> to vector<32x128xf32>
    %310 = arith.addf %308, %309 : vector<32x128xf32>
    %311 = vector.shape_cast %310 : vector<32x128xf32> to vector<2x16x128xf32>
    %c0_110 = arith.constant 0 : index
    %c0_111 = arith.constant 0 : index
    %c0_112 = arith.constant 0 : index
    %312 = vector.load %arg21[%c0_110, %c0_111, %c0_112] : memref<2x16x128xf32, #tpu.memory_space<vmem>>, vector<2x16x128xf32>
    tpu.vector_store %arg21[%c0_110, %c0_111, %c0_112], %311 {strides = array<i32>} : memref<2x16x128xf32, #tpu.memory_space<vmem>>, vector<2x16x128xf32>,
    return
  }
  func.func @transform_0(%arg0: i32) -> (i32, i32, i32) {
    %c0_i32 = arith.constant 0 : i32
    %c0_i32_0 = arith.constant 0 : i32
    %c0_i32_1 = arith.constant 0 : i32
    return %arg0, %c0_i32, %c0_i32_0 : i32, i32, i32
  }
  func.func @transform_1(%arg0: i32) -> (i32, i32, i32) {
    %c0_i32 = arith.constant 0 : i32
    %c0_i32_0 = arith.constant 0 : i32
    %c0_i32_1 = arith.constant 0 : i32
    return %arg0, %c0_i32, %c0_i32_0 : i32, i32, i32
  }
  func.func @transform_2(%arg0: i32) -> (i32, i32) {
    %c0_i32 = arith.constant 0 : i32
    %c0_i32_0 = arith.constant 0 : i32
    %c0_i32_1 = arith.constant 0 : i32
    return %c0_i32, %c0_i32_0 : i32, i32
  }
  func.func @transform_3(%arg0: i32) -> (i32, i32) {
    %c0_i32 = arith.constant 0 : i32
    %c0_i32_0 = arith.constant 0 : i32
    %c0_i32_1 = arith.constant 0 : i32
    return %c0_i32, %c0_i32_0 : i32, i32
  }
  func.func @transform_4(%arg0: i32) -> (i32, i32) {
    %c0_i32 = arith.constant 0 : i32
    %c0_i32_0 = arith.constant 0 : i32
    %c0_i32_1 = arith.constant 0 : i32
    return %c0_i32, %c0_i32_0 : i32, i32
  }
  func.func @transform_5(%arg0: i32) -> (i32, i32) {
    %c0_i32 = arith.constant 0 : i32
    %c0_i32_0 = arith.constant 0 : i32
    %c0_i32_1 = arith.constant 0 : i32
    return %c0_i32, %c0_i32_0 : i32, i32
  }
  func.func @transform_6(%arg0: i32) -> (i32, i32) {
    %c0_i32 = arith.constant 0 : i32
    %c0_i32_0 = arith.constant 0 : i32
    %c0_i32_1 = arith.constant 0 : i32
    return %c0_i32, %c0_i32_0 : i32, i32
  }
  func.func @transform_7(%arg0: i32) -> (i32, i32) {
    %c0_i32 = arith.constant 0 : i32
    %c0_i32_0 = arith.constant 0 : i32
    %c0_i32_1 = arith.constant 0 : i32
    return %c0_i32, %c0_i32_0 : i32, i32
  }
  func.func @transform_8(%arg0: i32) -> (i32, i32) {
    %c0_i32 = arith.constant 0 : i32
    %c0_i32_0 = arith.constant 0 : i32
    %c0_i32_1 = arith.constant 0 : i32
    return %c0_i32, %c0_i32_0 : i32, i32
  }
  func.func @transform_9(%arg0: i32) -> (i32, i32) {
    %c0_i32 = arith.constant 0 : i32
    %c0_i32_0 = arith.constant 0 : i32
    %c0_i32_1 = arith.constant 0 : i32
    return %c0_i32, %c0_i32_0 : i32, i32
  }
  func.func @transform_10(%arg0: i32) -> (i32, i32) {
    %c0_i32 = arith.constant 0 : i32
    %c0_i32_0 = arith.constant 0 : i32
    %c0_i32_1 = arith.constant 0 : i32
    return %c0_i32, %c0_i32_0 : i32, i32
  }
  func.func @transform_11(%arg0: i32) -> (i32, i32) {
    %c0_i32 = arith.constant 0 : i32
    %c0_i32_0 = arith.constant 0 : i32
    %c0_i32_1 = arith.constant 0 : i32
    return %c0_i32, %c0_i32_0 : i32, i32
  }
  func.func @transform_12(%arg0: i32) -> (i32, i32) {
    %c0_i32 = arith.constant 0 : i32
    %c0_i32_0 = arith.constant 0 : i32
    %c0_i32_1 = arith.constant 0 : i32
    return %c0_i32, %c0_i32_0 : i32, i32
  }
  func.func @transform_13(%arg0: i32) -> (i32, i32) {
    %c0_i32 = arith.constant 0 : i32
    %c0_i32_0 = arith.constant 0 : i32
    %c0_i32_1 = arith.constant 0 : i32
    return %c0_i32, %c0_i32_0 : i32, i32
  }
  func.func @transform_14(%arg0: i32) -> (i32, i32) {
    %c0_i32 = arith.constant 0 : i32
    %c0_i32_0 = arith.constant 0 : i32
    %c0_i32_1 = arith.constant 0 : i32
    return %c0_i32, %c0_i32_0 : i32, i32
  }
  func.func @transform_15(%arg0: i32) -> (i32, i32) {
    %c0_i32 = arith.constant 0 : i32
    %c0_i32_0 = arith.constant 0 : i32
    %c0_i32_1 = arith.constant 0 : i32
    return %c0_i32, %c0_i32_0 : i32, i32
  }
  func.func @transform_16(%arg0: i32) -> (i32, i32) {
    %c0_i32 = arith.constant 0 : i32
    %c0_i32_0 = arith.constant 0 : i32
    %c0_i32_1 = arith.constant 0 : i32
    return %c0_i32, %c0_i32_0 : i32, i32
  }
  func.func @transform_17(%arg0: i32) -> (i32, i32) {
    %c0_i32 = arith.constant 0 : i32
    %c0_i32_0 = arith.constant 0 : i32
    %c0_i32_1 = arith.constant 0 : i32
    return %c0_i32, %c0_i32_0 : i32, i32
  }
  func.func @transform_18(%arg0: i32) -> (i32, i32) {
    %c0_i32 = arith.constant 0 : i32
    %c0_i32_0 = arith.constant 0 : i32
    %c0_i32_1 = arith.constant 0 : i32
    return %c0_i32, %c0_i32_0 : i32, i32
  }
  func.func @transform_19(%arg0: i32) -> (i32, i32) {
    %c0_i32 = arith.constant 0 : i32
    %c0_i32_0 = arith.constant 0 : i32
    %c0_i32_1 = arith.constant 0 : i32
    return %c0_i32, %c0_i32_0 : i32, i32
  }
  func.func @transform_20(%arg0: i32) -> (i32, i32, i32) {
    %c0_i32 = arith.constant 0 : i32
    %c0_i32_0 = arith.constant 0 : i32
    %c0_i32_1 = arith.constant 0 : i32
    return %arg0, %c0_i32, %c0_i32_0 : i32, i32, i32
  }
}

</mosaic_0001>

<llo_original>
// kernel: tpu_custom_call.1
$region0: #{tpu_custom_call.1}
  #allocation0 [shape = 'u32[]', space=smem, size = 0x4, offset = 0x4, fixed_abs, tag = 'smem constant byte address 0x4 - core index']
  #allocation1 [shape = 'u32[72,128]{1,0:T(1,128)}', space=vmem, size = 0x9000, scoped, tag = 'internal scratch']
  %s0 = inlined_call_operand.hbm [shape: f32[4,16,128], index: 0, kind: input, shape index: {}]
  %s1 = inlined_call_operand.hbm [shape: f32[4,16,128], index: 1, kind: input, shape index: {}]
  %s2 = inlined_call_operand.hbm [shape: bf16[128,384], index: 2, kind: input, shape index: {}]
  %s3 = inlined_call_operand.hbm [shape: f32[1,384], index: 3, kind: input, shape index: {}]
  %s4 = inlined_call_operand.hbm [shape: bf16[128,128], index: 4, kind: input, shape index: {}]
  %s5 = inlined_call_operand.hbm [shape: f32[1,128], index: 5, kind: input, shape index: {}]
  %s6 = inlined_call_operand.hbm [shape: bf16[128,384], index: 6, kind: input, shape index: {}]
  %s7 = inlined_call_operand.vmem [shape: f32[1,384], index: 7, kind: input, shape index: {}]
  %s8 = inlined_call_operand.hbm [shape: bf16[128,128], index: 8, kind: input, shape index: {}]
  %s9 = inlined_call_operand.vmem [shape: f32[1,128], index: 9, kind: input, shape index: {}]
  %s10 = inlined_call_operand.hbm [shape: bf16[128,256], index: 10, kind: input, shape index: {}]
  %s11 = inlined_call_operand.vmem [shape: f32[1,256], index: 11, kind: input, shape index: {}]
  %s12 = inlined_call_operand.hbm [shape: bf16[256,128], index: 12, kind: input, shape index: {}]
  %s13 = inlined_call_operand.vmem [shape: f32[1,128], index: 13, kind: input, shape index: {}]
  %s14 = inlined_call_operand.vmem [shape: f32[1,128], index: 14, kind: input, shape index: {}]
  %s15 = inlined_call_operand.vmem [shape: f32[1,128], index: 15, kind: input, shape index: {}]
  %s16 = inlined_call_operand.vmem [shape: f32[1,128], index: 16, kind: input, shape index: {}]
  %s17 = inlined_call_operand.vmem [shape: f32[1,128], index: 17, kind: input, shape index: {}]
  %s18 = inlined_call_operand.vmem [shape: f32[1,128], index: 18, kind: input, shape index: {}]
  %s19 = inlined_call_operand.vmem [shape: f32[1,128], index: 19, kind: input, shape index: {}]
  %s20 = inlined_call_operand.hbm [shape: f32[4,16,128], index: 20, kind: output, shape index: {}]
  %s21 = sld [smem:[#allocation0]]
  $region153: #{tpu_custom_call.1} parent=0
    _
  %s23 = ssub.s32 1, %s21
  %s24 = scalar_select 0, %s23, %s21
  $region1: #{tpu_custom_call.1} parent=0
    #allocation2 [shape = 'u8[32768]{0}', space=vmem, size = 0x8000, scoped, tag = 'input window, operand 0']
    #allocation3 [shape = 's32[2]{0}', space=sflag, size = 0x8, scoped, tag = 'scoped memory for tpu_custom_call.1']
    #allocation4 [shape = 's32[2]{0}', space=sflag, size = 0x8, scoped, tag = 'scoped memory for tpu_custom_call.1']
    #allocation5 [shape = 'u8[32768]{0}', space=vmem, size = 0x8000, scoped, tag = 'input window, operand 1']
    #allocation6 [shape = 's32[2]{0}', space=sflag, size = 0x8, scoped, tag = 'scoped memory for tpu_custom_call.1']
    #allocation7 [shape = 'u8[98304]{0}', space=vmem, size = 0x18000, scoped, tag = 'input window, operand 2, single buffered']
    #allocation8 [shape = 'u8[1536]{0}', space=vmem, size = 0x800, scoped, tag = 'input window, operand 3, single buffered']
    #allocation9 [shape = 's32[1]{0}', space=sflag, size = 0x4, scoped, tag = 'scoped memory for tpu_custom_call.1']
    #allocation10 [shape = 'u8[32768]{0}', space=vmem, size = 0x8000, scoped, tag = 'input window, operand 4, single buffered']
    #allocation11 [shape = 'u8[512]{0}', space=vmem, size = 0x400, scoped, tag = 'input window, operand 5, single buffered']
    #allocation12 [shape = 's32[1]{0}', space=sflag, size = 0x4, scoped, tag = 'scoped memory for tpu_custom_call.1']
    #allocation13 [shape = 'u8[98304]{0}', space=vmem, size = 0x18000, scoped, tag = 'input window, operand 6, single buffered']
    #allocation14 [shape = 'u8[32768]{0}', space=vmem, size = 0x8000, scoped, tag = 'input window, operand 8, single buffered']
    #allocation15 [shape = 's32[1]{0}', space=sflag, size = 0x4, scoped, tag = 'scoped memory for tpu_custom_call.1']
    #allocation16 [shape = 'u8[65536]{0}', space=vmem, size = 0x10000, scoped, tag = 'input window, operand 10, single buffered']
    #allocation17 [shape = 'u8[65536]{0}', space=vmem, size = 0x10000, scoped, tag = 'input window, operand 12, single buffered']
    #allocation18 [shape = 's32[1]{0}', space=sflag, size = 0x4, scoped, tag = 'scoped memory for tpu_custom_call.1']
    #allocation19 [shape = 'u8[32768]{0}', space=vmem, size = 0x8000, scoped, tag = 'output window, operand 0']
    %25 = vsyncpa [#allocation3], 0
    %s26 = scalar_lea.sflag [#allocation3], 1
    %27 = vsyncpa %s26, 0
    %28 = vsyncpa [#allocation6], 0
    %s29 = scalar_lea.sflag [#allocation6], 1
    %30 = vsyncpa %s29, 0
    %31 = vsyncpa [#allocation9], 0
    %32 = vsyncpa [#allocation12], 0
    %33 = vsyncpa [#allocation15], 0
    %34 = vsyncpa [#allocation18], 0
    %35 = vsyncpa [#allocation4], 0
    %s36 = scalar_lea.sflag [#allocation4], 1
    %37 = vsyncpa %s36, 0
    loop: start=0, step=1, limit=4
    $region2: #{tpu_custom_call.1} parent=1 // loop_pre_header
      _
    $region3: #{tpu_custom_call.1} parent=1 // loop_header
      %s39 = sphi 0, %s43
      %p40 = scmp.ge.s32.totalorder %s39, 4
      %s49 = sphi 0, %s51
      %s52 = sphi 0, %s49
      %s53 = sphi 0, %s52
      %s69 = sphi 0, %s53
      %s75 = sphi 0, %s77
      %s78 = sphi 0, %s75
      %s79 = sphi 0, %s78
      %s95 = sphi 0, %s79
      %s99 = sphi 0, %s99
      %s101 = sphi 0, %s99
      %s102 = sphi 0, %s101
      %s116 = sphi 0, %s102
      %s120 = sphi 0, %s120
      %s122 = sphi 0, %s120
      %s123 = sphi 0, %s122
      %s137 = sphi 0, %s123
      %s141 = sphi 0, %s141
      %s143 = sphi 0, %s141
      %s144 = sphi 0, %s143
      %s158 = sphi 0, %s144
      %s162 = sphi 0, %s162
      %s164 = sphi 0, %s162
      %s165 = sphi 0, %s164
      %s179 = sphi 0, %s165
      %s183 = sphi 0, %s183
      %s185 = sphi 0, %s183
      %s186 = sphi 0, %s185
      %s200 = sphi 0, %s186
      %s204 = sphi 0, %s204
      %s206 = sphi 0, %s204
      %s207 = sphi 0, %s206
      %s221 = sphi 0, %s207
      %s225 = sphi 0, %s225
      %s227 = sphi 0, %s225
      %s228 = sphi 0, %s227
      %s242 = sphi 0, %s228
      %s246 = sphi 0, %s246
      %s248 = sphi 0, %s246
      %s249 = sphi 0, %s248
      %s263 = sphi 0, %s249
      %s267 = sphi 0, %s267
      %s269 = sphi 0, %s267
      %s270 = sphi 0, %s269
      %s284 = sphi 0, %s270
      %s288 = sphi 0, %s288
      %s290 = sphi 0, %s288
      %s291 = sphi 0, %s290
      %s305 = sphi 0, %s291
      %s309 = sphi 0, %s309
      %s311 = sphi 0, %s309
      %s312 = sphi 0, %s311
      %s326 = sphi 0, %s312
      %s330 = sphi 0, %s330
      %s332 = sphi 0, %s330
      %s333 = sphi 0, %s332
      %s347 = sphi 0, %s333
      %s351 = sphi 0, %s351
      %s353 = sphi 0, %s351
      %s354 = sphi 0, %s353
      %s368 = sphi 0, %s354
      %s372 = sphi 0, %s372
      %s374 = sphi 0, %s372
      %s375 = sphi 0, %s374
      %s389 = sphi 0, %s375
      %s393 = sphi 0, %s393
      %s395 = sphi 0, %s393
      %s396 = sphi 0, %s395
      %s410 = sphi 0, %s396
      %s414 = sphi 0, %s414
      %s416 = sphi 0, %s414
      %s417 = sphi 0, %s416
      %s431 = sphi 0, %s417
      %s435 = sphi 0, %s435
      %s437 = sphi 0, %s435
      %s438 = sphi 0, %s437
      %s452 = sphi 0, %s438
      %s456 = sphi 0, %s456
      %s458 = sphi 0, %s456
      %s459 = sphi 0, %s458
      %s473 = sphi 0, %s459
      %s479 = sphi 0, %s481
      %s482 = sphi 0, %s479
      %s483 = sphi 0, %s482
      %s499 = sphi 0, %s483
    $region4: #{tpu_custom_call.1} parent=1 // loop_header_branch
      %42 = sbr.rel (%p40) target = $region8
    $region5: #{tpu_custom_call.1} parent=1 // loop_body
      %s44 = ssub.s32 %s39, 1
      %s45 = ssub.s32 %s39, 2
      %s46 = sadd.s32 %s39, 1
      %s47 = ssub.s32 %s39, %s46
      %p48 = scmp.eq.s32.totalorder %s47, 0
      %s50 = sadd.s32 %s49, 1
      %s51 = scalar_select %p48, %s49, %s50
      %p54 = pneg %p48
      %p55 = scmp.eq.s32.totalorder %s39, 1
      %p56 = por %p54, %p55
      %p57 = scmp.ne.s32.totalorder %s49, %s52
      %p58 = scmp.eq.s32.totalorder %s39, 0
      %p59 = por %p57, %p58
      %p60 = scmp.ne.s32.totalorder %s49, %s52
      %p61 = scmp.eq.s32.totalorder %s44, 1
      %p62 = por %p60, %p61
      %p63 = scmp.ne.s32.totalorder %s52, %s53
      %p64 = scmp.eq.s32.totalorder %s44, 0
      %p65 = por %p63, %p64
      %p66 = scmp.ne.s32.totalorder %s52, %s53
      %p67 = scmp.eq.s32.totalorder %s45, 1
      %p68 = por %p66, %p67
      %p70 = scmp.ne.s32.totalorder %s53, %s69
      %p71 = scmp.eq.s32.totalorder %s45, 0
      %p72 = por %p70, %p71
      %s73 = ssub.s32 %s39, %s46
      %p74 = scmp.eq.s32.totalorder %s73, 0
      %s76 = sadd.s32 %s75, 1
      %s77 = scalar_select %p74, %s75, %s76
      %p80 = pneg %p74
      %p81 = scmp.eq.s32.totalorder %s39, 1
      %p82 = por %p80, %p81
      %p83 = scmp.ne.s32.totalorder %s75, %s78
      %p84 = scmp.eq.s32.totalorder %s39, 0
      %p85 = por %p83, %p84
      %p86 = scmp.ne.s32.totalorder %s75, %s78
      %p87 = scmp.eq.s32.totalorder %s44, 1
      %p88 = por %p86, %p87
      %p89 = scmp.ne.s32.totalorder %s78, %s79
      %p90 = scmp.eq.s32.totalorder %s44, 0
      %p91 = por %p89, %p90
      %p92 = scmp.ne.s32.totalorder %s78, %s79
      %p93 = scmp.eq.s32.totalorder %s45, 1
      %p94 = por %p92, %p93
      %p96 = scmp.ne.s32.totalorder %s79, %s95
      %p97 = scmp.eq.s32.totalorder %s45, 0
      %p98 = por %p96, %p97
      %s100 = sadd.s32 %s99, 1
      %p103 = scmp.eq.s32.totalorder %s39, 1
      %p104 = scmp.ne.s32.totalorder %s99, %s101
      %p105 = scmp.eq.s32.totalorder %s39, 0
      %p106 = por %p104, %p105
      %p107 = scmp.ne.s32.totalorder %s99, %s101
      %p108 = scmp.eq.s32.totalorder %s44, 1
      %p109 = por %p107, %p108
      %p110 = scmp.ne.s32.totalorder %s101, %s102
      %p111 = scmp.eq.s32.totalorder %s44, 0
      %p112 = por %p110, %p111
      %p113 = scmp.ne.s32.totalorder %s101, %s102
      %p114 = scmp.eq.s32.totalorder %s45, 1
      %p115 = por %p113, %p114
      %p117 = scmp.ne.s32.totalorder %s102, %s116
      %p118 = scmp.eq.s32.totalorder %s45, 0
      %p119 = por %p117, %p118
      %s121 = sadd.s32 %s120, 1
      %p124 = scmp.eq.s32.totalorder %s39, 1
      %p125 = scmp.ne.s32.totalorder %s120, %s122
      %p126 = scmp.eq.s32.totalorder %s39, 0
      %p127 = por %p125, %p126
      %p128 = scmp.ne.s32.totalorder %s120, %s122
      %p129 = scmp.eq.s32.totalorder %s44, 1
      %p130 = por %p128, %p129
      %p131 = scmp.ne.s32.totalorder %s122, %s123
      %p132 = scmp.eq.s32.totalorder %s44, 0
      %p133 = por %p131, %p132
      %p134 = scmp.ne.s32.totalorder %s122, %s123
      %p135 = scmp.eq.s32.totalorder %s45, 1
      %p136 = por %p134, %p135
      %p138 = scmp.ne.s32.totalorder %s123, %s137
      %p139 = scmp.eq.s32.totalorder %s45, 0
      %p140 = por %p138, %p139
      %s142 = sadd.s32 %s141, 1
      %p145 = scmp.eq.s32.totalorder %s39, 1
      %p146 = scmp.ne.s32.totalorder %s141, %s143
      %p147 = scmp.eq.s32.totalorder %s39, 0
      %p148 = por %p146, %p147
      %p149 = scmp.ne.s32.totalorder %s141, %s143
      %p150 = scmp.eq.s32.totalorder %s44, 1
      %p151 = por %p149, %p150
      %p152 = scmp.ne.s32.totalorder %s143, %s144
      %p153 = scmp.eq.s32.totalorder %s44, 0
      %p154 = por %p152, %p153
      %p155 = scmp.ne.s32.totalorder %s143, %s144
      %p156 = scmp.eq.s32.totalorder %s45, 1
      %p157 = por %p155, %p156
      %p159 = scmp.ne.s32.totalorder %s144, %s158
      %p160 = scmp.eq.s32.totalorder %s45, 0
      %p161 = por %p159, %p160
      %s163 = sadd.s32 %s162, 1
      %p166 = scmp.eq.s32.totalorder %s39, 1
      %p167 = scmp.ne.s32.totalorder %s162, %s164
      %p168 = scmp.eq.s32.totalorder %s39, 0
      %p169 = por %p167, %p168
      %p170 = scmp.ne.s32.totalorder %s162, %s164
      %p171 = scmp.eq.s32.totalorder %s44, 1
      %p172 = por %p170, %p171
      %p173 = scmp.ne.s32.totalorder %s164, %s165
      %p174 = scmp.eq.s32.totalorder %s44, 0
      %p175 = por %p173, %p174
      %p176 = scmp.ne.s32.totalorder %s164, %s165
      %p177 = scmp.eq.s32.totalorder %s45, 1
      %p178 = por %p176, %p177
      %p180 = scmp.ne.s32.totalorder %s165, %s179
      %p181 = scmp.eq.s32.totalorder %s45, 0
      %p182 = por %p180, %p181
      %s184 = sadd.s32 %s183, 1
      %p187 = scmp.eq.s32.totalorder %s39, 1
      %p188 = scmp.ne.s32.totalorder %s183, %s185
      %p189 = scmp.eq.s32.totalorder %s39, 0
      %p190 = por %p188, %p189
      %p191 = scmp.ne.s32.totalorder %s183, %s185
      %p192 = scmp.eq.s32.totalorder %s44, 1
      %p193 = por %p191, %p192
      %p194 = scmp.ne.s32.totalorder %s185, %s186
      %p195 = scmp.eq.s32.totalorder %s44, 0
      %p196 = por %p194, %p195
      %p197 = scmp.ne.s32.totalorder %s185, %s186
      %p198 = scmp.eq.s32.totalorder %s45, 1
      %p199 = por %p197, %p198
      %p201 = scmp.ne.s32.totalorder %s186, %s200
      %p202 = scmp.eq.s32.totalorder %s45, 0
      %p203 = por %p201, %p202
      %s205 = sadd.s32 %s204, 1
      %p208 = scmp.eq.s32.totalorder %s39, 1
      %p209 = scmp.ne.s32.totalorder %s204, %s206
      %p210 = scmp.eq.s32.totalorder %s39, 0
      %p211 = por %p209, %p210
      %p212 = scmp.ne.s32.totalorder %s204, %s206
      %p213 = scmp.eq.s32.totalorder %s44, 1
      %p214 = por %p212, %p213
      %p215 = scmp.ne.s32.totalorder %s206, %s207
      %p216 = scmp.eq.s32.totalorder %s44, 0
      %p217 = por %p215, %p216
      %p218 = scmp.ne.s32.totalorder %s206, %s207
      %p219 = scmp.eq.s32.totalorder %s45, 1
      %p220 = por %p218, %p219
      %p222 = scmp.ne.s32.totalorder %s207, %s221
      %p223 = scmp.eq.s32.totalorder %s45, 0
      %p224 = por %p222, %p223
      %s226 = sadd.s32 %s225, 1
      %p229 = scmp.eq.s32.totalorder %s39, 1
      %p230 = scmp.ne.s32.totalorder %s225, %s227
      %p231 = scmp.eq.s32.totalorder %s39, 0
      %p232 = por %p230, %p231
      %p233 = scmp.ne.s32.totalorder %s225, %s227
      %p234 = scmp.eq.s32.totalorder %s44, 1
      %p235 = por %p233, %p234
      %p236 = scmp.ne.s32.totalorder %s227, %s228
      %p237 = scmp.eq.s32.totalorder %s44, 0
      %p238 = por %p236, %p237
      %p239 = scmp.ne.s32.totalorder %s227, %s228
      %p240 = scmp.eq.s32.totalorder %s45, 1
      %p241 = por %p239, %p240
      %p243 = scmp.ne.s32.totalorder %s228, %s242
      %p244 = scmp.eq.s32.totalorder %s45, 0
      %p245 = por %p243, %p244
      %s247 = sadd.s32 %s246, 1
      %p250 = scmp.eq.s32.totalorder %s39, 1
      %p251 = scmp.ne.s32.totalorder %s246, %s248
      %p252 = scmp.eq.s32.totalorder %s39, 0
      %p253 = por %p251, %p252
      %p254 = scmp.ne.s32.totalorder %s246, %s248
      %p255 = scmp.eq.s32.totalorder %s44, 1
      %p256 = por %p254, %p255
      %p257 = scmp.ne.s32.totalorder %s248, %s249
      %p258 = scmp.eq.s32.totalorder %s44, 0
      %p259 = por %p257, %p258
      %p260 = scmp.ne.s32.totalorder %s248, %s249
      %p261 = scmp.eq.s32.totalorder %s45, 1
      %p262 = por %p260, %p261
      %p264 = scmp.ne.s32.totalorder %s249, %s263
      %p265 = scmp.eq.s32.totalorder %s45, 0
      %p266 = por %p264, %p265
      %s268 = sadd.s32 %s267, 1
      %p271 = scmp.eq.s32.totalorder %s39, 1
      %p272 = scmp.ne.s32.totalorder %s267, %s269
      %p273 = scmp.eq.s32.totalorder %s39, 0
      %p274 = por %p272, %p273
      %p275 = scmp.ne.s32.totalorder %s267, %s269
      %p276 = scmp.eq.s32.totalorder %s44, 1
      %p277 = por %p275, %p276
      %p278 = scmp.ne.s32.totalorder %s269, %s270
      %p279 = scmp.eq.s32.totalorder %s44, 0
      %p280 = por %p278, %p279
      %p281 = scmp.ne.s32.totalorder %s269, %s270
      %p282 = scmp.eq.s32.totalorder %s45, 1
      %p283 = por %p281, %p282
      %p285 = scmp.ne.s32.totalorder %s270, %s284
      %p286 = scmp.eq.s32.totalorder %s45, 0
      %p287 = por %p285, %p286
      %s289 = sadd.s32 %s288, 1
      %p292 = scmp.eq.s32.totalorder %s39, 1
      %p293 = scmp.ne.s32.totalorder %s288, %s290
      %p294 = scmp.eq.s32.totalorder %s39, 0
      %p295 = por %p293, %p294
      %p296 = scmp.ne.s32.totalorder %s288, %s290
      %p297 = scmp.eq.s32.totalorder %s44, 1
      %p298 = por %p296, %p297
      %p299 = scmp.ne.s32.totalorder %s290, %s291
      %p300 = scmp.eq.s32.totalorder %s44, 0
      %p301 = por %p299, %p300
      %p302 = scmp.ne.s32.totalorder %s290, %s291
      %p303 = scmp.eq.s32.totalorder %s45, 1
      %p304 = por %p302, %p303
      %p306 = scmp.ne.s32.totalorder %s291, %s305
      %p307 = scmp.eq.s32.totalorder %s45, 0
      %p308 = por %p306, %p307
      %s310 = sadd.s32 %s309, 1
      %p313 = scmp.eq.s32.totalorder %s39, 1
      %p314 = scmp.ne.s32.totalorder %s309, %s311
      %p315 = scmp.eq.s32.totalorder %s39, 0
      %p316 = por %p314, %p315
      %p317 = scmp.ne.s32.totalorder %s309, %s311
      %p318 = scmp.eq.s32.totalorder %s44, 1
      %p319 = por %p317, %p318
      %p320 = scmp.ne.s32.totalorder %s311, %s312
      %p321 = scmp.eq.s32.totalorder %s44, 0
      %p322 = por %p320, %p321
      %p323 = scmp.ne.s32.totalorder %s311, %s312
      %p324 = scmp.eq.s32.totalorder %s45, 1
      %p325 = por %p323, %p324
      %p327 = scmp.ne.s32.totalorder %s312, %s326
      %p328 = scmp.eq.s32.totalorder %s45, 0
      %p329 = por %p327, %p328
      %s331 = sadd.s32 %s330, 1
      %p334 = scmp.eq.s32.totalorder %s39, 1
      %p335 = scmp.ne.s32.totalorder %s330, %s332
      %p336 = scmp.eq.s32.totalorder %s39, 0
      %p337 = por %p335, %p336
      %p338 = scmp.ne.s32.totalorder %s330, %s332
      %p339 = scmp.eq.s32.totalorder %s44, 1
      %p340 = por %p338, %p339
      %p341 = scmp.ne.s32.totalorder %s332, %s333
      %p342 = scmp.eq.s32.totalorder %s44, 0
      %p343 = por %p341, %p342
      %p344 = scmp.ne.s32.totalorder %s332, %s333
      %p345 = scmp.eq.s32.totalorder %s45, 1
      %p346 = por %p344, %p345
      %p348 = scmp.ne.s32.totalorder %s333, %s347
      %p349 = scmp.eq.s32.totalorder %s45, 0
      %p350 = por %p348, %p349
      %s352 = sadd.s32 %s351, 1
      %p355 = scmp.eq.s32.totalorder %s39, 1
      %p356 = scmp.ne.s32.totalorder %s351, %s353
      %p357 = scmp.eq.s32.totalorder %s39, 0
      %p358 = por %p356, %p357
      %p359 = scmp.ne.s32.totalorder %s351, %s353
      %p360 = scmp.eq.s32.totalorder %s44, 1
      %p361 = por %p359, %p360
      %p362 = scmp.ne.s32.totalorder %s353, %s354
      %p363 = scmp.eq.s32.totalorder %s44, 0
      %p364 = por %p362, %p363
      %p365 = scmp.ne.s32.totalorder %s353, %s354
      %p366 = scmp.eq.s32.totalorder %s45, 1
      %p367 = por %p365, %p366
      %p369 = scmp.ne.s32.totalorder %s354, %s368
      %p370 = scmp.eq.s32.totalorder %s45, 0
      %p371 = por %p369, %p370
      %s373 = sadd.s32 %s372, 1
      %p376 = scmp.eq.s32.totalorder %s39, 1
      %p377 = scmp.ne.s32.totalorder %s372, %s374
      %p378 = scmp.eq.s32.totalorder %s39, 0
      %p379 = por %p377, %p378
      %p380 = scmp.ne.s32.totalorder %s372, %s374
      %p381 = scmp.eq.s32.totalorder %s44, 1
      %p382 = por %p380, %p381
      %p383 = scmp.ne.s32.totalorder %s374, %s375
      %p384 = scmp.eq.s32.totalorder %s44, 0
      %p385 = por %p383, %p384
      %p386 = scmp.ne.s32.totalorder %s374, %s375
      %p387 = scmp.eq.s32.totalorder %s45, 1
      %p388 = por %p386, %p387
      %p390 = scmp.ne.s32.totalorder %s375, %s389
      %p391 = scmp.eq.s32.totalorder %s45, 0
      %p392 = por %p390, %p391
      %s394 = sadd.s32 %s393, 1
      %p397 = scmp.eq.s32.totalorder %s39, 1
      %p398 = scmp.ne.s32.totalorder %s393, %s395
      %p399 = scmp.eq.s32.totalorder %s39, 0
      %p400 = por %p398, %p399
      %p401 = scmp.ne.s32.totalorder %s393, %s395
      %p402 = scmp.eq.s32.totalorder %s44, 1
      %p403 = por %p401, %p402
      %p404 = scmp.ne.s32.totalorder %s395, %s396
      %p405 = scmp.eq.s32.totalorder %s44, 0
      %p406 = por %p404, %p405
      %p407 = scmp.ne.s32.totalorder %s395, %s396
      %p408 = scmp.eq.s32.totalorder %s45, 1
      %p409 = por %p407, %p408
      %p411 = scmp.ne.s32.totalorder %s396, %s410
      %p412 = scmp.eq.s32.totalorder %s45, 0
      %p413 = por %p411, %p412
      %s415 = sadd.s32 %s414, 1
      %p418 = scmp.eq.s32.totalorder %s39, 1
      %p419 = scmp.ne.s32.totalorder %s414, %s416
      %p420 = scmp.eq.s32.totalorder %s39, 0
      %p421 = por %p419, %p420
      %p422 = scmp.ne.s32.totalorder %s414, %s416
      %p423 = scmp.eq.s32.totalorder %s44, 1
      %p424 = por %p422, %p423
      %p425 = scmp.ne.s32.totalorder %s416, %s417
      %p426 = scmp.eq.s32.totalorder %s44, 0
      %p427 = por %p425, %p426
      %p428 = scmp.ne.s32.totalorder %s416, %s417
      %p429 = scmp.eq.s32.totalorder %s45, 1
      %p430 = por %p428, %p429
      %p432 = scmp.ne.s32.totalorder %s417, %s431
      %p433 = scmp.eq.s32.totalorder %s45, 0
      %p434 = por %p432, %p433
      %s436 = sadd.s32 %s435, 1
      %p439 = scmp.eq.s32.totalorder %s39, 1
      %p440 = scmp.ne.s32.totalorder %s435, %s437
      %p441 = scmp.eq.s32.totalorder %s39, 0
      %p442 = por %p440, %p441
      %p443 = scmp.ne.s32.totalorder %s435, %s437
      %p444 = scmp.eq.s32.totalorder %s44, 1
      %p445 = por %p443, %p444
      %p446 = scmp.ne.s32.totalorder %s437, %s438
      %p447 = scmp.eq.s32.totalorder %s44, 0
      %p448 = por %p446, %p447
      %p449 = scmp.ne.s32.totalorder %s437, %s438
      %p450 = scmp.eq.s32.totalorder %s45, 1
      %p451 = por %p449, %p450
      %p453 = scmp.ne.s32.totalorder %s438, %s452
      %p454 = scmp.eq.s32.totalorder %s45, 0
      %p455 = por %p453, %p454
      %s457 = sadd.s32 %s456, 1
      %p460 = scmp.eq.s32.totalorder %s39, 1
      %p461 = scmp.ne.s32.totalorder %s456, %s458
      %p462 = scmp.eq.s32.totalorder %s39, 0
      %p463 = por %p461, %p462
      %p464 = scmp.ne.s32.totalorder %s456, %s458
      %p465 = scmp.eq.s32.totalorder %s44, 1
      %p466 = por %p464, %p465
      %p467 = scmp.ne.s32.totalorder %s458, %s459
      %p468 = scmp.eq.s32.totalorder %s44, 0
      %p469 = por %p467, %p468
      %p470 = scmp.ne.s32.totalorder %s458, %s459
      %p471 = scmp.eq.s32.totalorder %s45, 1
      %p472 = por %p470, %p471
      %p474 = scmp.ne.s32.totalorder %s459, %s473
      %p475 = scmp.eq.s32.totalorder %s45, 0
      %p476 = por %p474, %p475
      %s477 = ssub.s32 %s39, %s46
      %p478 = scmp.eq.s32.totalorder %s477, 0
      %s480 = sadd.s32 %s479, 1
      %s481 = scalar_select %p478, %s479, %s480
      %p484 = pneg %p478
      %p485 = scmp.eq.s32.totalorder %s39, 1
      %p486 = por %p484, %p485
      %p487 = scmp.ne.s32.totalorder %s479, %s482
      %p488 = scmp.eq.s32.totalorder %s39, 0
      %p489 = por %p487, %p488
      %p490 = scmp.ne.s32.totalorder %s479, %s482
      %p491 = scmp.eq.s32.totalorder %s44, 1
      %p492 = por %p490, %p491
      %p493 = scmp.ne.s32.totalorder %s482, %s483
      %p494 = scmp.eq.s32.totalorder %s44, 0
      %p495 = por %p493, %p494
      %p496 = scmp.ne.s32.totalorder %s482, %s483
      %p497 = scmp.eq.s32.totalorder %s45, 1
      %p498 = por %p496, %p497
      %p500 = scmp.ne.s32.totalorder %s483, %s499
      %p501 = scmp.eq.s32.totalorder %s45, 0
      %p502 = por %p500, %p501
      %p503 = scmp.le.s32.totalorder 1, %s39
      %p504 = scmp.lt.s32.totalorder %s39, 3
      %p505 = pnand %p503, %p504
      %p506 = pneg %p505
      // Predicated region
      $region9: #{tpu_custom_call.1} parent=5 // pred_check
        _
      $region10: #{tpu_custom_call.1} parent=5 // pred_check_branch
        %508 = sbr.rel (%p505) target = $region12
      $region11: #{tpu_custom_call.1} parent=5 // pred_region
        %s509 = ssub.s32 %s39, 1
        // Predicated region
        $region13: #{tpu_custom_call.1} parent=11 // pred_check
          %p510 = pneg %p112
        $region14: #{tpu_custom_call.1} parent=11 // pred_check_branch
          %512 = sbr.rel (%p510) target = $region16
        $region15: #{tpu_custom_call.1} parent=11 // pred_region
          %514 = vsyncadd [#allocation6], 0
          %s515 = sshll.u32 %s2, 4
          %s516 = int_to_ptr.hbm [resolvable:$true] %s515
          %s517 = sshll.u32 [#allocation7], 4
          %s518 = int_to_ptr.vmem [resolvable:$true] %s517
          %523 = dma.hbm_to_vmem [thread:$0]  %s516, 3072, %s518, [#allocation6], 192, 192, 12
        $region16: #{tpu_custom_call.1} parent=11 // pred_fallthru
          _
        // Predicated region
        $region17: #{tpu_custom_call.1} parent=11 // pred_check
          %p524 = pneg %p133
        $region18: #{tpu_custom_call.1} parent=11 // pred_check_branch
          %526 = sbr.rel (%p524) target = $region20
        $region19: #{tpu_custom_call.1} parent=11 // pred_region
          %528 = vsyncadd [#allocation9], 0
          %s530 = sshll.u32 %s3, 4
          %s531 = int_to_ptr.hbm [resolvable:$true] %s530
          %s532 = sshll.u32 [#allocation8], 4
          %s533 = int_to_ptr.vmem [resolvable:$true] %s532
          %535 = dma.hbm_to_vmem [thread:$0]  %s531, 48, %s533, [#allocation9]
        $region20: #{tpu_custom_call.1} parent=11 // pred_fallthru
          _
        // Predicated region
        $region21: #{tpu_custom_call.1} parent=11 // pred_check
          %p536 = pneg %p154
        $region22: #{tpu_custom_call.1} parent=11 // pred_check_branch
          %538 = sbr.rel (%p536) target = $region24
        $region23: #{tpu_custom_call.1} parent=11 // pred_region
          %540 = vsyncadd [#allocation9], 0
          %s541 = sshll.u32 %s4, 4
          %s542 = int_to_ptr.hbm [resolvable:$true] %s541
          %s543 = sshll.u32 [#allocation10], 4
          %s544 = int_to_ptr.vmem [resolvable:$true] %s543
          %549 = dma.hbm_to_vmem [thread:$0]  %s542, 1024, %s544, [#allocation9], 64, 64, 4
        $region24: #{tpu_custom_call.1} parent=11 // pred_fallthru
          _
        // Predicated region
        $region25: #{tpu_custom_call.1} parent=11 // pred_check
          %p550 = pneg %p175
        $region26: #{tpu_custom_call.1} parent=11 // pred_check_branch
          %552 = sbr.rel (%p550) target = $region28
        $region27: #{tpu_custom_call.1} parent=11 // pred_region
          %554 = vsyncadd [#allocation12], 0
          %s556 = sshll.u32 %s5, 4
          %s557 = int_to_ptr.hbm [resolvable:$true] %s556
          %s558 = sshll.u32 [#allocation11], 4
          %s559 = int_to_ptr.vmem [resolvable:$true] %s558
          %561 = dma.hbm_to_vmem [thread:$0]  %s557, 16, %s559, [#allocation12]
        $region28: #{tpu_custom_call.1} parent=11 // pred_fallthru
          _
        // Predicated region
        $region29: #{tpu_custom_call.1} parent=11 // pred_check
          %p562 = pneg %p196
        $region30: #{tpu_custom_call.1} parent=11 // pred_check_branch
          %564 = sbr.rel (%p562) target = $region32
        $region31: #{tpu_custom_call.1} parent=11 // pred_region
          %566 = vsyncadd [#allocation12], 0
          %s567 = sshll.u32 %s6, 4
          %s568 = int_to_ptr.hbm [resolvable:$true] %s567
          %s569 = sshll.u32 [#allocation13], 4
          %s570 = int_to_ptr.vmem [resolvable:$true] %s569
          %575 = dma.hbm_to_vmem [thread:$0]  %s568, 3072, %s570, [#allocation12], 192, 192, 12
        $region32: #{tpu_custom_call.1} parent=11 // pred_fallthru
          _
        // Predicated region
        $region33: #{tpu_custom_call.1} parent=11 // pred_check
          %p576 = pneg %p217
        $region34: #{tpu_custom_call.1} parent=11 // pred_check_branch
          %578 = sbr.rel (%p576) target = $region36
        $region35: #{tpu_custom_call.1} parent=11 // pred_region
          _
        $region36: #{tpu_custom_call.1} parent=11 // pred_fallthru
          _
        // Predicated region
        $region37: #{tpu_custom_call.1} parent=11 // pred_check
          %p579 = pneg %p238
        $region38: #{tpu_custom_call.1} parent=11 // pred_check_branch
          %581 = sbr.rel (%p579) target = $region40
        $region39: #{tpu_custom_call.1} parent=11 // pred_region
          %583 = vsyncadd [#allocation15], 0
          %s584 = sshll.u32 %s8, 4
          %s585 = int_to_ptr.hbm [resolvable:$true] %s584
          %s586 = sshll.u32 [#allocation14], 4
          %s587 = int_to_ptr.vmem [resolvable:$true] %s586
          %592 = dma.hbm_to_vmem [thread:$0]  %s585, 1024, %s587, [#allocation15], 64, 64, 4
        $region40: #{tpu_custom_call.1} parent=11 // pred_fallthru
          _
        // Predicated region
        $region41: #{tpu_custom_call.1} parent=11 // pred_check
          %p593 = pneg %p259
        $region42: #{tpu_custom_call.1} parent=11 // pred_check_branch
          %595 = sbr.rel (%p593) target = $region44
        $region43: #{tpu_custom_call.1} parent=11 // pred_region
          _
        $region44: #{tpu_custom_call.1} parent=11 // pred_fallthru
          _
        // Predicated region
        $region45: #{tpu_custom_call.1} parent=11 // pred_check
          %p596 = pneg %p280
        $region46: #{tpu_custom_call.1} parent=11 // pred_check_branch
          %598 = sbr.rel (%p596) target = $region48
        $region47: #{tpu_custom_call.1} parent=11 // pred_region
          %600 = vsyncadd [#allocation15], 0
          %s601 = sshll.u32 %s10, 4
          %s602 = int_to_ptr.hbm [resolvable:$true] %s601
          %s603 = sshll.u32 [#allocation16], 4
          %s604 = int_to_ptr.vmem [resolvable:$true] %s603
          %609 = dma.hbm_to_vmem [thread:$0]  %s602, 2048, %s604, [#allocation15], 128, 128, 8
        $region48: #{tpu_custom_call.1} parent=11 // pred_fallthru
          _
        // Predicated region
        $region49: #{tpu_custom_call.1} parent=11 // pred_check
          %p610 = pneg %p301
        $region50: #{tpu_custom_call.1} parent=11 // pred_check_branch
          %612 = sbr.rel (%p610) target = $region52
        $region51: #{tpu_custom_call.1} parent=11 // pred_region
          _
        $region52: #{tpu_custom_call.1} parent=11 // pred_fallthru
          _
        // Predicated region
        $region53: #{tpu_custom_call.1} parent=11 // pred_check
          %p613 = pneg %p322
        $region54: #{tpu_custom_call.1} parent=11 // pred_check_branch
          %615 = sbr.rel (%p613) target = $region56
        $region55: #{tpu_custom_call.1} parent=11 // pred_region
          %617 = vsyncadd [#allocation18], 0
          %s618 = sshll.u32 %s12, 4
          %s619 = int_to_ptr.hbm [resolvable:$true] %s618
          %s620 = sshll.u32 [#allocation17], 4
          %s621 = int_to_ptr.vmem [resolvable:$true] %s620
          %626 = dma.hbm_to_vmem [thread:$0]  %s619, 2048, %s621, [#allocation18], 64, 64, 4
        $region56: #{tpu_custom_call.1} parent=11 // pred_fallthru
          _
        // Predicated region
        $region57: #{tpu_custom_call.1} parent=11 // pred_check
          %p627 = pneg %p343
        $region58: #{tpu_custom_call.1} parent=11 // pred_check_branch
          %629 = sbr.rel (%p627) target = $region60
        $region59: #{tpu_custom_call.1} parent=11 // pred_region
          _
        $region60: #{tpu_custom_call.1} parent=11 // pred_fallthru
          _
        // Predicated region
        $region61: #{tpu_custom_call.1} parent=11 // pred_check
          %p630 = pneg %p364
        $region62: #{tpu_custom_call.1} parent=11 // pred_check_branch
          %632 = sbr.rel (%p630) target = $region64
        $region63: #{tpu_custom_call.1} parent=11 // pred_region
          _
        $region64: #{tpu_custom_call.1} parent=11 // pred_fallthru
          _
        // Predicated region
        $region65: #{tpu_custom_call.1} parent=11 // pred_check
          %p633 = pneg %p385
        $region66: #{tpu_custom_call.1} parent=11 // pred_check_branch
          %635 = sbr.rel (%p633) target = $region68
        $region67: #{tpu_custom_call.1} parent=11 // pred_region
          _
        $region68: #{tpu_custom_call.1} parent=11 // pred_fallthru
          _
        // Predicated region
        $region69: #{tpu_custom_call.1} parent=11 // pred_check
          %p636 = pneg %p406
        $region70: #{tpu_custom_call.1} parent=11 // pred_check_branch
          %638 = sbr.rel (%p636) target = $region72
        $region71: #{tpu_custom_call.1} parent=11 // pred_region
          _
        $region72: #{tpu_custom_call.1} parent=11 // pred_fallthru
          _
        // Predicated region
        $region73: #{tpu_custom_call.1} parent=11 // pred_check
          %p639 = pneg %p427
        $region74: #{tpu_custom_call.1} parent=11 // pred_check_branch
          %641 = sbr.rel (%p639) target = $region76
        $region75: #{tpu_custom_call.1} parent=11 // pred_region
          _
        $region76: #{tpu_custom_call.1} parent=11 // pred_fallthru
          _
        // Predicated region
        $region77: #{tpu_custom_call.1} parent=11 // pred_check
          %p642 = pneg %p448
        $region78: #{tpu_custom_call.1} parent=11 // pred_check_branch
          %644 = sbr.rel (%p642) target = $region80
        $region79: #{tpu_custom_call.1} parent=11 // pred_region
          _
        $region80: #{tpu_custom_call.1} parent=11 // pred_fallthru
          _
        // Predicated region
        $region81: #{tpu_custom_call.1} parent=11 // pred_check
          %p645 = pneg %p469
        $region82: #{tpu_custom_call.1} parent=11 // pred_check_branch
          %647 = sbr.rel (%p645) target = $region84
        $region83: #{tpu_custom_call.1} parent=11 // pred_region
          _
        $region84: #{tpu_custom_call.1} parent=11 // pred_fallthru
          _
      $region12: #{tpu_custom_call.1} parent=5 // pred_fallthru
        _
      %p648 = scmp.lt.s32.totalorder %s39, 2
      // Predicated region
      $region85: #{tpu_custom_call.1} parent=5 // pred_check
        %p649 = pneg %p648
      $region86: #{tpu_custom_call.1} parent=5 // pred_check_branch
        %651 = sbr.rel (%p649) target = $region88
      $region87: #{tpu_custom_call.1} parent=5 // pred_region
        // Predicated region
        $region89: #{tpu_custom_call.1} parent=87 // pred_check
          %p652 = pneg %p59
        $region90: #{tpu_custom_call.1} parent=87 // pred_check_branch
          %654 = sbr.rel (%p652) target = $region92
        $region91: #{tpu_custom_call.1} parent=87 // pred_region
          %s655 = sand.u32 %s49, 1
          %s656 = scalar_lea.sflag [#allocation3], %s655
          %s657 = sand.u32 %s49, 1
          %s658 = smul.addr %s657, 32
          %s659 = scalar_lea.vmem [#allocation2], %s658
          %s660 = smul.u32 2, %s39
          %662 = vsyncadd %s656, 0
          %s663 = smul.addr %s660, 2
          %s664 = smul.addr %s663, 8
          %s665 = scalar_lea.hbm %s0, %s664
          %s666 = sshll.u32 %s665, 4
          %s667 = int_to_ptr.hbm [resolvable:$true] %s666
          %s668 = sshll.u32 %s659, 4
          %s669 = int_to_ptr.vmem [resolvable:$true] %s668
          %674 = dma.hbm_to_vmem [thread:$0]  %s667, 512, %s669, %s656, 128, 128, 8
        $region92: #{tpu_custom_call.1} parent=87 // pred_fallthru
          _
        // Predicated region
        $region93: #{tpu_custom_call.1} parent=87 // pred_check
          %p675 = pneg %p85
        $region94: #{tpu_custom_call.1} parent=87 // pred_check_branch
          %677 = sbr.rel (%p675) target = $region96
        $region95: #{tpu_custom_call.1} parent=87 // pred_region
          %s678 = sand.u32 %s39, 1
          %s679 = scalar_lea.sflag [#allocation6], %s678
          %s680 = sand.u32 %s75, 1
          %s681 = smul.addr %s680, 32
          %s682 = scalar_lea.vmem [#allocation5], %s681
          %s683 = smul.u32 2, %s39
          %685 = vsyncadd %s679, 0
          %s686 = smul.addr %s683, 2
          %s687 = smul.addr %s686, 8
          %s688 = scalar_lea.hbm %s1, %s687
          %s689 = sshll.u32 %s688, 4
          %s690 = int_to_ptr.hbm [resolvable:$true] %s689
          %s691 = sshll.u32 %s682, 4
          %s692 = int_to_ptr.vmem [resolvable:$true] %s691
          %697 = dma.hbm_to_vmem [thread:$0]  %s690, 512, %s692, %s679, 128, 128, 8
        $region96: #{tpu_custom_call.1} parent=87 // pred_fallthru
          _
      $region88: #{tpu_custom_call.1} parent=5 // pred_fallthru
        _
      %p698 = scmp.le.s32.totalorder 1, %s39
      %p699 = scmp.lt.s32.totalorder %s39, 3
      %p700 = pnand %p698, %p699
      %p701 = pneg %p700
      // Predicated region
      $region97: #{tpu_custom_call.1} parent=5 // pred_check
        _
      $region98: #{tpu_custom_call.1} parent=5 // pred_check_branch
        %703 = sbr.rel (%p700) target = $region100
      $region99: #{tpu_custom_call.1} parent=5 // pred_region
        %s704 = ssub.s32 %s39, 1
        %s705 = sand.u32 %s52, 1
        %s706 = scalar_lea.sflag [#allocation3], %s705
        %s707 = sand.u32 %s52, 1
        %s708 = smul.addr %s707, 32
        %s709 = scalar_lea.vmem [#allocation2], %s708
        // Predicated region
        $region101: #{tpu_custom_call.1} parent=99 // pred_check
          %p710 = pneg %p65
        $region102: #{tpu_custom_call.1} parent=99 // pred_check_branch
          %712 = sbr.rel (%p710) target = $region104
        $region103: #{tpu_custom_call.1} parent=99 // pred_region
          %714 = dma.done %s706, 512
        $region104: #{tpu_custom_call.1} parent=99 // pred_fallthru
          _
        %s715 = sand.u32 %s44, 1
        %s716 = scalar_lea.sflag [#allocation6], %s715
        %s717 = sand.u32 %s78, 1
        %s718 = smul.addr %s717, 32
        %s719 = scalar_lea.vmem [#allocation5], %s718
        // Predicated region
        $region105: #{tpu_custom_call.1} parent=99 // pred_check
          %p720 = pneg %p91
        $region106: #{tpu_custom_call.1} parent=99 // pred_check_branch
          %722 = sbr.rel (%p720) target = $region108
        $region107: #{tpu_custom_call.1} parent=99 // pred_region
          %724 = dma.done %s716, 512
        $region108: #{tpu_custom_call.1} parent=99 // pred_fallthru
          _
        // Predicated region
        $region109: #{tpu_custom_call.1} parent=99 // pred_check
          %p725 = pneg %p112
        $region110: #{tpu_custom_call.1} parent=99 // pred_check_branch
          %727 = sbr.rel (%p725) target = $region112
        $region111: #{tpu_custom_call.1} parent=99 // pred_region
          %729 = dma.done [#allocation6], 3072
        $region112: #{tpu_custom_call.1} parent=99 // pred_fallthru
          _
        // Predicated region
        $region113: #{tpu_custom_call.1} parent=99 // pred_check
          %p730 = pneg %p133
        $region114: #{tpu_custom_call.1} parent=99 // pred_check_branch
          %732 = sbr.rel (%p730) target = $region116
        $region115: #{tpu_custom_call.1} parent=99 // pred_region
          %734 = dma.done [#allocation9], 48
        $region116: #{tpu_custom_call.1} parent=99 // pred_fallthru
          _
        // Predicated region
        $region117: #{tpu_custom_call.1} parent=99 // pred_check
          %p735 = pneg %p154
        $region118: #{tpu_custom_call.1} parent=99 // pred_check_branch
          %737 = sbr.rel (%p735) target = $region120
        $region119: #{tpu_custom_call.1} parent=99 // pred_region
          %739 = dma.done [#allocation9], 1024
        $region120: #{tpu_custom_call.1} parent=99 // pred_fallthru
          _
        // Predicated region
        $region121: #{tpu_custom_call.1} parent=99 // pred_check
          %p740 = pneg %p175
        $region122: #{tpu_custom_call.1} parent=99 // pred_check_branch
          %742 = sbr.rel (%p740) target = $region124
        $region123: #{tpu_custom_call.1} parent=99 // pred_region
          %744 = dma.done [#allocation12], 16
        $region124: #{tpu_custom_call.1} parent=99 // pred_fallthru
          _
        // Predicated region
        $region125: #{tpu_custom_call.1} parent=99 // pred_check
          %p745 = pneg %p196
        $region126: #{tpu_custom_call.1} parent=99 // pred_check_branch
          %747 = sbr.rel (%p745) target = $region128
        $region127: #{tpu_custom_call.1} parent=99 // pred_region
          %749 = dma.done [#allocation12], 3072
        $region128: #{tpu_custom_call.1} parent=99 // pred_fallthru
          _
        // Predicated region
        $region129: #{tpu_custom_call.1} parent=99 // pred_check
          %p750 = pneg %p238
        $region130: #{tpu_custom_call.1} parent=99 // pred_check_branch
          %752 = sbr.rel (%p750) target = $region132
        $region131: #{tpu_custom_call.1} parent=99 // pred_region
          %754 = dma.done [#allocation15], 1024
        $region132: #{tpu_custom_call.1} parent=99 // pred_fallthru
          _
        // Predicated region
        $region133: #{tpu_custom_call.1} parent=99 // pred_check
          %p755 = pneg %p280
        $region134: #{tpu_custom_call.1} parent=99 // pred_check_branch
          %757 = sbr.rel (%p755) target = $region136
        $region135: #{tpu_custom_call.1} parent=99 // pred_region
          %759 = dma.done [#allocation15], 2048
        $region136: #{tpu_custom_call.1} parent=99 // pred_fallthru
          _
        // Predicated region
        $region137: #{tpu_custom_call.1} parent=99 // pred_check
          %p760 = pneg %p322
        $region138: #{tpu_custom_call.1} parent=99 // pred_check_branch
          %762 = sbr.rel (%p760) target = $region140
        $region139: #{tpu_custom_call.1} parent=99 // pred_region
          %764 = dma.done [#allocation18], 2048
        $region140: #{tpu_custom_call.1} parent=99 // pred_fallthru
          _
        %s765 = sand.u32 %s52, 1
        %s766 = scalar_lea.sflag [#allocation3], %s765
        %s767 = sand.u32 %s52, 1
        %s768 = smul.addr %s767, 32
        %s769 = scalar_lea.vmem [#allocation2], %s768
        %p770 = pneg %p65
        %p771 = pneg %p62
        %s772 = sand.u32 %s44, 1
        %s773 = scalar_lea.sflag [#allocation6], %s772
        %s774 = sand.u32 %s78, 1
        %s775 = smul.addr %s774, 32
        %s776 = scalar_lea.vmem [#allocation5], %s775
        %p777 = pneg %p91
        %p778 = pneg %p88
        %p779 = pneg %p112
        %p780 = pneg %p109
        %p781 = pneg %p133
        %p782 = pneg %p130
        %p783 = pneg %p154
        %p784 = pneg %p151
        %p785 = pneg %p175
        %p786 = pneg %p172
        %p787 = pneg %p196
        %p788 = pneg %p193
        %p789 = pneg %p217
        %p790 = pneg %p214
        %p791 = pneg %p238
        %p792 = pneg %p235
        %p793 = pneg %p259
        %p794 = pneg %p256
        %p795 = pneg %p280
        %p796 = pneg %p277
        %p797 = pneg %p301
        %p798 = pneg %p298
        %p799 = pneg %p322
        %p800 = pneg %p319
        %p801 = pneg %p343
        %p802 = pneg %p340
        %p803 = pneg %p364
        %p804 = pneg %p361
        %p805 = pneg %p385
        %p806 = pneg %p382
        %p807 = pneg %p406
        %p808 = pneg %p403
        %p809 = pneg %p427
        %p810 = pneg %p424
        %p811 = pneg %p448
        %p812 = pneg %p445
        %p813 = pneg %p469
        %p814 = pneg %p466
        %p815 = pneg %p495
        %p816 = pneg %p492
        %s817 = sand.u32 %s482, 1
        %s818 = scalar_lea.sflag [#allocation4], %s817
        %s819 = sand.u32 %s482, 1
        %s820 = smul.addr %s819, 32
        %s821 = scalar_lea.vmem [#allocation19], %s820
        %s822 = smul.u32 2, %s44
        %s823 = smul.u32 2, %s44
        %s824 = smul.u32 2, %s44
        %v826 = vld [vmem:[%s709] sm:$0xff]
        %v827 = vld [vmem:[%s709 + $0x8] sm:$0xff]
        %v828 = vld [vmem:[%s709 + $0x10] sm:$0xff]
        %v829 = vld [vmem:[%s709 + $0x18] sm:$0xff]
        %v830 = vld [vmem:[%s719] sm:$0xff]
        %v831 = vld [vmem:[%s719 + $0x8] sm:$0xff]
        %v832 = vld [vmem:[%s719 + $0x10] sm:$0xff]
        %v833 = vld [vmem:[%s719 + $0x18] sm:$0xff]
        %v834 = vpack.c.bf16 %v827, %v826
        %v835 = vpack.c.bf16 %v829, %v828
        %v836 = vld [vmem:[#allocation7] sm:$0xff]
        %v837 = vld [vmem:[#allocation7 + $0x8] sm:$0xf]
        %v838 = vld [vmem:[#allocation7 + $0xc] sm:$0xff]
        %v839 = vld [vmem:[#allocation7 + $0x14] sm:$0xf]
        %v840 = vld [vmem:[#allocation7 + $0x18] sm:$0xff]
        %v841 = vld [vmem:[#allocation7 + $0x20] sm:$0xf]
        %v842 = vld [vmem:[#allocation7 + $0x24] sm:$0xff]
        %v843 = vld [vmem:[#allocation7 + $0x2c] sm:$0xf]
        %v844 = vld [vmem:[#allocation7 + $0x30] sm:$0xff]
        %v845 = vld [vmem:[#allocation7 + $0x38] sm:$0xf]
        %v846 = vld [vmem:[#allocation7 + $0x3c] sm:$0xff]
        %v847 = vld [vmem:[#allocation7 + $0x44] sm:$0xf]
        %v848 = vld [vmem:[#allocation7 + $0x48] sm:$0xff]
        %v849 = vld [vmem:[#allocation7 + $0x50] sm:$0xf]
        %v850 = vld [vmem:[#allocation7 + $0x54] sm:$0xff]
        %v851 = vld [vmem:[#allocation7 + $0x5c] sm:$0xf]
        %v852 = vld [vmem:[#allocation7 + $0x60] sm:$0xff]
        %v853 = vld [vmem:[#allocation7 + $0x68] sm:$0xf]
        %v854 = vld [vmem:[#allocation7 + $0x6c] sm:$0xff]
        %v855 = vld [vmem:[#allocation7 + $0x74] sm:$0xf]
        %v856 = vld [vmem:[#allocation7 + $0x78] sm:$0xff]
        %v857 = vld [vmem:[#allocation7 + $0x80] sm:$0xf]
        %v858 = vld [vmem:[#allocation7 + $0x84] sm:$0xff]
        %v859 = vld [vmem:[#allocation7 + $0x8c] sm:$0xf]
        %v860 = vld [vmem:[#allocation7 + $0x90] sm:$0xff]
        %v861 = vld [vmem:[#allocation7 + $0x98] sm:$0xf]
        %v862 = vld [vmem:[#allocation7 + $0x9c] sm:$0xff]
        %v863 = vld [vmem:[#allocation7 + $0xa4] sm:$0xf]
        %v864 = vld [vmem:[#allocation7 + $0xa8] sm:$0xff]
        %v865 = vld [vmem:[#allocation7 + $0xb0] sm:$0xf]
        %v866 = vld [vmem:[#allocation7 + $0xb4] sm:$0xff]
        %v867 = vld [vmem:[#allocation7 + $0xbc] sm:$0xf]
        %v868 = vld [vmem:[#allocation8] sm:$0x7]
        %v870 = vperm.slane %v868, 0
        %v871 = vperm.slane %v868, 1
        %v872 = vperm.slane %v868, 2
        %v908 = vunpack.c.l.b16 %v836
        %v909 = vunpack.c.h.b16 %v836
        %v910 = vunpack.c.l.b16 %v837
        %v911 = vunpack.c.l.b16 %v838
        %v912 = vunpack.c.h.b16 %v838
        %v913 = vunpack.c.l.b16 %v839
        %v914 = vunpack.c.l.b16 %v840
        %v915 = vunpack.c.h.b16 %v840
        %v916 = vunpack.c.l.b16 %v841
        %v917 = vunpack.c.l.b16 %v842
        %v918 = vunpack.c.h.b16 %v842
        %v919 = vunpack.c.l.b16 %v843
        %v920 = vunpack.c.l.b16 %v844
        %v921 = vunpack.c.h.b16 %v844
        %v922 = vunpack.c.l.b16 %v845
        %v923 = vunpack.c.l.b16 %v846
        %v924 = vunpack.c.h.b16 %v846
        %v925 = vunpack.c.l.b16 %v847
        %v926 = vunpack.c.l.b16 %v848
        %v927 = vunpack.c.h.b16 %v848
        %v928 = vunpack.c.l.b16 %v849
        %v929 = vunpack.c.l.b16 %v850
        %v930 = vunpack.c.h.b16 %v850
        %v931 = vunpack.c.l.b16 %v851
        %v932 = vunpack.c.l.b16 %v852
        %v933 = vunpack.c.h.b16 %v852
        %v934 = vunpack.c.l.b16 %v853
        %v935 = vunpack.c.l.b16 %v854
        %v936 = vunpack.c.h.b16 %v854
        %v937 = vunpack.c.l.b16 %v855
        %v938 = vunpack.c.l.b16 %v856
        %v939 = vunpack.c.h.b16 %v856
        %v940 = vunpack.c.l.b16 %v857
        %v941 = vunpack.c.l.b16 %v858
        %v942 = vunpack.c.h.b16 %v858
        %v943 = vunpack.c.l.b16 %v859
        %v944 = vunpack.c.l.b16 %v860
        %v945 = vunpack.c.h.b16 %v860
        %v946 = vunpack.c.l.b16 %v861
        %v947 = vunpack.c.l.b16 %v862
        %v948 = vunpack.c.h.b16 %v862
        %v949 = vunpack.c.l.b16 %v863
        %v950 = vunpack.c.l.b16 %v864
        %v951 = vunpack.c.h.b16 %v864
        %v952 = vunpack.c.l.b16 %v865
        %v953 = vunpack.c.l.b16 %v866
        %v954 = vunpack.c.h.b16 %v866
        %v955 = vunpack.c.l.b16 %v867
        %v956 = vpack.c.b16 %v911, %v908
        %v957 = vpack.c.b16 %v912, %v909
        %v958 = vpack.c.b16 %v913, %v910
        %v959 = vpack.c.b16 %v917, %v914
        %v960 = vpack.c.b16 %v918, %v915
        %v961 = vpack.c.b16 %v919, %v916
        %v962 = vpack.c.b16 %v923, %v920
        %v963 = vpack.c.b16 %v924, %v921
        %v964 = vpack.c.b16 %v925, %v922
        %v965 = vpack.c.b16 %v929, %v926
        %v966 = vpack.c.b16 %v930, %v927
        %v967 = vpack.c.b16 %v931, %v928
        %v968 = vpack.c.b16 %v935, %v932
        %v969 = vpack.c.b16 %v936, %v933
        %v970 = vpack.c.b16 %v937, %v934
        %v971 = vpack.c.b16 %v941, %v938
        %v972 = vpack.c.b16 %v942, %v939
        %v973 = vpack.c.b16 %v943, %v940
        %v974 = vpack.c.b16 %v947, %v944
        %v975 = vpack.c.b16 %v948, %v945
        %v976 = vpack.c.b16 %v949, %v946
        %v977 = vpack.c.b16 %v953, %v950
        %v978 = vpack.c.b16 %v954, %v951
        %v979 = vpack.c.b16 %v955, %v952
        %1004 = vmatpush.bf16.msra.mxu0 %v977
        %1005 = vmatpush.bf16.msra.mxu0 %v974
        %1006 = vmatpush.bf16.msra.mxu0 %v971
        %1007 = vmatpush.bf16.msra.mxu0 %v968
        %1008 = vmatpush.bf16.msra.mxu0 %v965
        %1009 = vmatpush.bf16.msra.mxu0 %v962
        %1010 = vmatpush.bf16.msra.mxu0 %v959
        %1011 = vmatpush.bf16.msra.mxu0 %v956
        %1012 = vmatmul.bf16.gmra.mxu0 %v834
        %v1013 = vpop.f32.mrf.mxu0
        %v1014 = vadd.f32 %v870, %v1013
        %v1015 = vpop.f32.mrf.mxu0
        %v1016 = vadd.f32 %v870, %v1015
        %1017 = vmatmul.bf16.gmra.mxu0 %v835
        %v1018 = vpop.f32.mrf.mxu0
        %v1019 = vadd.f32 %v870, %v1018
        %v1020 = vpop.f32.mrf.mxu0
        %v1021 = vadd.f32 %v870, %v1020
        %1022 = vdwg.mxu0
        %1023 = vmatpush.bf16.msra.mxu0 %v978
        %1024 = vmatpush.bf16.msra.mxu0 %v975
        %1025 = vmatpush.bf16.msra.mxu0 %v972
        %1026 = vmatpush.bf16.msra.mxu0 %v969
        %1027 = vmatpush.bf16.msra.mxu0 %v966
        %1028 = vmatpush.bf16.msra.mxu0 %v963
        %1029 = vmatpush.bf16.msra.mxu0 %v960
        %1030 = vmatpush.bf16.msra.mxu0 %v957
        %1031 = vmatmul.bf16.gmra.mxu0 %v834
        %v1032 = vpop.f32.mrf.mxu0
        %v1033 = vadd.f32 %v871, %v1032
        %v1034 = vpop.f32.mrf.mxu0
        %v1035 = vadd.f32 %v871, %v1034
        %1036 = vmatmul.bf16.gmra.mxu0 %v835
        %v1037 = vpop.f32.mrf.mxu0
        %v1038 = vadd.f32 %v871, %v1037
        %v1039 = vpop.f32.mrf.mxu0
        %v1040 = vadd.f32 %v871, %v1039
        %1041 = vdwg.mxu0
        %1042 = vmatpush.bf16.msra.mxu0 %v979
        %1043 = vmatpush.bf16.msra.mxu0 %v976
        %1044 = vmatpush.bf16.msra.mxu0 %v973
        %1045 = vmatpush.bf16.msra.mxu0 %v970
        %1046 = vmatpush.bf16.msra.mxu0 %v967
        %1047 = vmatpush.bf16.msra.mxu0 %v964
        %1048 = vmatpush.bf16.msra.mxu0 %v961
        %1049 = vmatpush.bf16.msra.mxu0 %v958
        %1050 = vmatmul.bf16.gmra.mxu0 %v834
        %v1051 = vpop.f32.mrf.mxu0
        %v1052 = vadd.f32 %v872, %v1051
        %v1053 = vpop.f32.mrf.mxu0
        %v1054 = vadd.f32 %v872, %v1053
        %1055 = vmatmul.bf16.gmra.mxu0 %v835
        %v1056 = vpop.f32.mrf.mxu0
        %v1057 = vadd.f32 %v872, %v1056
        %v1058 = vpop.f32.mrf.mxu0
        %v1059 = vadd.f32 %v872, %v1058
        %1060 = vdwg.mxu0
        %v1061 = vpack.c.bf16 %v1014, %v1014
        %v1062 = vpack.c.bf16 %v1016, %v1016
        %v1063 = vpack.c.bf16 %v1019, %v1019
        %v1064 = vpack.c.bf16 %v1021, %v1021
        %v1065 = vpack.c.bf16 %v1033, %v1033
        %v1066 = vpack.c.bf16 %v1035, %v1035
        %v1067 = vpack.c.bf16 %v1038, %v1038
        %v1068 = vpack.c.bf16 %v1040, %v1040
        %v1069 = vpack.c.bf16 %v1052, %v1052
        %v1070 = vpack.c.bf16 %v1054, %v1054
        %v1071 = vpack.c.bf16 %v1057, %v1057
        %v1072 = vpack.c.bf16 %v1059, %v1059
        %v1073 = vlaneseq
        %v1074 = vshrl.u32 %v1073, 7
        %v1075 = vadd.s32 %v1074, 8
        %v1076 = vlaneseq
        %v1077 = vand.u32 %v1076, 127
        %vm1078 = vcmp.ge.s32.totalorder %v1074, %v1077
        %vm1079 = vcmp.ge.s32.totalorder %v1075, %v1077
        %v1082 = vunpack.c.l.b16 %v1061
        %v1083 = vunpack.c.l.b16 %v1062
        %v1084 = vpack.c.b16 %v1083, %v1082
        %v1087 = vunpack.c.l.b16 %v1065
        %v1088 = vunpack.c.l.b16 %v1066
        %v1089 = vpack.c.b16 %v1088, %v1087
        %vm1090 = vcmask 261120
        %v1092 = vsel %vm1090, %v1084, 0
        %v1095 = vsel %vm1090, %v1089, 0
        %1097 = vmatpush.bf16.xpose.msra.mxu0 0
        %1098 = vmatpush.bf16.xpose.msra.mxu0 0
        %1099 = vmatpush.bf16.xpose.msra.mxu0 0
        %1100 = vmatpush.bf16.xpose.msra.mxu0 0
        %1101 = vmatpush.bf16.xpose.msra.mxu0 0
        %1102 = vmatpush.bf16.xpose.msra.mxu0 0
        %1103 = vmatpush.bf16.xpose.msra.mxu0 0
        %1104 = vmatpush.bf16.xpose.msra.mxu0 %v1095
        %1105 = vmatmul.bf16.gmra.mxu0 %v1092
        %v1106 = vpop.f32.mrf.mxu0
        %v1107 = vadd.f32 0.0, %v1106
        %v1108 = vpop.f32.mrf.mxu0
        %v1109 = vadd.f32 0.0, %v1108
        %1110 = vdwg.mxu0
        %v1113 = vunpack.c.l.b16 %v1063
        %v1114 = vunpack.c.l.b16 %v1064
        %v1115 = vpack.c.b16 %v1114, %v1113
        %v1118 = vunpack.c.l.b16 %v1067
        %v1119 = vunpack.c.l.b16 %v1068
        %v1120 = vpack.c.b16 %v1119, %v1118
        %v1122 = vsel %vm1090, %v1115, 0
        %v1125 = vsel %vm1090, %v1120, 0
        %1127 = vmatpush.bf16.xpose.msra.mxu0 0
        %1128 = vmatpush.bf16.xpose.msra.mxu0 0
        %1129 = vmatpush.bf16.xpose.msra.mxu0 0
        %1130 = vmatpush.bf16.xpose.msra.mxu0 0
        %1131 = vmatpush.bf16.xpose.msra.mxu0 0
        %1132 = vmatpush.bf16.xpose.msra.mxu0 0
        %1133 = vmatpush.bf16.xpose.msra.mxu0 0
        %1134 = vmatpush.bf16.xpose.msra.mxu0 %v1125
        %1135 = vmatmul.bf16.gmra.mxu0 %v1122
        %v1136 = vpop.f32.mrf.mxu0
        %v1137 = vadd.f32 0.0, %v1136
        %v1138 = vpop.f32.mrf.mxu0
        %v1139 = vadd.f32 0.0, %v1138
        %1140 = vdwg.mxu0
        %v1141 = vmul.f32 %v1107, 0.17677669
        %v1142 = vmul.f32 %v1109, 0.17677669
        %v1143 = vmul.f32 %v1137, 0.17677669
        %v1144 = vmul.f32 %v1139, 0.17677669
        %v1145 = vsel %vm1078, 1, 0
        %v1146 = vsel %vm1079, 1, 0
        %vm1147 = vcmp.eq.s32.totalorder %v1145, 1
        %vm1148 = vcmp.eq.s32.totalorder %v1146, 1
        %v1149 = vsel %vm1147, %v1141, -1e+09
        %v1150 = vsel %vm1148, %v1142, -1e+09
        %v1151 = vsel %vm1147, %v1143, -1e+09
        %v1152 = vsel %vm1148, %v1144, -1e+09
        %vm1153 = vcmask 130048
        %v1154 = vsel %vm1153, %v1149, -inf
        %1155 = vmax.xlane.f32.xlu0 %v1154
        %v1156 = vpop.xlane.xlu0 %1155
        %v1157 = vsel %vm1153, %v1150, -inf
        %1158 = vmax.xlane.f32.xlu0 %v1157
        %v1159 = vpop.xlane.xlu0 %1158
        %v1160 = vsel %vm1153, %v1151, -inf
        %1161 = vmax.xlane.f32.xlu0 %v1160
        %v1162 = vpop.xlane.xlu0 %1161
        %v1163 = vsel %vm1153, %v1152, -inf
        %1164 = vmax.xlane.f32.xlu0 %v1163
        %v1165 = vpop.xlane.xlu0 %1164
        %v1166 = vsub.f32 %v1149, %v1156
        %v1167 = vsub.f32 %v1150, %v1159
        %v1168 = vsub.f32 %v1151, %v1162
        %v1169 = vsub.f32 %v1152, %v1165
        %v1170 = vmul.f32 %v1166, 1.442695
        %v1171 = vpow.pop %v1170
        %v1172 = vmul.f32 %v1167, 1.442695
        %v1173 = vpow.pop %v1172
        %v1174 = vmul.f32 %v1168, 1.442695
        %v1175 = vpow.pop %v1174
        %v1176 = vmul.f32 %v1169, 1.442695
        %v1177 = vpow.pop %v1176
        %v1178 = vsel %vm1153, %v1171, 0.0
        %1179 = vadd.xlane.f32.xlu0 %v1178
        %v1180 = vpop.xlane.xlu0 %1179
        %v1181 = vsel %vm1153, %v1173, 0.0
        %1182 = vadd.xlane.f32.xlu0 %v1181
        %v1183 = vpop.xlane.xlu0 %1182
        %v1184 = vsel %vm1153, %v1175, 0.0
        %1185 = vadd.xlane.f32.xlu0 %v1184
        %v1186 = vpop.xlane.xlu0 %1185
        %v1187 = vsel %vm1153, %v1177, 0.0
        %1188 = vadd.xlane.f32.xlu0 %v1187
        %v1189 = vpop.xlane.xlu0 %1188
        %v1190 = vrcp.pop %v1180
        %v1191 = vrcp.pop %v1183
        %v1192 = vrcp.pop %v1186
        %v1193 = vrcp.pop %v1189
        %v1194 = vmul.f32 %v1171, %v1190
        %v1195 = vmul.f32 %v1173, %v1191
        %v1196 = vmul.f32 %v1175, %v1192
        %v1197 = vmul.f32 %v1177, %v1193
        %v1198 = vpack.c.bf16 %v1194, %v1194
        %v1199 = vpack.c.bf16 %v1195, %v1195
        %v1200 = vpack.c.bf16 %v1196, %v1196
        %v1201 = vpack.c.bf16 %v1197, %v1197
        %v1204 = vunpack.c.l.b16 %v1198
        %v1205 = vunpack.c.l.b16 %v1199
        %v1206 = vpack.c.b16 %v1205, %v1204
        %v1209 = vunpack.c.l.b16 %v1069
        %v1210 = vunpack.c.l.b16 %v1070
        %v1211 = vpack.c.b16 %v1210, %v1209
        %v1214 = vsel %vm1153, %v1206, 0
        %1216 = vmatpush.bf16.msra.mxu0 0
        %1217 = vmatpush.bf16.msra.mxu0 0
        %1218 = vmatpush.bf16.msra.mxu0 0
        %1219 = vmatpush.bf16.msra.mxu0 0
        %1220 = vmatpush.bf16.msra.mxu0 0
        %1221 = vmatpush.bf16.msra.mxu0 0
        %1222 = vmatpush.bf16.msra.mxu0 0
        %1223 = vmatpush.bf16.msra.mxu0 %v1211
        %1224 = vmatmul.bf16.gmra.mxu0 %v1214
        %v1225 = vpop.f32.mrf.mxu0
        %v1226 = vadd.f32 0.0, %v1225
        %v1227 = vpop.f32.mrf.mxu0
        %v1228 = vadd.f32 0.0, %v1227
        %1229 = vdwg.mxu0
        %v1232 = vunpack.c.l.b16 %v1200
        %v1233 = vunpack.c.l.b16 %v1201
        %v1234 = vpack.c.b16 %v1233, %v1232
        %v1237 = vunpack.c.l.b16 %v1071
        %v1238 = vunpack.c.l.b16 %v1072
        %v1239 = vpack.c.b16 %v1238, %v1237
        %v1242 = vsel %vm1153, %v1234, 0
        %1244 = vmatpush.bf16.msra.mxu0 0
        %1245 = vmatpush.bf16.msra.mxu0 0
        %1246 = vmatpush.bf16.msra.mxu0 0
        %1247 = vmatpush.bf16.msra.mxu0 0
        %1248 = vmatpush.bf16.msra.mxu0 0
        %1249 = vmatpush.bf16.msra.mxu0 0
        %1250 = vmatpush.bf16.msra.mxu0 0
        %1251 = vmatpush.bf16.msra.mxu0 %v1239
        %1252 = vmatmul.bf16.gmra.mxu0 %v1242
        %v1253 = vpop.f32.mrf.mxu0
        %v1254 = vadd.f32 0.0, %v1253
        %v1255 = vpop.f32.mrf.mxu0
        %v1256 = vadd.f32 0.0, %v1255
        %1257 = vdwg.mxu0
        %1258 = vrot.lane.b32.xlu0 %v1084, 96
        %v1259 = vpop.permute.xlu0 %1258
        %1260 = vrot.lane.b32.xlu0 %v1089, 96
        %v1261 = vpop.permute.xlu0 %1260
        %v1263 = vsel %vm1090, %v1259, 0
        %v1266 = vsel %vm1090, %v1261, 0
        %1268 = vmatpush.bf16.xpose.msra.mxu0 0
        %1269 = vmatpush.bf16.xpose.msra.mxu0 0
        %1270 = vmatpush.bf16.xpose.msra.mxu0 0
        %1271 = vmatpush.bf16.xpose.msra.mxu0 0
        %1272 = vmatpush.bf16.xpose.msra.mxu0 0
        %1273 = vmatpush.bf16.xpose.msra.mxu0 0
        %1274 = vmatpush.bf16.xpose.msra.mxu0 0
        %1275 = vmatpush.bf16.xpose.msra.mxu0 %v1266
        %1276 = vmatmul.bf16.gmra.mxu0 %v1263
        %v1277 = vpop.f32.mrf.mxu0
        %v1278 = vadd.f32 0.0, %v1277
        %v1279 = vpop.f32.mrf.mxu0
        %v1280 = vadd.f32 0.0, %v1279
        %1281 = vdwg.mxu0
        %1282 = vrot.lane.b32.xlu0 %v1115, 96
        %v1283 = vpop.permute.xlu0 %1282
        %1284 = vrot.lane.b32.xlu0 %v1120, 96
        %v1285 = vpop.permute.xlu0 %1284
        %v1287 = vsel %vm1090, %v1283, 0
        %v1290 = vsel %vm1090, %v1285, 0
        %1292 = vmatpush.bf16.xpose.msra.mxu0 0
        %1293 = vmatpush.bf16.xpose.msra.mxu0 0
        %1294 = vmatpush.bf16.xpose.msra.mxu0 0
        %1295 = vmatpush.bf16.xpose.msra.mxu0 0
        %1296 = vmatpush.bf16.xpose.msra.mxu0 0
        %1297 = vmatpush.bf16.xpose.msra.mxu0 0
        %1298 = vmatpush.bf16.xpose.msra.mxu0 0
        %1299 = vmatpush.bf16.xpose.msra.mxu0 %v1290
        %1300 = vmatmul.bf16.gmra.mxu0 %v1287
        %v1301 = vpop.f32.mrf.mxu0
        %v1302 = vadd.f32 0.0, %v1301
        %v1303 = vpop.f32.mrf.mxu0
        %v1304 = vadd.f32 0.0, %v1303
        %1305 = vdwg.mxu0
        %v1306 = vmul.f32 %v1278, 0.17677669
        %v1307 = vmul.f32 %v1280, 0.17677669
        %v1308 = vmul.f32 %v1302, 0.17677669
        %v1309 = vmul.f32 %v1304, 0.17677669
        %v1310 = vsel %vm1147, %v1306, -1e+09
        %v1311 = vsel %vm1148, %v1307, -1e+09
        %v1312 = vsel %vm1147, %v1308, -1e+09
        %v1313 = vsel %vm1148, %v1309, -1e+09
        %v1314 = vsel %vm1153, %v1310, -inf
        %1315 = vmax.xlane.f32.xlu0 %v1314
        %v1316 = vpop.xlane.xlu0 %1315
        %v1317 = vsel %vm1153, %v1311, -inf
        %1318 = vmax.xlane.f32.xlu0 %v1317
        %v1319 = vpop.xlane.xlu0 %1318
        %v1320 = vsel %vm1153, %v1312, -inf
        %1321 = vmax.xlane.f32.xlu0 %v1320
        %v1322 = vpop.xlane.xlu0 %1321
        %v1323 = vsel %vm1153, %v1313, -inf
        %1324 = vmax.xlane.f32.xlu0 %v1323
        %v1325 = vpop.xlane.xlu0 %1324
        %v1326 = vsub.f32 %v1310, %v1316
        %v1327 = vsub.f32 %v1311, %v1319
        %v1328 = vsub.f32 %v1312, %v1322
        %v1329 = vsub.f32 %v1313, %v1325
        %v1330 = vmul.f32 %v1326, 1.442695
        %v1331 = vpow.pop %v1330
        %v1332 = vmul.f32 %v1327, 1.442695
        %v1333 = vpow.pop %v1332
        %v1334 = vmul.f32 %v1328, 1.442695
        %v1335 = vpow.pop %v1334
        %v1336 = vmul.f32 %v1329, 1.442695
        %v1337 = vpow.pop %v1336
        %v1338 = vsel %vm1153, %v1331, 0.0
        %1339 = vadd.xlane.f32.xlu0 %v1338
        %v1340 = vpop.xlane.xlu0 %1339
        %v1341 = vsel %vm1153, %v1333, 0.0
        %1342 = vadd.xlane.f32.xlu0 %v1341
        %v1343 = vpop.xlane.xlu0 %1342
        %v1344 = vsel %vm1153, %v1335, 0.0
        %1345 = vadd.xlane.f32.xlu0 %v1344
        %v1346 = vpop.xlane.xlu0 %1345
        %v1347 = vsel %vm1153, %v1337, 0.0
        %1348 = vadd.xlane.f32.xlu0 %v1347
        %v1349 = vpop.xlane.xlu0 %1348
        %v1350 = vrcp.pop %v1340
        %v1351 = vrcp.pop %v1343
        %v1352 = vrcp.pop %v1346
        %v1353 = vrcp.pop %v1349
        %v1354 = vmul.f32 %v1331, %v1350
        %v1355 = vmul.f32 %v1333, %v1351
        %v1356 = vmul.f32 %v1335, %v1352
        %v1357 = vmul.f32 %v1337, %v1353
        %v1358 = vpack.c.bf16 %v1354, %v1354
        %v1359 = vpack.c.bf16 %v1355, %v1355
        %v1360 = vpack.c.bf16 %v1356, %v1356
        %v1361 = vpack.c.bf16 %v1357, %v1357
        %v1364 = vunpack.c.l.b16 %v1358
        %v1365 = vunpack.c.l.b16 %v1359
        %v1366 = vpack.c.b16 %v1365, %v1364
        %1367 = vrot.lane.b32.xlu0 %v1211, 96
        %v1368 = vpop.permute.xlu0 %1367
        %v1371 = vsel %vm1153, %v1366, 0
        %1373 = vmatpush.bf16.msra.mxu0 0
        %1374 = vmatpush.bf16.msra.mxu0 0
        %1375 = vmatpush.bf16.msra.mxu0 0
        %1376 = vmatpush.bf16.msra.mxu0 0
        %1377 = vmatpush.bf16.msra.mxu0 0
        %1378 = vmatpush.bf16.msra.mxu0 0
        %1379 = vmatpush.bf16.msra.mxu0 0
        %1380 = vmatpush.bf16.msra.mxu0 %v1368
        %1381 = vmatmul.bf16.gmra.mxu0 %v1371
        %v1382 = vpop.f32.mrf.mxu0
        %v1383 = vadd.f32 0.0, %v1382
        %v1384 = vpop.f32.mrf.mxu0
        %v1385 = vadd.f32 0.0, %v1384
        %1386 = vdwg.mxu0
        %v1389 = vunpack.c.l.b16 %v1360
        %v1390 = vunpack.c.l.b16 %v1361
        %v1391 = vpack.c.b16 %v1390, %v1389
        %1392 = vrot.lane.b32.xlu0 %v1239, 96
        %v1393 = vpop.permute.xlu0 %1392
        %v1396 = vsel %vm1153, %v1391, 0
        %1398 = vmatpush.bf16.msra.mxu0 0
        %1399 = vmatpush.bf16.msra.mxu0 0
        %1400 = vmatpush.bf16.msra.mxu0 0
        %1401 = vmatpush.bf16.msra.mxu0 0
        %1402 = vmatpush.bf16.msra.mxu0 0
        %1403 = vmatpush.bf16.msra.mxu0 0
        %1404 = vmatpush.bf16.msra.mxu0 0
        %1405 = vmatpush.bf16.msra.mxu0 %v1393
        %1406 = vmatmul.bf16.gmra.mxu0 %v1396
        %v1407 = vpop.f32.mrf.mxu0
        %v1408 = vadd.f32 0.0, %v1407
        %v1409 = vpop.f32.mrf.mxu0
        %v1410 = vadd.f32 0.0, %v1409
        %1411 = vdwg.mxu0
        %1412 = vrot.lane.b32.xlu0 %v1084, 64
        %v1413 = vpop.permute.xlu0 %1412
        %1414 = vrot.lane.b32.xlu0 %v1089, 64
        %v1415 = vpop.permute.xlu0 %1414
        %v1417 = vsel %vm1090, %v1413, 0
        %v1420 = vsel %vm1090, %v1415, 0
        %1422 = vmatpush.bf16.xpose.msra.mxu0 0
        %1423 = vmatpush.bf16.xpose.msra.mxu0 0
        %1424 = vmatpush.bf16.xpose.msra.mxu0 0
        %1425 = vmatpush.bf16.xpose.msra.mxu0 0
        %1426 = vmatpush.bf16.xpose.msra.mxu0 0
        %1427 = vmatpush.bf16.xpose.msra.mxu0 0
        %1428 = vmatpush.bf16.xpose.msra.mxu0 0
        %1429 = vmatpush.bf16.xpose.msra.mxu0 %v1420
        %1430 = vmatmul.bf16.gmra.mxu0 %v1417
        %v1431 = vpop.f32.mrf.mxu0
        %v1432 = vadd.f32 0.0, %v1431
        %v1433 = vpop.f32.mrf.mxu0
        %v1434 = vadd.f32 0.0, %v1433
        %1435 = vdwg.mxu0
        %1436 = vrot.lane.b32.xlu0 %v1115, 64
        %v1437 = vpop.permute.xlu0 %1436
        %1438 = vrot.lane.b32.xlu0 %v1120, 64
        %v1439 = vpop.permute.xlu0 %1438
        %v1441 = vsel %vm1090, %v1437, 0
        %v1444 = vsel %vm1090, %v1439, 0
        %1446 = vmatpush.bf16.xpose.msra.mxu0 0
        %1447 = vmatpush.bf16.xpose.msra.mxu0 0
        %1448 = vmatpush.bf16.xpose.msra.mxu0 0
        %1449 = vmatpush.bf16.xpose.msra.mxu0 0
        %1450 = vmatpush.bf16.xpose.msra.mxu0 0
        %1451 = vmatpush.bf16.xpose.msra.mxu0 0
        %1452 = vmatpush.bf16.xpose.msra.mxu0 0
        %1453 = vmatpush.bf16.xpose.msra.mxu0 %v1444
        %1454 = vmatmul.bf16.gmra.mxu0 %v1441
        %v1455 = vpop.f32.mrf.mxu0
        %v1456 = vadd.f32 0.0, %v1455
        %v1457 = vpop.f32.mrf.mxu0
        %v1458 = vadd.f32 0.0, %v1457
        %1459 = vdwg.mxu0
        %v1460 = vmul.f32 %v1432, 0.17677669
        %v1461 = vmul.f32 %v1434, 0.17677669
        %v1462 = vmul.f32 %v1456, 0.17677669
        %v1463 = vmul.f32 %v1458, 0.17677669
        %v1464 = vsel %vm1147, %v1460, -1e+09
        %v1465 = vsel %vm1148, %v1461, -1e+09
        %v1466 = vsel %vm1147, %v1462, -1e+09
        %v1467 = vsel %vm1148, %v1463, -1e+09
        %v1468 = vsel %vm1153, %v1464, -inf
        %1469 = vmax.xlane.f32.xlu0 %v1468
        %v1470 = vpop.xlane.xlu0 %1469
        %v1471 = vsel %vm1153, %v1465, -inf
        %1472 = vmax.xlane.f32.xlu0 %v1471
        %v1473 = vpop.xlane.xlu0 %1472
        %v1474 = vsel %vm1153, %v1466, -inf
        %1475 = vmax.xlane.f32.xlu0 %v1474
        %v1476 = vpop.xlane.xlu0 %1475
        %v1477 = vsel %vm1153, %v1467, -inf
        %1478 = vmax.xlane.f32.xlu0 %v1477
        %v1479 = vpop.xlane.xlu0 %1478
        %v1480 = vsub.f32 %v1464, %v1470
        %v1481 = vsub.f32 %v1465, %v1473
        %v1482 = vsub.f32 %v1466, %v1476
        %v1483 = vsub.f32 %v1467, %v1479
        %v1484 = vmul.f32 %v1480, 1.442695
        %v1485 = vpow.pop %v1484
        %v1486 = vmul.f32 %v1481, 1.442695
        %v1487 = vpow.pop %v1486
        %v1488 = vmul.f32 %v1482, 1.442695
        %v1489 = vpow.pop %v1488
        %v1490 = vmul.f32 %v1483, 1.442695
        %v1491 = vpow.pop %v1490
        %v1492 = vsel %vm1153, %v1485, 0.0
        %1493 = vadd.xlane.f32.xlu0 %v1492
        %v1494 = vpop.xlane.xlu0 %1493
        %v1495 = vsel %vm1153, %v1487, 0.0
        %1496 = vadd.xlane.f32.xlu0 %v1495
        %v1497 = vpop.xlane.xlu0 %1496
        %v1498 = vsel %vm1153, %v1489, 0.0
        %1499 = vadd.xlane.f32.xlu0 %v1498
        %v1500 = vpop.xlane.xlu0 %1499
        %v1501 = vsel %vm1153, %v1491, 0.0
        %1502 = vadd.xlane.f32.xlu0 %v1501
        %v1503 = vpop.xlane.xlu0 %1502
        %v1504 = vrcp.pop %v1494
        %v1505 = vrcp.pop %v1497
        %v1506 = vrcp.pop %v1500
        %v1507 = vrcp.pop %v1503
        %v1508 = vmul.f32 %v1485, %v1504
        %v1509 = vmul.f32 %v1487, %v1505
        %v1510 = vmul.f32 %v1489, %v1506
        %v1511 = vmul.f32 %v1491, %v1507
        %v1512 = vpack.c.bf16 %v1508, %v1508
        %v1513 = vpack.c.bf16 %v1509, %v1509
        %v1514 = vpack.c.bf16 %v1510, %v1510
        %v1515 = vpack.c.bf16 %v1511, %v1511
        %v1518 = vunpack.c.l.b16 %v1512
        %v1519 = vunpack.c.l.b16 %v1513
        %v1520 = vpack.c.b16 %v1519, %v1518
        %1521 = vrot.lane.b32.xlu0 %v1211, 64
        %v1522 = vpop.permute.xlu0 %1521
        %v1525 = vsel %vm1153, %v1520, 0
        %1527 = vmatpush.bf16.msra.mxu0 0
        %1528 = vmatpush.bf16.msra.mxu0 0
        %1529 = vmatpush.bf16.msra.mxu0 0
        %1530 = vmatpush.bf16.msra.mxu0 0
        %1531 = vmatpush.bf16.msra.mxu0 0
        %1532 = vmatpush.bf16.msra.mxu0 0
        %1533 = vmatpush.bf16.msra.mxu0 0
        %1534 = vmatpush.bf16.msra.mxu0 %v1522
        %1535 = vmatmul.bf16.gmra.mxu0 %v1525
        %v1536 = vpop.f32.mrf.mxu0
        %v1537 = vadd.f32 0.0, %v1536
        %v1538 = vpop.f32.mrf.mxu0
        %v1539 = vadd.f32 0.0, %v1538
        %1540 = vdwg.mxu0
        %v1543 = vunpack.c.l.b16 %v1514
        %v1544 = vunpack.c.l.b16 %v1515
        %v1545 = vpack.c.b16 %v1544, %v1543
        %1546 = vrot.lane.b32.xlu0 %v1239, 64
        %v1547 = vpop.permute.xlu0 %1546
        %v1550 = vsel %vm1153, %v1545, 0
        %1552 = vmatpush.bf16.msra.mxu0 0
        %1553 = vmatpush.bf16.msra.mxu0 0
        %1554 = vmatpush.bf16.msra.mxu0 0
        %1555 = vmatpush.bf16.msra.mxu0 0
        %1556 = vmatpush.bf16.msra.mxu0 0
        %1557 = vmatpush.bf16.msra.mxu0 0
        %1558 = vmatpush.bf16.msra.mxu0 0
        %1559 = vmatpush.bf16.msra.mxu0 %v1547
        %1560 = vmatmul.bf16.gmra.mxu0 %v1550
        %v1561 = vpop.f32.mrf.mxu0
        %v1562 = vadd.f32 0.0, %v1561
        %v1563 = vpop.f32.mrf.mxu0
        %v1564 = vadd.f32 0.0, %v1563
        %1565 = vdwg.mxu0
        %1566 = vrot.lane.b32.xlu0 %v1084, 32
        %v1567 = vpop.permute.xlu0 %1566
        %1568 = vrot.lane.b32.xlu0 %v1089, 32
        %v1569 = vpop.permute.xlu0 %1568
        %v1571 = vsel %vm1090, %v1567, 0
        %v1574 = vsel %vm1090, %v1569, 0
        %1576 = vmatpush.bf16.xpose.msra.mxu0 0
        %1577 = vmatpush.bf16.xpose.msra.mxu0 0
        %1578 = vmatpush.bf16.xpose.msra.mxu0 0
        %1579 = vmatpush.bf16.xpose.msra.mxu0 0
        %1580 = vmatpush.bf16.xpose.msra.mxu0 0
        %1581 = vmatpush.bf16.xpose.msra.mxu0 0
        %1582 = vmatpush.bf16.xpose.msra.mxu0 0
        %1583 = vmatpush.bf16.xpose.msra.mxu0 %v1574
        %1584 = vmatmul.bf16.gmra.mxu0 %v1571
        %v1585 = vpop.f32.mrf.mxu0
        %v1586 = vadd.f32 0.0, %v1585
        %v1587 = vpop.f32.mrf.mxu0
        %v1588 = vadd.f32 0.0, %v1587
        %1589 = vdwg.mxu0
        %1590 = vrot.lane.b32.xlu0 %v1115, 32
        %v1591 = vpop.permute.xlu0 %1590
        %1592 = vrot.lane.b32.xlu0 %v1120, 32
        %v1593 = vpop.permute.xlu0 %1592
        %v1595 = vsel %vm1090, %v1591, 0
        %v1598 = vsel %vm1090, %v1593, 0
        %1600 = vmatpush.bf16.xpose.msra.mxu0 0
        %1601 = vmatpush.bf16.xpose.msra.mxu0 0
        %1602 = vmatpush.bf16.xpose.msra.mxu0 0
        %1603 = vmatpush.bf16.xpose.msra.mxu0 0
        %1604 = vmatpush.bf16.xpose.msra.mxu0 0
        %1605 = vmatpush.bf16.xpose.msra.mxu0 0
        %1606 = vmatpush.bf16.xpose.msra.mxu0 0
        %1607 = vmatpush.bf16.xpose.msra.mxu0 %v1598
        %1608 = vmatmul.bf16.gmra.mxu0 %v1595
        %v1609 = vpop.f32.mrf.mxu0
        %v1610 = vadd.f32 0.0, %v1609
        %v1611 = vpop.f32.mrf.mxu0
        %v1612 = vadd.f32 0.0, %v1611
        %1613 = vdwg.mxu0
        %v1614 = vmul.f32 %v1586, 0.17677669
        %v1615 = vmul.f32 %v1588, 0.17677669
        %v1616 = vmul.f32 %v1610, 0.17677669
        %v1617 = vmul.f32 %v1612, 0.17677669
        %v1618 = vsel %vm1147, %v1614, -1e+09
        %v1619 = vsel %vm1148, %v1615, -1e+09
        %v1620 = vsel %vm1147, %v1616, -1e+09
        %v1621 = vsel %vm1148, %v1617, -1e+09
        %v1622 = vsel %vm1153, %v1618, -inf
        %1623 = vmax.xlane.f32.xlu0 %v1622
        %v1624 = vpop.xlane.xlu0 %1623
        %v1625 = vsel %vm1153, %v1619, -inf
        %1626 = vmax.xlane.f32.xlu0 %v1625
        %v1627 = vpop.xlane.xlu0 %1626
        %v1628 = vsel %vm1153, %v1620, -inf
        %1629 = vmax.xlane.f32.xlu0 %v1628
        %v1630 = vpop.xlane.xlu0 %1629
        %v1631 = vsel %vm1153, %v1621, -inf
        %1632 = vmax.xlane.f32.xlu0 %v1631
        %v1633 = vpop.xlane.xlu0 %1632
        %v1634 = vsub.f32 %v1618, %v1624
        %v1635 = vsub.f32 %v1619, %v1627
        %v1636 = vsub.f32 %v1620, %v1630
        %v1637 = vsub.f32 %v1621, %v1633
        %v1638 = vmul.f32 %v1634, 1.442695
        %v1639 = vpow.pop %v1638
        %v1640 = vmul.f32 %v1635, 1.442695
        %v1641 = vpow.pop %v1640
        %v1642 = vmul.f32 %v1636, 1.442695
        %v1643 = vpow.pop %v1642
        %v1644 = vmul.f32 %v1637, 1.442695
        %v1645 = vpow.pop %v1644
        %v1646 = vsel %vm1153, %v1639, 0.0
        %1647 = vadd.xlane.f32.xlu0 %v1646
        %v1648 = vpop.xlane.xlu0 %1647
        %v1649 = vsel %vm1153, %v1641, 0.0
        %1650 = vadd.xlane.f32.xlu0 %v1649
        %v1651 = vpop.xlane.xlu0 %1650
        %v1652 = vsel %vm1153, %v1643, 0.0
        %1653 = vadd.xlane.f32.xlu0 %v1652
        %v1654 = vpop.xlane.xlu0 %1653
        %v1655 = vsel %vm1153, %v1645, 0.0
        %1656 = vadd.xlane.f32.xlu0 %v1655
        %v1657 = vpop.xlane.xlu0 %1656
        %v1658 = vrcp.pop %v1648
        %v1659 = vrcp.pop %v1651
        %v1660 = vrcp.pop %v1654
        %v1661 = vrcp.pop %v1657
        %v1662 = vmul.f32 %v1639, %v1658
        %v1663 = vmul.f32 %v1641, %v1659
        %v1664 = vmul.f32 %v1643, %v1660
        %v1665 = vmul.f32 %v1645, %v1661
        %v1666 = vpack.c.bf16 %v1662, %v1662
        %v1667 = vpack.c.bf16 %v1663, %v1663
        %v1668 = vpack.c.bf16 %v1664, %v1664
        %v1669 = vpack.c.bf16 %v1665, %v1665
        %v1672 = vunpack.c.l.b16 %v1666
        %v1673 = vunpack.c.l.b16 %v1667
        %v1674 = vpack.c.b16 %v1673, %v1672
        %1675 = vrot.lane.b32.xlu0 %v1211, 32
        %v1676 = vpop.permute.xlu0 %1675
        %v1679 = vsel %vm1153, %v1674, 0
        %1681 = vmatpush.bf16.msra.mxu0 0
        %1682 = vmatpush.bf16.msra.mxu0 0
        %1683 = vmatpush.bf16.msra.mxu0 0
        %1684 = vmatpush.bf16.msra.mxu0 0
        %1685 = vmatpush.bf16.msra.mxu0 0
        %1686 = vmatpush.bf16.msra.mxu0 0
        %1687 = vmatpush.bf16.msra.mxu0 0
        %1688 = vmatpush.bf16.msra.mxu0 %v1676
        %1689 = vmatmul.bf16.gmra.mxu0 %v1679
        %v1690 = vpop.f32.mrf.mxu0
        %v1691 = vadd.f32 0.0, %v1690
        %v1692 = vpop.f32.mrf.mxu0
        %v1693 = vadd.f32 0.0, %v1692
        %1694 = vdwg.mxu0
        %v1697 = vunpack.c.l.b16 %v1668
        %v1698 = vunpack.c.l.b16 %v1669
        %v1699 = vpack.c.b16 %v1698, %v1697
        %1700 = vrot.lane.b32.xlu0 %v1239, 32
        %v1701 = vpop.permute.xlu0 %1700
        %v1704 = vsel %vm1153, %v1699, 0
        %1706 = vmatpush.bf16.msra.mxu0 0
        %1707 = vmatpush.bf16.msra.mxu0 0
        %1708 = vmatpush.bf16.msra.mxu0 0
        %1709 = vmatpush.bf16.msra.mxu0 0
        %1710 = vmatpush.bf16.msra.mxu0 0
        %1711 = vmatpush.bf16.msra.mxu0 0
        %1712 = vmatpush.bf16.msra.mxu0 0
        %1713 = vmatpush.bf16.msra.mxu0 %v1701
        %1714 = vmatmul.bf16.gmra.mxu0 %v1704
        %v1715 = vpop.f32.mrf.mxu0
        %v1716 = vadd.f32 0.0, %v1715
        %v1717 = vpop.f32.mrf.mxu0
        %v1718 = vadd.f32 0.0, %v1717
        %1719 = vdwg.mxu0
        %1724 = vrot.lane.b32.xlu0 %v1383, 32
        %v1725 = vpop.permute.xlu0 %1724
        %1726 = vrot.lane.b32.xlu0 %v1385, 32
        %v1727 = vpop.permute.xlu0 %1726
        %1728 = vrot.lane.b32.xlu0 %v1408, 32
        %v1729 = vpop.permute.xlu0 %1728
        %1730 = vrot.lane.b32.xlu0 %v1410, 32
        %v1731 = vpop.permute.xlu0 %1730
        %1740 = vrot.lane.b32.xlu0 %v1537, 64
        %v1741 = vpop.permute.xlu0 %1740
        %1742 = vrot.lane.b32.xlu0 %v1539, 64
        %v1743 = vpop.permute.xlu0 %1742
        %1744 = vrot.lane.b32.xlu0 %v1562, 64
        %v1745 = vpop.permute.xlu0 %1744
        %1746 = vrot.lane.b32.xlu0 %v1564, 64
        %v1747 = vpop.permute.xlu0 %1746
        %1756 = vrot.lane.b32.xlu0 %v1691, 96
        %v1757 = vpop.permute.xlu0 %1756
        %1758 = vrot.lane.b32.xlu0 %v1693, 96
        %v1759 = vpop.permute.xlu0 %1758
        %1760 = vrot.lane.b32.xlu0 %v1716, 96
        %v1761 = vpop.permute.xlu0 %1760
        %1762 = vrot.lane.b32.xlu0 %v1718, 96
        %v1763 = vpop.permute.xlu0 %1762
        %v1768 = vsel %vm1090, %v1226, %v1725
        %v1769 = vsel %vm1090, %v1228, %v1727
        %v1770 = vsel %vm1090, %v1254, %v1729
        %v1771 = vsel %vm1090, %v1256, %v1731
        %vm1772 = vcmask 523264
        %v1773 = vsel %vm1772, %v1768, %v1741
        %v1774 = vsel %vm1772, %v1769, %v1743
        %v1775 = vsel %vm1772, %v1770, %v1745
        %v1776 = vsel %vm1772, %v1771, %v1747
        %vm1777 = vcmask 785408
        %v1778 = vsel %vm1777, %v1773, %v1757
        %v1779 = vsel %vm1777, %v1774, %v1759
        %v1780 = vsel %vm1777, %v1775, %v1761
        %v1781 = vsel %vm1777, %v1776, %v1763
        %v1782 = vpack.c.bf16 %v1779, %v1778
        %v1783 = vpack.c.bf16 %v1781, %v1780
        %v1784 = vld [vmem:[#allocation10] sm:$0xf]
        %v1785 = vld [vmem:[#allocation10 + $0x4] sm:$0xf]
        %v1786 = vld [vmem:[#allocation10 + $0x8] sm:$0xf]
        %v1787 = vld [vmem:[#allocation10 + $0xc] sm:$0xf]
        %v1788 = vld [vmem:[#allocation10 + $0x10] sm:$0xf]
        %v1789 = vld [vmem:[#allocation10 + $0x14] sm:$0xf]
        %v1790 = vld [vmem:[#allocation10 + $0x18] sm:$0xf]
        %v1791 = vld [vmem:[#allocation10 + $0x1c] sm:$0xf]
        %v1792 = vld [vmem:[#allocation10 + $0x20] sm:$0xf]
        %v1793 = vld [vmem:[#allocation10 + $0x24] sm:$0xf]
        %v1794 = vld [vmem:[#allocation10 + $0x28] sm:$0xf]
        %v1795 = vld [vmem:[#allocation10 + $0x2c] sm:$0xf]
        %v1796 = vld [vmem:[#allocation10 + $0x30] sm:$0xf]
        %v1797 = vld [vmem:[#allocation10 + $0x34] sm:$0xf]
        %v1798 = vld [vmem:[#allocation10 + $0x38] sm:$0xf]
        %v1799 = vld [vmem:[#allocation10 + $0x3c] sm:$0xf]
        %v1800 = vld [vmem:[#allocation11] sm:$0x1]
        %v1802 = vperm.slane %v1800, 0
        %v1820 = vunpack.c.l.b16 %v1784
        %v1821 = vunpack.c.l.b16 %v1785
        %v1822 = vunpack.c.l.b16 %v1786
        %v1823 = vunpack.c.l.b16 %v1787
        %v1824 = vunpack.c.l.b16 %v1788
        %v1825 = vunpack.c.l.b16 %v1789
        %v1826 = vunpack.c.l.b16 %v1790
        %v1827 = vunpack.c.l.b16 %v1791
        %v1828 = vunpack.c.l.b16 %v1792
        %v1829 = vunpack.c.l.b16 %v1793
        %v1830 = vunpack.c.l.b16 %v1794
        %v1831 = vunpack.c.l.b16 %v1795
        %v1832 = vunpack.c.l.b16 %v1796
        %v1833 = vunpack.c.l.b16 %v1797
        %v1834 = vunpack.c.l.b16 %v1798
        %v1835 = vunpack.c.l.b16 %v1799
        %v1836 = vpack.c.b16 %v1821, %v1820
        %v1837 = vpack.c.b16 %v1823, %v1822
        %v1838 = vpack.c.b16 %v1825, %v1824
        %v1839 = vpack.c.b16 %v1827, %v1826
        %v1840 = vpack.c.b16 %v1829, %v1828
        %v1841 = vpack.c.b16 %v1831, %v1830
        %v1842 = vpack.c.b16 %v1833, %v1832
        %v1843 = vpack.c.b16 %v1835, %v1834
        %1852 = vmatpush.bf16.msra.mxu0 %v1843
        %1853 = vmatpush.bf16.msra.mxu0 %v1842
        %1854 = vmatpush.bf16.msra.mxu0 %v1841
        %1855 = vmatpush.bf16.msra.mxu0 %v1840
        %1856 = vmatpush.bf16.msra.mxu0 %v1839
        %1857 = vmatpush.bf16.msra.mxu0 %v1838
        %1858 = vmatpush.bf16.msra.mxu0 %v1837
        %1859 = vmatpush.bf16.msra.mxu0 %v1836
        %1860 = vmatmul.bf16.gmra.mxu0 %v1782
        %v1861 = vpop.f32.mrf.mxu0
        %v1862 = vadd.f32 %v1802, %v1861
        %v1863 = vpop.f32.mrf.mxu0
        %v1864 = vadd.f32 %v1802, %v1863
        %1865 = vmatmul.bf16.gmra.mxu0 %v1783
        %v1866 = vpop.f32.mrf.mxu0
        %v1867 = vadd.f32 %v1802, %v1866
        %v1868 = vpop.f32.mrf.mxu0
        %v1869 = vadd.f32 %v1802, %v1868
        %1870 = vdwg.mxu0
        %v1871 = vadd.f32 %v826, %v1862
        %v1872 = vadd.f32 %v827, %v1864
        %v1873 = vadd.f32 %v828, %v1867
        %v1874 = vadd.f32 %v829, %v1869
        %v1875 = vld [vmem:[%s14] sm:$0x1]
        %v1876 = vld [vmem:[%s15] sm:$0x1]
        %1877 = vadd.xlane.f32.xlu0 %v1871
        %v1878 = vpop.xlane.xlu0 %1877
        %1879 = vadd.xlane.f32.xlu0 %v1872
        %v1880 = vpop.xlane.xlu0 %1879
        %1881 = vadd.xlane.f32.xlu0 %v1873
        %v1882 = vpop.xlane.xlu0 %1881
        %1883 = vadd.xlane.f32.xlu0 %v1874
        %v1884 = vpop.xlane.xlu0 %1883
        %v1885 = vrcp.pop 128.0
        %v1886 = vmul.f32 128.0, %v1885
        %v1887 = vsub.f32 1.0, %v1886
        %v1888 = vmul.f32 %v1885, %v1887
        %v1889 = vadd.f32 %v1885, %v1888
        %vm1890 = vweird.f32 %v1885
        %v1891 = vsel %vm1890, %v1885, %v1889
        %v1892 = vmul.f32 %v1878, %v1891
        %v1893 = vmul.f32 %v1880, %v1891
        %v1894 = vmul.f32 %v1882, %v1891
        %v1895 = vmul.f32 %v1884, %v1891
        %v1896 = vsub.f32 %v1871, %v1892
        %v1897 = vsub.f32 %v1872, %v1893
        %v1898 = vsub.f32 %v1873, %v1894
        %v1899 = vsub.f32 %v1874, %v1895
        %v1900 = vmul.f32 %v1896, %v1896
        %v1901 = vmul.f32 %v1897, %v1897
        %v1902 = vmul.f32 %v1898, %v1898
        %v1903 = vmul.f32 %v1899, %v1899
        %1904 = vadd.xlane.f32.xlu0 %v1900
        %v1905 = vpop.xlane.xlu0 %1904
        %1906 = vadd.xlane.f32.xlu0 %v1901
        %v1907 = vpop.xlane.xlu0 %1906
        %1908 = vadd.xlane.f32.xlu0 %v1902
        %v1909 = vpop.xlane.xlu0 %1908
        %1910 = vadd.xlane.f32.xlu0 %v1903
        %v1911 = vpop.xlane.xlu0 %1910
        %v1912 = vmul.f32 %v1905, %v1891
        %v1913 = vmul.f32 %v1907, %v1891
        %v1914 = vmul.f32 %v1909, %v1891
        %v1915 = vmul.f32 %v1911, %v1891
        %v1916 = vadd.f32 %v1912, 1e-05
        %v1917 = vadd.f32 %v1913, 1e-05
        %v1918 = vadd.f32 %v1914, 1e-05
        %v1919 = vadd.f32 %v1915, 1e-05
        %v1920 = vrsqrt.pop %v1916
        %v1921 = vmul.f32 %v1920, %v1916
        %v1922 = vmul.f32 %v1921, %v1920
        %v1923 = vmul.f32 0.5, %v1922
        %v1924 = vsub.f32 1.5, %v1923
        %v1925 = vmul.f32 %v1920, %v1924
        %vm1926 = vweird.f32 %v1916
        %vm1927 = vweird.f32 %v1920
        %vm1928 = vmor %vm1926, %vm1927
        %v1929 = vsel %vm1928, %v1920, %v1925
        %v1930 = vrsqrt.pop %v1917
        %v1931 = vmul.f32 %v1930, %v1917
        %v1932 = vmul.f32 %v1931, %v1930
        %v1933 = vmul.f32 0.5, %v1932
        %v1934 = vsub.f32 1.5, %v1933
        %v1935 = vmul.f32 %v1930, %v1934
        %vm1936 = vweird.f32 %v1917
        %vm1937 = vweird.f32 %v1930
        %vm1938 = vmor %vm1936, %vm1937
        %v1939 = vsel %vm1938, %v1930, %v1935
        %v1940 = vrsqrt.pop %v1918
        %v1941 = vmul.f32 %v1940, %v1918
        %v1942 = vmul.f32 %v1941, %v1940
        %v1943 = vmul.f32 0.5, %v1942
        %v1944 = vsub.f32 1.5, %v1943
        %v1945 = vmul.f32 %v1940, %v1944
        %vm1946 = vweird.f32 %v1918
        %vm1947 = vweird.f32 %v1940
        %vm1948 = vmor %vm1946, %vm1947
        %v1949 = vsel %vm1948, %v1940, %v1945
        %v1950 = vrsqrt.pop %v1919
        %v1951 = vmul.f32 %v1950, %v1919
        %v1952 = vmul.f32 %v1951, %v1950
        %v1953 = vmul.f32 0.5, %v1952
        %v1954 = vsub.f32 1.5, %v1953
        %v1955 = vmul.f32 %v1950, %v1954
        %vm1956 = vweird.f32 %v1919
        %vm1957 = vweird.f32 %v1950
        %vm1958 = vmor %vm1956, %vm1957
        %v1959 = vsel %vm1958, %v1950, %v1955
        %v1960 = vmul.f32 %v1896, %v1929
        %v1961 = vmul.f32 %v1897, %v1939
        %v1962 = vmul.f32 %v1898, %v1949
        %v1963 = vmul.f32 %v1899, %v1959
        %v1965 = vperm.slane %v1875, 0
        %v1967 = vmul.f32 %v1960, %v1965
        %v1968 = vmul.f32 %v1961, %v1965
        %v1969 = vmul.f32 %v1962, %v1965
        %v1970 = vmul.f32 %v1963, %v1965
        %v1972 = vperm.slane %v1876, 0
        %v1974 = vadd.f32 %v1967, %v1972
        %v1975 = vadd.f32 %v1968, %v1972
        %v1976 = vadd.f32 %v1969, %v1972
        %v1977 = vadd.f32 %v1970, %v1972
        %v1978 = vpack.c.bf16 %v1975, %v1974
        %v1979 = vpack.c.bf16 %v1977, %v1976
        %v1980 = vld [vmem:[#allocation13] sm:$0xf]
        %v1981 = vld [vmem:[#allocation13 + $0xc] sm:$0xf]
        %v1982 = vld [vmem:[#allocation13 + $0x18] sm:$0xf]
        %v1983 = vld [vmem:[#allocation13 + $0x24] sm:$0xf]
        %v1984 = vld [vmem:[#allocation13 + $0x30] sm:$0xf]
        %v1985 = vld [vmem:[#allocation13 + $0x3c] sm:$0xf]
        %v1986 = vld [vmem:[#allocation13 + $0x48] sm:$0xf]
        %v1987 = vld [vmem:[#allocation13 + $0x54] sm:$0xf]
        %v1988 = vld [vmem:[#allocation13 + $0x60] sm:$0xf]
        %v1989 = vld [vmem:[#allocation13 + $0x6c] sm:$0xf]
        %v1990 = vld [vmem:[#allocation13 + $0x78] sm:$0xf]
        %v1991 = vld [vmem:[#allocation13 + $0x84] sm:$0xf]
        %v1992 = vld [vmem:[#allocation13 + $0x90] sm:$0xf]
        %v1993 = vld [vmem:[#allocation13 + $0x9c] sm:$0xf]
        %v1994 = vld [vmem:[#allocation13 + $0xa8] sm:$0xf]
        %v1995 = vld [vmem:[#allocation13 + $0xb4] sm:$0xf]
        %v1996 = vld [vmem:[%s7] sm:$0x1]
        %v1998 = vperm.slane %v1996, 0
        %v2016 = vunpack.c.l.b16 %v1980
        %v2017 = vunpack.c.l.b16 %v1981
        %v2018 = vunpack.c.l.b16 %v1982
        %v2019 = vunpack.c.l.b16 %v1983
        %v2020 = vunpack.c.l.b16 %v1984
        %v2021 = vunpack.c.l.b16 %v1985
        %v2022 = vunpack.c.l.b16 %v1986
        %v2023 = vunpack.c.l.b16 %v1987
        %v2024 = vunpack.c.l.b16 %v1988
        %v2025 = vunpack.c.l.b16 %v1989
        %v2026 = vunpack.c.l.b16 %v1990
        %v2027 = vunpack.c.l.b16 %v1991
        %v2028 = vunpack.c.l.b16 %v1992
        %v2029 = vunpack.c.l.b16 %v1993
        %v2030 = vunpack.c.l.b16 %v1994
        %v2031 = vunpack.c.l.b16 %v1995
        %v2032 = vpack.c.b16 %v2017, %v2016
        %v2033 = vpack.c.b16 %v2019, %v2018
        %v2034 = vpack.c.b16 %v2021, %v2020
        %v2035 = vpack.c.b16 %v2023, %v2022
        %v2036 = vpack.c.b16 %v2025, %v2024
        %v2037 = vpack.c.b16 %v2027, %v2026
        %v2038 = vpack.c.b16 %v2029, %v2028
        %v2039 = vpack.c.b16 %v2031, %v2030
        %2048 = vmatpush.bf16.msra.mxu0 %v2039
        %2049 = vmatpush.bf16.msra.mxu0 %v2038
        %2050 = vmatpush.bf16.msra.mxu0 %v2037
        %2051 = vmatpush.bf16.msra.mxu0 %v2036
        %2052 = vmatpush.bf16.msra.mxu0 %v2035
        %2053 = vmatpush.bf16.msra.mxu0 %v2034
        %2054 = vmatpush.bf16.msra.mxu0 %v2033
        %2055 = vmatpush.bf16.msra.mxu0 %v2032
        %2056 = vmatmul.bf16.gmra.mxu0 %v1978
        %v2057 = vpop.f32.mrf.mxu0
        %v2058 = vadd.f32 %v1998, %v2057
        %v2059 = vpop.f32.mrf.mxu0
        %v2060 = vadd.f32 %v1998, %v2059
        %2061 = vmatmul.bf16.gmra.mxu0 %v1979
        %v2062 = vpop.f32.mrf.mxu0
        %v2063 = vadd.f32 %v1998, %v2062
        %v2064 = vpop.f32.mrf.mxu0
        %v2065 = vadd.f32 %v1998, %v2064
        %2066 = vdwg.mxu0
        %v2067 = vpack.c.bf16 %v831, %v830
        %v2068 = vpack.c.bf16 %v833, %v832
        %v2069 = vld [vmem:[#allocation13 + $0x4] sm:$0xff]
        %v2070 = vld [vmem:[#allocation13 + $0x10] sm:$0xff]
        %v2071 = vld [vmem:[#allocation13 + $0x1c] sm:$0xff]
        %v2072 = vld [vmem:[#allocation13 + $0x28] sm:$0xff]
        %v2073 = vld [vmem:[#allocation13 + $0x34] sm:$0xff]
        %v2074 = vld [vmem:[#allocation13 + $0x40] sm:$0xff]
        %v2075 = vld [vmem:[#allocation13 + $0x4c] sm:$0xff]
        %v2076 = vld [vmem:[#allocation13 + $0x58] sm:$0xff]
        %v2077 = vld [vmem:[#allocation13 + $0x64] sm:$0xff]
        %v2078 = vld [vmem:[#allocation13 + $0x70] sm:$0xff]
        %v2079 = vld [vmem:[#allocation13 + $0x7c] sm:$0xff]
        %v2080 = vld [vmem:[#allocation13 + $0x88] sm:$0xff]
        %v2081 = vld [vmem:[#allocation13 + $0x94] sm:$0xff]
        %v2082 = vld [vmem:[#allocation13 + $0xa0] sm:$0xff]
        %v2083 = vld [vmem:[#allocation13 + $0xac] sm:$0xff]
        %v2084 = vld [vmem:[#allocation13 + $0xb8] sm:$0xff]
        %v2085 = vld [vmem:[%s7 + $0x1] sm:$0x3]
        %v2087 = vperm.slane %v2085, 0
        %v2088 = vperm.slane %v2085, 1
        %v2107 = vunpack.c.l.b16 %v2069
        %v2108 = vunpack.c.h.b16 %v2069
        %v2109 = vunpack.c.l.b16 %v2070
        %v2110 = vunpack.c.h.b16 %v2070
        %v2111 = vunpack.c.l.b16 %v2071
        %v2112 = vunpack.c.h.b16 %v2071
        %v2113 = vunpack.c.l.b16 %v2072
        %v2114 = vunpack.c.h.b16 %v2072
        %v2115 = vunpack.c.l.b16 %v2073
        %v2116 = vunpack.c.h.b16 %v2073
        %v2117 = vunpack.c.l.b16 %v2074
        %v2118 = vunpack.c.h.b16 %v2074
        %v2119 = vunpack.c.l.b16 %v2075
        %v2120 = vunpack.c.h.b16 %v2075
        %v2121 = vunpack.c.l.b16 %v2076
        %v2122 = vunpack.c.h.b16 %v2076
        %v2123 = vunpack.c.l.b16 %v2077
        %v2124 = vunpack.c.h.b16 %v2077
        %v2125 = vunpack.c.l.b16 %v2078
        %v2126 = vunpack.c.h.b16 %v2078
        %v2127 = vunpack.c.l.b16 %v2079
        %v2128 = vunpack.c.h.b16 %v2079
        %v2129 = vunpack.c.l.b16 %v2080
        %v2130 = vunpack.c.h.b16 %v2080
        %v2131 = vunpack.c.l.b16 %v2081
        %v2132 = vunpack.c.h.b16 %v2081
        %v2133 = vunpack.c.l.b16 %v2082
        %v2134 = vunpack.c.h.b16 %v2082
        %v2135 = vunpack.c.l.b16 %v2083
        %v2136 = vunpack.c.h.b16 %v2083
        %v2137 = vunpack.c.l.b16 %v2084
        %v2138 = vunpack.c.h.b16 %v2084
        %v2139 = vpack.c.b16 %v2109, %v2107
        %v2140 = vpack.c.b16 %v2110, %v2108
        %v2141 = vpack.c.b16 %v2113, %v2111
        %v2142 = vpack.c.b16 %v2114, %v2112
        %v2143 = vpack.c.b16 %v2117, %v2115
        %v2144 = vpack.c.b16 %v2118, %v2116
        %v2145 = vpack.c.b16 %v2121, %v2119
        %v2146 = vpack.c.b16 %v2122, %v2120
        %v2147 = vpack.c.b16 %v2125, %v2123
        %v2148 = vpack.c.b16 %v2126, %v2124
        %v2149 = vpack.c.b16 %v2129, %v2127
        %v2150 = vpack.c.b16 %v2130, %v2128
        %v2151 = vpack.c.b16 %v2133, %v2131
        %v2152 = vpack.c.b16 %v2134, %v2132
        %v2153 = vpack.c.b16 %v2137, %v2135
        %v2154 = vpack.c.b16 %v2138, %v2136
        %2171 = vmatpush.bf16.msra.mxu0 %v2153
        %2172 = vmatpush.bf16.msra.mxu0 %v2151
        %2173 = vmatpush.bf16.msra.mxu0 %v2149
        %2174 = vmatpush.bf16.msra.mxu0 %v2147
        %2175 = vmatpush.bf16.msra.mxu0 %v2145
        %2176 = vmatpush.bf16.msra.mxu0 %v2143
        %2177 = vmatpush.bf16.msra.mxu0 %v2141
        %2178 = vmatpush.bf16.msra.mxu0 %v2139
        %2179 = vmatmul.bf16.gmra.mxu0 %v2067
        %v2180 = vpop.f32.mrf.mxu0
        %v2181 = vadd.f32 %v2087, %v2180
        %v2182 = vpop.f32.mrf.mxu0
        %v2183 = vadd.f32 %v2087, %v2182
        %2184 = vmatmul.bf16.gmra.mxu0 %v2068
        %v2185 = vpop.f32.mrf.mxu0
        %v2186 = vadd.f32 %v2087, %v2185
        %v2187 = vpop.f32.mrf.mxu0
        %v2188 = vadd.f32 %v2087, %v2187
        %2189 = vdwg.mxu0
        %2190 = vmatpush.bf16.msra.mxu0 %v2154
        %2191 = vmatpush.bf16.msra.mxu0 %v2152
        %2192 = vmatpush.bf16.msra.mxu0 %v2150
        %2193 = vmatpush.bf16.msra.mxu0 %v2148
        %2194 = vmatpush.bf16.msra.mxu0 %v2146
        %2195 = vmatpush.bf16.msra.mxu0 %v2144
        %2196 = vmatpush.bf16.msra.mxu0 %v2142
        %2197 = vmatpush.bf16.msra.mxu0 %v2140
        %2198 = vmatmul.bf16.gmra.mxu0 %v2067
        %v2199 = vpop.f32.mrf.mxu0
        %v2200 = vadd.f32 %v2088, %v2199
        %v2201 = vpop.f32.mrf.mxu0
        %v2202 = vadd.f32 %v2088, %v2201
        %2203 = vmatmul.bf16.gmra.mxu0 %v2068
        %v2204 = vpop.f32.mrf.mxu0
        %v2205 = vadd.f32 %v2088, %v2204
        %v2206 = vpop.f32.mrf.mxu0
        %v2207 = vadd.f32 %v2088, %v2206
        %2208 = vdwg.mxu0
        %v2209 = vpack.c.bf16 %v2058, %v2058
        %v2210 = vpack.c.bf16 %v2060, %v2060
        %v2211 = vpack.c.bf16 %v2063, %v2063
        %v2212 = vpack.c.bf16 %v2065, %v2065
        %v2213 = vpack.c.bf16 %v2181, %v2181
        %v2214 = vpack.c.bf16 %v2183, %v2183
        %v2215 = vpack.c.bf16 %v2186, %v2186
        %v2216 = vpack.c.bf16 %v2188, %v2188
        %v2217 = vpack.c.bf16 %v2200, %v2200
        %v2218 = vpack.c.bf16 %v2202, %v2202
        %v2219 = vpack.c.bf16 %v2205, %v2205
        %v2220 = vpack.c.bf16 %v2207, %v2207
        %v2223 = vunpack.c.l.b16 %v2209
        %v2224 = vunpack.c.l.b16 %v2210
        %v2225 = vpack.c.b16 %v2224, %v2223
        %v2228 = vunpack.c.l.b16 %v2213
        %v2229 = vunpack.c.l.b16 %v2214
        %v2230 = vpack.c.b16 %v2229, %v2228
        %v2232 = vsel %vm1090, %v2225, 0
        %v2235 = vsel %vm1090, %v2230, 0
        %2237 = vmatpush.bf16.xpose.msra.mxu0 0
        %2238 = vmatpush.bf16.xpose.msra.mxu0 0
        %2239 = vmatpush.bf16.xpose.msra.mxu0 0
        %2240 = vmatpush.bf16.xpose.msra.mxu0 0
        %2241 = vmatpush.bf16.xpose.msra.mxu0 0
        %2242 = vmatpush.bf16.xpose.msra.mxu0 0
        %2243 = vmatpush.bf16.xpose.msra.mxu0 0
        %2244 = vmatpush.bf16.xpose.msra.mxu0 %v2235
        %2245 = vmatmul.bf16.gmra.mxu0 %v2232
        %v2246 = vpop.f32.mrf.mxu0
        %v2247 = vadd.f32 0.0, %v2246
        %v2248 = vpop.f32.mrf.mxu0
        %v2249 = vadd.f32 0.0, %v2248
        %2250 = vdwg.mxu0
        %v2253 = vunpack.c.l.b16 %v2211
        %v2254 = vunpack.c.l.b16 %v2212
        %v2255 = vpack.c.b16 %v2254, %v2253
        %v2258 = vunpack.c.l.b16 %v2215
        %v2259 = vunpack.c.l.b16 %v2216
        %v2260 = vpack.c.b16 %v2259, %v2258
        %v2262 = vsel %vm1090, %v2255, 0
        %v2265 = vsel %vm1090, %v2260, 0
        %2267 = vmatpush.bf16.xpose.msra.mxu0 0
        %2268 = vmatpush.bf16.xpose.msra.mxu0 0
        %2269 = vmatpush.bf16.xpose.msra.mxu0 0
        %2270 = vmatpush.bf16.xpose.msra.mxu0 0
        %2271 = vmatpush.bf16.xpose.msra.mxu0 0
        %2272 = vmatpush.bf16.xpose.msra.mxu0 0
        %2273 = vmatpush.bf16.xpose.msra.mxu0 0
        %2274 = vmatpush.bf16.xpose.msra.mxu0 %v2265
        %2275 = vmatmul.bf16.gmra.mxu0 %v2262
        %v2276 = vpop.f32.mrf.mxu0
        %v2277 = vadd.f32 0.0, %v2276
        %v2278 = vpop.f32.mrf.mxu0
        %v2279 = vadd.f32 0.0, %v2278
        %2280 = vdwg.mxu0
        %v2281 = vmul.f32 %v2247, 0.17677669
        %v2282 = vmul.f32 %v2249, 0.17677669
        %v2283 = vmul.f32 %v2277, 0.17677669
        %v2284 = vmul.f32 %v2279, 0.17677669
        %v2285 = vsel %vm1153, %v2281, -inf
        %2286 = vmax.xlane.f32.xlu0 %v2285
        %v2287 = vpop.xlane.xlu0 %2286
        %v2288 = vsel %vm1153, %v2282, -inf
        %2289 = vmax.xlane.f32.xlu0 %v2288
        %v2290 = vpop.xlane.xlu0 %2289
        %v2291 = vsel %vm1153, %v2283, -inf
        %2292 = vmax.xlane.f32.xlu0 %v2291
        %v2293 = vpop.xlane.xlu0 %2292
        %v2294 = vsel %vm1153, %v2284, -inf
        %2295 = vmax.xlane.f32.xlu0 %v2294
        %v2296 = vpop.xlane.xlu0 %2295
        %v2297 = vsub.f32 %v2281, %v2287
        %v2298 = vsub.f32 %v2282, %v2290
        %v2299 = vsub.f32 %v2283, %v2293
        %v2300 = vsub.f32 %v2284, %v2296
        %v2301 = vmul.f32 %v2297, 1.442695
        %v2302 = vpow.pop %v2301
        %v2303 = vmul.f32 %v2298, 1.442695
        %v2304 = vpow.pop %v2303
        %v2305 = vmul.f32 %v2299, 1.442695
        %v2306 = vpow.pop %v2305
        %v2307 = vmul.f32 %v2300, 1.442695
        %v2308 = vpow.pop %v2307
        %v2309 = vsel %vm1153, %v2302, 0.0
        %2310 = vadd.xlane.f32.xlu0 %v2309
        %v2311 = vpop.xlane.xlu0 %2310
        %v2312 = vsel %vm1153, %v2304, 0.0
        %2313 = vadd.xlane.f32.xlu0 %v2312
        %v2314 = vpop.xlane.xlu0 %2313
        %v2315 = vsel %vm1153, %v2306, 0.0
        %2316 = vadd.xlane.f32.xlu0 %v2315
        %v2317 = vpop.xlane.xlu0 %2316
        %v2318 = vsel %vm1153, %v2308, 0.0
        %2319 = vadd.xlane.f32.xlu0 %v2318
        %v2320 = vpop.xlane.xlu0 %2319
        %v2321 = vrcp.pop %v2311
        %v2322 = vrcp.pop %v2314
        %v2323 = vrcp.pop %v2317
        %v2324 = vrcp.pop %v2320
        %v2325 = vmul.f32 %v2302, %v2321
        %v2326 = vmul.f32 %v2304, %v2322
        %v2327 = vmul.f32 %v2306, %v2323
        %v2328 = vmul.f32 %v2308, %v2324
        %v2329 = vpack.c.bf16 %v2325, %v2325
        %v2330 = vpack.c.bf16 %v2326, %v2326
        %v2331 = vpack.c.bf16 %v2327, %v2327
        %v2332 = vpack.c.bf16 %v2328, %v2328
        %v2335 = vunpack.c.l.b16 %v2329
        %v2336 = vunpack.c.l.b16 %v2330
        %v2337 = vpack.c.b16 %v2336, %v2335
        %v2340 = vunpack.c.l.b16 %v2217
        %v2341 = vunpack.c.l.b16 %v2218
        %v2342 = vpack.c.b16 %v2341, %v2340
        %v2345 = vsel %vm1153, %v2337, 0
        %2347 = vmatpush.bf16.msra.mxu0 0
        %2348 = vmatpush.bf16.msra.mxu0 0
        %2349 = vmatpush.bf16.msra.mxu0 0
        %2350 = vmatpush.bf16.msra.mxu0 0
        %2351 = vmatpush.bf16.msra.mxu0 0
        %2352 = vmatpush.bf16.msra.mxu0 0
        %2353 = vmatpush.bf16.msra.mxu0 0
        %2354 = vmatpush.bf16.msra.mxu0 %v2342
        %2355 = vmatmul.bf16.gmra.mxu0 %v2345
        %v2356 = vpop.f32.mrf.mxu0
        %v2357 = vadd.f32 0.0, %v2356
        %v2358 = vpop.f32.mrf.mxu0
        %v2359 = vadd.f32 0.0, %v2358
        %2360 = vdwg.mxu0
        %v2363 = vunpack.c.l.b16 %v2331
        %v2364 = vunpack.c.l.b16 %v2332
        %v2365 = vpack.c.b16 %v2364, %v2363
        %v2368 = vunpack.c.l.b16 %v2219
        %v2369 = vunpack.c.l.b16 %v2220
        %v2370 = vpack.c.b16 %v2369, %v2368
        %v2373 = vsel %vm1153, %v2365, 0
        %2375 = vmatpush.bf16.msra.mxu0 0
        %2376 = vmatpush.bf16.msra.mxu0 0
        %2377 = vmatpush.bf16.msra.mxu0 0
        %2378 = vmatpush.bf16.msra.mxu0 0
        %2379 = vmatpush.bf16.msra.mxu0 0
        %2380 = vmatpush.bf16.msra.mxu0 0
        %2381 = vmatpush.bf16.msra.mxu0 0
        %2382 = vmatpush.bf16.msra.mxu0 %v2370
        %2383 = vmatmul.bf16.gmra.mxu0 %v2373
        %v2384 = vpop.f32.mrf.mxu0
        %v2385 = vadd.f32 0.0, %v2384
        %v2386 = vpop.f32.mrf.mxu0
        %v2387 = vadd.f32 0.0, %v2386
        %2388 = vdwg.mxu0
        %2389 = vrot.lane.b32.xlu0 %v2225, 96
        %v2390 = vpop.permute.xlu0 %2389
        %2391 = vrot.lane.b32.xlu0 %v2230, 96
        %v2392 = vpop.permute.xlu0 %2391
        %v2394 = vsel %vm1090, %v2390, 0
        %v2397 = vsel %vm1090, %v2392, 0
        %2399 = vmatpush.bf16.xpose.msra.mxu0 0
        %2400 = vmatpush.bf16.xpose.msra.mxu0 0
        %2401 = vmatpush.bf16.xpose.msra.mxu0 0
        %2402 = vmatpush.bf16.xpose.msra.mxu0 0
        %2403 = vmatpush.bf16.xpose.msra.mxu0 0
        %2404 = vmatpush.bf16.xpose.msra.mxu0 0
        %2405 = vmatpush.bf16.xpose.msra.mxu0 0
        %2406 = vmatpush.bf16.xpose.msra.mxu0 %v2397
        %2407 = vmatmul.bf16.gmra.mxu0 %v2394
        %v2408 = vpop.f32.mrf.mxu0
        %v2409 = vadd.f32 0.0, %v2408
        %v2410 = vpop.f32.mrf.mxu0
        %v2411 = vadd.f32 0.0, %v2410
        %2412 = vdwg.mxu0
        %2413 = vrot.lane.b32.xlu0 %v2255, 96
        %v2414 = vpop.permute.xlu0 %2413
        %2415 = vrot.lane.b32.xlu0 %v2260, 96
        %v2416 = vpop.permute.xlu0 %2415
        %v2418 = vsel %vm1090, %v2414, 0
        %v2421 = vsel %vm1090, %v2416, 0
        %2423 = vmatpush.bf16.xpose.msra.mxu0 0
        %2424 = vmatpush.bf16.xpose.msra.mxu0 0
        %2425 = vmatpush.bf16.xpose.msra.mxu0 0
        %2426 = vmatpush.bf16.xpose.msra.mxu0 0
        %2427 = vmatpush.bf16.xpose.msra.mxu0 0
        %2428 = vmatpush.bf16.xpose.msra.mxu0 0
        %2429 = vmatpush.bf16.xpose.msra.mxu0 0
        %2430 = vmatpush.bf16.xpose.msra.mxu0 %v2421
        %2431 = vmatmul.bf16.gmra.mxu0 %v2418
        %v2432 = vpop.f32.mrf.mxu0
        %v2433 = vadd.f32 0.0, %v2432
        %v2434 = vpop.f32.mrf.mxu0
        %v2435 = vadd.f32 0.0, %v2434
        %2436 = vdwg.mxu0
        %v2437 = vmul.f32 %v2409, 0.17677669
        %v2438 = vmul.f32 %v2411, 0.17677669
        %v2439 = vmul.f32 %v2433, 0.17677669
        %v2440 = vmul.f32 %v2435, 0.17677669
        %v2441 = vsel %vm1153, %v2437, -inf
        %2442 = vmax.xlane.f32.xlu0 %v2441
        %v2443 = vpop.xlane.xlu0 %2442
        %v2444 = vsel %vm1153, %v2438, -inf
        %2445 = vmax.xlane.f32.xlu0 %v2444
        %v2446 = vpop.xlane.xlu0 %2445
        %v2447 = vsel %vm1153, %v2439, -inf
        %2448 = vmax.xlane.f32.xlu0 %v2447
        %v2449 = vpop.xlane.xlu0 %2448
        %v2450 = vsel %vm1153, %v2440, -inf
        %2451 = vmax.xlane.f32.xlu0 %v2450
        %v2452 = vpop.xlane.xlu0 %2451
        %v2453 = vsub.f32 %v2437, %v2443
        %v2454 = vsub.f32 %v2438, %v2446
        %v2455 = vsub.f32 %v2439, %v2449
        %v2456 = vsub.f32 %v2440, %v2452
        %v2457 = vmul.f32 %v2453, 1.442695
        %v2458 = vpow.pop %v2457
        %v2459 = vmul.f32 %v2454, 1.442695
        %v2460 = vpow.pop %v2459
        %v2461 = vmul.f32 %v2455, 1.442695
        %v2462 = vpow.pop %v2461
        %v2463 = vmul.f32 %v2456, 1.442695
        %v2464 = vpow.pop %v2463
        %v2465 = vsel %vm1153, %v2458, 0.0
        %2466 = vadd.xlane.f32.xlu0 %v2465
        %v2467 = vpop.xlane.xlu0 %2466
        %v2468 = vsel %vm1153, %v2460, 0.0
        %2469 = vadd.xlane.f32.xlu0 %v2468
        %v2470 = vpop.xlane.xlu0 %2469
        %v2471 = vsel %vm1153, %v2462, 0.0
        %2472 = vadd.xlane.f32.xlu0 %v2471
        %v2473 = vpop.xlane.xlu0 %2472
        %v2474 = vsel %vm1153, %v2464, 0.0
        %2475 = vadd.xlane.f32.xlu0 %v2474
        %v2476 = vpop.xlane.xlu0 %2475
        %v2477 = vrcp.pop %v2467
        %v2478 = vrcp.pop %v2470
        %v2479 = vrcp.pop %v2473
        %v2480 = vrcp.pop %v2476
        %v2481 = vmul.f32 %v2458, %v2477
        %v2482 = vmul.f32 %v2460, %v2478
        %v2483 = vmul.f32 %v2462, %v2479
        %v2484 = vmul.f32 %v2464, %v2480
        %v2485 = vpack.c.bf16 %v2481, %v2481
        %v2486 = vpack.c.bf16 %v2482, %v2482
        %v2487 = vpack.c.bf16 %v2483, %v2483
        %v2488 = vpack.c.bf16 %v2484, %v2484
        %v2491 = vunpack.c.l.b16 %v2485
        %v2492 = vunpack.c.l.b16 %v2486
        %v2493 = vpack.c.b16 %v2492, %v2491
        %2494 = vrot.lane.b32.xlu0 %v2342, 96
        %v2495 = vpop.permute.xlu0 %2494
        %v2498 = vsel %vm1153, %v2493, 0
        %2500 = vmatpush.bf16.msra.mxu0 0
        %2501 = vmatpush.bf16.msra.mxu0 0
        %2502 = vmatpush.bf16.msra.mxu0 0
        %2503 = vmatpush.bf16.msra.mxu0 0
        %2504 = vmatpush.bf16.msra.mxu0 0
        %2505 = vmatpush.bf16.msra.mxu0 0
        %2506 = vmatpush.bf16.msra.mxu0 0
        %2507 = vmatpush.bf16.msra.mxu0 %v2495
        %2508 = vmatmul.bf16.gmra.mxu0 %v2498
        %v2509 = vpop.f32.mrf.mxu0
        %v2510 = vadd.f32 0.0, %v2509
        %v2511 = vpop.f32.mrf.mxu0
        %v2512 = vadd.f32 0.0, %v2511
        %2513 = vdwg.mxu0
        %v2516 = vunpack.c.l.b16 %v2487
        %v2517 = vunpack.c.l.b16 %v2488
        %v2518 = vpack.c.b16 %v2517, %v2516
        %2519 = vrot.lane.b32.xlu0 %v2370, 96
        %v2520 = vpop.permute.xlu0 %2519
        %v2523 = vsel %vm1153, %v2518, 0
        %2525 = vmatpush.bf16.msra.mxu0 0
        %2526 = vmatpush.bf16.msra.mxu0 0
        %2527 = vmatpush.bf16.msra.mxu0 0
        %2528 = vmatpush.bf16.msra.mxu0 0
        %2529 = vmatpush.bf16.msra.mxu0 0
        %2530 = vmatpush.bf16.msra.mxu0 0
        %2531 = vmatpush.bf16.msra.mxu0 0
        %2532 = vmatpush.bf16.msra.mxu0 %v2520
        %2533 = vmatmul.bf16.gmra.mxu0 %v2523
        %v2534 = vpop.f32.mrf.mxu0
        %v2535 = vadd.f32 0.0, %v2534
        %v2536 = vpop.f32.mrf.mxu0
        %v2537 = vadd.f32 0.0, %v2536
        %2538 = vdwg.mxu0
        %2539 = vrot.lane.b32.xlu0 %v2225, 64
        %v2540 = vpop.permute.xlu0 %2539
        %2541 = vrot.lane.b32.xlu0 %v2230, 64
        %v2542 = vpop.permute.xlu0 %2541
        %v2544 = vsel %vm1090, %v2540, 0
        %v2547 = vsel %vm1090, %v2542, 0
        %2549 = vmatpush.bf16.xpose.msra.mxu0 0
        %2550 = vmatpush.bf16.xpose.msra.mxu0 0
        %2551 = vmatpush.bf16.xpose.msra.mxu0 0
        %2552 = vmatpush.bf16.xpose.msra.mxu0 0
        %2553 = vmatpush.bf16.xpose.msra.mxu0 0
        %2554 = vmatpush.bf16.xpose.msra.mxu0 0
        %2555 = vmatpush.bf16.xpose.msra.mxu0 0
        %2556 = vmatpush.bf16.xpose.msra.mxu0 %v2547
        %2557 = vmatmul.bf16.gmra.mxu0 %v2544
        %v2558 = vpop.f32.mrf.mxu0
        %v2559 = vadd.f32 0.0, %v2558
        %v2560 = vpop.f32.mrf.mxu0
        %v2561 = vadd.f32 0.0, %v2560
        %2562 = vdwg.mxu0
        %2563 = vrot.lane.b32.xlu0 %v2255, 64
        %v2564 = vpop.permute.xlu0 %2563
        %2565 = vrot.lane.b32.xlu0 %v2260, 64
        %v2566 = vpop.permute.xlu0 %2565
        %v2568 = vsel %vm1090, %v2564, 0
        %v2571 = vsel %vm1090, %v2566, 0
        %2573 = vmatpush.bf16.xpose.msra.mxu0 0
        %2574 = vmatpush.bf16.xpose.msra.mxu0 0
        %2575 = vmatpush.bf16.xpose.msra.mxu0 0
        %2576 = vmatpush.bf16.xpose.msra.mxu0 0
        %2577 = vmatpush.bf16.xpose.msra.mxu0 0
        %2578 = vmatpush.bf16.xpose.msra.mxu0 0
        %2579 = vmatpush.bf16.xpose.msra.mxu0 0
        %2580 = vmatpush.bf16.xpose.msra.mxu0 %v2571
        %2581 = vmatmul.bf16.gmra.mxu0 %v2568
        %v2582 = vpop.f32.mrf.mxu0
        %v2583 = vadd.f32 0.0, %v2582
        %v2584 = vpop.f32.mrf.mxu0
        %v2585 = vadd.f32 0.0, %v2584
        %2586 = vdwg.mxu0
        %v2587 = vmul.f32 %v2559, 0.17677669
        %v2588 = vmul.f32 %v2561, 0.17677669
        %v2589 = vmul.f32 %v2583, 0.17677669
        %v2590 = vmul.f32 %v2585, 0.17677669
        %v2591 = vsel %vm1153, %v2587, -inf
        %2592 = vmax.xlane.f32.xlu0 %v2591
        %v2593 = vpop.xlane.xlu0 %2592
        %v2594 = vsel %vm1153, %v2588, -inf
        %2595 = vmax.xlane.f32.xlu0 %v2594
        %v2596 = vpop.xlane.xlu0 %2595
        %v2597 = vsel %vm1153, %v2589, -inf
        %2598 = vmax.xlane.f32.xlu0 %v2597
        %v2599 = vpop.xlane.xlu0 %2598
        %v2600 = vsel %vm1153, %v2590, -inf
        %2601 = vmax.xlane.f32.xlu0 %v2600
        %v2602 = vpop.xlane.xlu0 %2601
        %v2603 = vsub.f32 %v2587, %v2593
        %v2604 = vsub.f32 %v2588, %v2596
        %v2605 = vsub.f32 %v2589, %v2599
        %v2606 = vsub.f32 %v2590, %v2602
        %v2607 = vmul.f32 %v2603, 1.442695
        %v2608 = vpow.pop %v2607
        %v2609 = vmul.f32 %v2604, 1.442695
        %v2610 = vpow.pop %v2609
        %v2611 = vmul.f32 %v2605, 1.442695
        %v2612 = vpow.pop %v2611
        %v2613 = vmul.f32 %v2606, 1.442695
        %v2614 = vpow.pop %v2613
        %v2615 = vsel %vm1153, %v2608, 0.0
        %2616 = vadd.xlane.f32.xlu0 %v2615
        %v2617 = vpop.xlane.xlu0 %2616
        %v2618 = vsel %vm1153, %v2610, 0.0
        %2619 = vadd.xlane.f32.xlu0 %v2618
        %v2620 = vpop.xlane.xlu0 %2619
        %v2621 = vsel %vm1153, %v2612, 0.0
        %2622 = vadd.xlane.f32.xlu0 %v2621
        %v2623 = vpop.xlane.xlu0 %2622
        %v2624 = vsel %vm1153, %v2614, 0.0
        %2625 = vadd.xlane.f32.xlu0 %v2624
        %v2626 = vpop.xlane.xlu0 %2625
        %v2627 = vrcp.pop %v2617
        %v2628 = vrcp.pop %v2620
        %v2629 = vrcp.pop %v2623
        %v2630 = vrcp.pop %v2626
        %v2631 = vmul.f32 %v2608, %v2627
        %v2632 = vmul.f32 %v2610, %v2628
        %v2633 = vmul.f32 %v2612, %v2629
        %v2634 = vmul.f32 %v2614, %v2630
        %v2635 = vpack.c.bf16 %v2631, %v2631
        %v2636 = vpack.c.bf16 %v2632, %v2632
        %v2637 = vpack.c.bf16 %v2633, %v2633
        %v2638 = vpack.c.bf16 %v2634, %v2634
        %v2641 = vunpack.c.l.b16 %v2635
        %v2642 = vunpack.c.l.b16 %v2636
        %v2643 = vpack.c.b16 %v2642, %v2641
        %2644 = vrot.lane.b32.xlu0 %v2342, 64
        %v2645 = vpop.permute.xlu0 %2644
        %v2648 = vsel %vm1153, %v2643, 0
        %2650 = vmatpush.bf16.msra.mxu0 0
        %2651 = vmatpush.bf16.msra.mxu0 0
        %2652 = vmatpush.bf16.msra.mxu0 0
        %2653 = vmatpush.bf16.msra.mxu0 0
        %2654 = vmatpush.bf16.msra.mxu0 0
        %2655 = vmatpush.bf16.msra.mxu0 0
        %2656 = vmatpush.bf16.msra.mxu0 0
        %2657 = vmatpush.bf16.msra.mxu0 %v2645
        %2658 = vmatmul.bf16.gmra.mxu0 %v2648
        %v2659 = vpop.f32.mrf.mxu0
        %v2660 = vadd.f32 0.0, %v2659
        %v2661 = vpop.f32.mrf.mxu0
        %v2662 = vadd.f32 0.0, %v2661
        %2663 = vdwg.mxu0
        %v2666 = vunpack.c.l.b16 %v2637
        %v2667 = vunpack.c.l.b16 %v2638
        %v2668 = vpack.c.b16 %v2667, %v2666
        %2669 = vrot.lane.b32.xlu0 %v2370, 64
        %v2670 = vpop.permute.xlu0 %2669
        %v2673 = vsel %vm1153, %v2668, 0
        %2675 = vmatpush.bf16.msra.mxu0 0
        %2676 = vmatpush.bf16.msra.mxu0 0
        %2677 = vmatpush.bf16.msra.mxu0 0
        %2678 = vmatpush.bf16.msra.mxu0 0
        %2679 = vmatpush.bf16.msra.mxu0 0
        %2680 = vmatpush.bf16.msra.mxu0 0
        %2681 = vmatpush.bf16.msra.mxu0 0
        %2682 = vmatpush.bf16.msra.mxu0 %v2670
        %2683 = vmatmul.bf16.gmra.mxu0 %v2673
        %v2684 = vpop.f32.mrf.mxu0
        %v2685 = vadd.f32 0.0, %v2684
        %v2686 = vpop.f32.mrf.mxu0
        %v2687 = vadd.f32 0.0, %v2686
        %2688 = vdwg.mxu0
        %2689 = vrot.lane.b32.xlu0 %v2225, 32
        %v2690 = vpop.permute.xlu0 %2689
        %2691 = vrot.lane.b32.xlu0 %v2230, 32
        %v2692 = vpop.permute.xlu0 %2691
        %v2694 = vsel %vm1090, %v2690, 0
        %v2697 = vsel %vm1090, %v2692, 0
        %2699 = vmatpush.bf16.xpose.msra.mxu0 0
        %2700 = vmatpush.bf16.xpose.msra.mxu0 0
        %2701 = vmatpush.bf16.xpose.msra.mxu0 0
        %2702 = vmatpush.bf16.xpose.msra.mxu0 0
        %2703 = vmatpush.bf16.xpose.msra.mxu0 0
        %2704 = vmatpush.bf16.xpose.msra.mxu0 0
        %2705 = vmatpush.bf16.xpose.msra.mxu0 0
        %2706 = vmatpush.bf16.xpose.msra.mxu0 %v2697
        %2707 = vmatmul.bf16.gmra.mxu0 %v2694
        %v2708 = vpop.f32.mrf.mxu0
        %v2709 = vadd.f32 0.0, %v2708
        %v2710 = vpop.f32.mrf.mxu0
        %v2711 = vadd.f32 0.0, %v2710
        %2712 = vdwg.mxu0
        %2713 = vrot.lane.b32.xlu0 %v2255, 32
        %v2714 = vpop.permute.xlu0 %2713
        %2715 = vrot.lane.b32.xlu0 %v2260, 32
        %v2716 = vpop.permute.xlu0 %2715
        %v2718 = vsel %vm1090, %v2714, 0
        %v2721 = vsel %vm1090, %v2716, 0
        %2723 = vmatpush.bf16.xpose.msra.mxu0 0
        %2724 = vmatpush.bf16.xpose.msra.mxu0 0
        %2725 = vmatpush.bf16.xpose.msra.mxu0 0
        %2726 = vmatpush.bf16.xpose.msra.mxu0 0
        %2727 = vmatpush.bf16.xpose.msra.mxu0 0
        %2728 = vmatpush.bf16.xpose.msra.mxu0 0
        %2729 = vmatpush.bf16.xpose.msra.mxu0 0
        %2730 = vmatpush.bf16.xpose.msra.mxu0 %v2721
        %2731 = vmatmul.bf16.gmra.mxu0 %v2718
        %v2732 = vpop.f32.mrf.mxu0
        %v2733 = vadd.f32 0.0, %v2732
        %v2734 = vpop.f32.mrf.mxu0
        %v2735 = vadd.f32 0.0, %v2734
        %2736 = vdwg.mxu0
        %v2737 = vmul.f32 %v2709, 0.17677669
        %v2738 = vmul.f32 %v2711, 0.17677669
        %v2739 = vmul.f32 %v2733, 0.17677669
        %v2740 = vmul.f32 %v2735, 0.17677669
        %v2741 = vsel %vm1153, %v2737, -inf
        %2742 = vmax.xlane.f32.xlu0 %v2741
        %v2743 = vpop.xlane.xlu0 %2742
        %v2744 = vsel %vm1153, %v2738, -inf
        %2745 = vmax.xlane.f32.xlu0 %v2744
        %v2746 = vpop.xlane.xlu0 %2745
        %v2747 = vsel %vm1153, %v2739, -inf
        %2748 = vmax.xlane.f32.xlu0 %v2747
        %v2749 = vpop.xlane.xlu0 %2748
        %v2750 = vsel %vm1153, %v2740, -inf
        %2751 = vmax.xlane.f32.xlu0 %v2750
        %v2752 = vpop.xlane.xlu0 %2751
        %v2753 = vsub.f32 %v2737, %v2743
        %v2754 = vsub.f32 %v2738, %v2746
        %v2755 = vsub.f32 %v2739, %v2749
        %v2756 = vsub.f32 %v2740, %v2752
        %v2757 = vmul.f32 %v2753, 1.442695
        %v2758 = vpow.pop %v2757
        %v2759 = vmul.f32 %v2754, 1.442695
        %v2760 = vpow.pop %v2759
        %v2761 = vmul.f32 %v2755, 1.442695
        %v2762 = vpow.pop %v2761
        %v2763 = vmul.f32 %v2756, 1.442695
        %v2764 = vpow.pop %v2763
        %v2765 = vsel %vm1153, %v2758, 0.0
        %2766 = vadd.xlane.f32.xlu0 %v2765
        %v2767 = vpop.xlane.xlu0 %2766
        %v2768 = vsel %vm1153, %v2760, 0.0
        %2769 = vadd.xlane.f32.xlu0 %v2768
        %v2770 = vpop.xlane.xlu0 %2769
        %v2771 = vsel %vm1153, %v2762, 0.0
        %2772 = vadd.xlane.f32.xlu0 %v2771
        %v2773 = vpop.xlane.xlu0 %2772
        %v2774 = vsel %vm1153, %v2764, 0.0
        %2775 = vadd.xlane.f32.xlu0 %v2774
        %v2776 = vpop.xlane.xlu0 %2775
        %v2777 = vrcp.pop %v2767
        %v2778 = vrcp.pop %v2770
        %v2779 = vrcp.pop %v2773
        %v2780 = vrcp.pop %v2776
        %v2781 = vmul.f32 %v2758, %v2777
        %v2782 = vmul.f32 %v2760, %v2778
        %v2783 = vmul.f32 %v2762, %v2779
        %v2784 = vmul.f32 %v2764, %v2780
        %v2785 = vpack.c.bf16 %v2781, %v2781
        %v2786 = vpack.c.bf16 %v2782, %v2782
        %v2787 = vpack.c.bf16 %v2783, %v2783
        %v2788 = vpack.c.bf16 %v2784, %v2784
        %v2791 = vunpack.c.l.b16 %v2785
        %v2792 = vunpack.c.l.b16 %v2786
        %v2793 = vpack.c.b16 %v2792, %v2791
        %2794 = vrot.lane.b32.xlu0 %v2342, 32
        %v2795 = vpop.permute.xlu0 %2794
        %v2798 = vsel %vm1153, %v2793, 0
        %2800 = vmatpush.bf16.msra.mxu0 0
        %2801 = vmatpush.bf16.msra.mxu0 0
        %2802 = vmatpush.bf16.msra.mxu0 0
        %2803 = vmatpush.bf16.msra.mxu0 0
        %2804 = vmatpush.bf16.msra.mxu0 0
        %2805 = vmatpush.bf16.msra.mxu0 0
        %2806 = vmatpush.bf16.msra.mxu0 0
        %2807 = vmatpush.bf16.msra.mxu0 %v2795
        %2808 = vmatmul.bf16.gmra.mxu0 %v2798
        %v2809 = vpop.f32.mrf.mxu0
        %v2810 = vadd.f32 0.0, %v2809
        %v2811 = vpop.f32.mrf.mxu0
        %v2812 = vadd.f32 0.0, %v2811
        %2813 = vdwg.mxu0
        %v2816 = vunpack.c.l.b16 %v2787
        %v2817 = vunpack.c.l.b16 %v2788
        %v2818 = vpack.c.b16 %v2817, %v2816
        %2819 = vrot.lane.b32.xlu0 %v2370, 32
        %v2820 = vpop.permute.xlu0 %2819
        %v2823 = vsel %vm1153, %v2818, 0
        %2825 = vmatpush.bf16.msra.mxu0 0
        %2826 = vmatpush.bf16.msra.mxu0 0
        %2827 = vmatpush.bf16.msra.mxu0 0
        %2828 = vmatpush.bf16.msra.mxu0 0
        %2829 = vmatpush.bf16.msra.mxu0 0
        %2830 = vmatpush.bf16.msra.mxu0 0
        %2831 = vmatpush.bf16.msra.mxu0 0
        %2832 = vmatpush.bf16.msra.mxu0 %v2820
        %2833 = vmatmul.bf16.gmra.mxu0 %v2823
        %v2834 = vpop.f32.mrf.mxu0
        %v2835 = vadd.f32 0.0, %v2834
        %v2836 = vpop.f32.mrf.mxu0
        %v2837 = vadd.f32 0.0, %v2836
        %2838 = vdwg.mxu0
        %2843 = vrot.lane.b32.xlu0 %v2510, 32
        %v2844 = vpop.permute.xlu0 %2843
        %2845 = vrot.lane.b32.xlu0 %v2512, 32
        %v2846 = vpop.permute.xlu0 %2845
        %2847 = vrot.lane.b32.xlu0 %v2535, 32
        %v2848 = vpop.permute.xlu0 %2847
        %2849 = vrot.lane.b32.xlu0 %v2537, 32
        %v2850 = vpop.permute.xlu0 %2849
        %2859 = vrot.lane.b32.xlu0 %v2660, 64
        %v2860 = vpop.permute.xlu0 %2859
        %2861 = vrot.lane.b32.xlu0 %v2662, 64
        %v2862 = vpop.permute.xlu0 %2861
        %2863 = vrot.lane.b32.xlu0 %v2685, 64
        %v2864 = vpop.permute.xlu0 %2863
        %2865 = vrot.lane.b32.xlu0 %v2687, 64
        %v2866 = vpop.permute.xlu0 %2865
        %2875 = vrot.lane.b32.xlu0 %v2810, 96
        %v2876 = vpop.permute.xlu0 %2875
        %2877 = vrot.lane.b32.xlu0 %v2812, 96
        %v2878 = vpop.permute.xlu0 %2877
        %2879 = vrot.lane.b32.xlu0 %v2835, 96
        %v2880 = vpop.permute.xlu0 %2879
        %2881 = vrot.lane.b32.xlu0 %v2837, 96
        %v2882 = vpop.permute.xlu0 %2881
        %v2887 = vsel %vm1090, %v2357, %v2844
        %v2888 = vsel %vm1090, %v2359, %v2846
        %v2889 = vsel %vm1090, %v2385, %v2848
        %v2890 = vsel %vm1090, %v2387, %v2850
        %v2891 = vsel %vm1772, %v2887, %v2860
        %v2892 = vsel %vm1772, %v2888, %v2862
        %v2893 = vsel %vm1772, %v2889, %v2864
        %v2894 = vsel %vm1772, %v2890, %v2866
        %v2895 = vsel %vm1777, %v2891, %v2876
        %v2896 = vsel %vm1777, %v2892, %v2878
        %v2897 = vsel %vm1777, %v2893, %v2880
        %v2898 = vsel %vm1777, %v2894, %v2882
        %v2899 = vpack.c.bf16 %v2896, %v2895
        %v2900 = vpack.c.bf16 %v2898, %v2897
        %v2901 = vld [vmem:[#allocation14] sm:$0xf]
        %v2902 = vld [vmem:[#allocation14 + $0x4] sm:$0xf]
        %v2903 = vld [vmem:[#allocation14 + $0x8] sm:$0xf]
        %v2904 = vld [vmem:[#allocation14 + $0xc] sm:$0xf]
        %v2905 = vld [vmem:[#allocation14 + $0x10] sm:$0xf]
        %v2906 = vld [vmem:[#allocation14 + $0x14] sm:$0xf]
        %v2907 = vld [vmem:[#allocation14 + $0x18] sm:$0xf]
        %v2908 = vld [vmem:[#allocation14 + $0x1c] sm:$0xf]
        %v2909 = vld [vmem:[#allocation14 + $0x20] sm:$0xf]
        %v2910 = vld [vmem:[#allocation14 + $0x24] sm:$0xf]
        %v2911 = vld [vmem:[#allocation14 + $0x28] sm:$0xf]
        %v2912 = vld [vmem:[#allocation14 + $0x2c] sm:$0xf]
        %v2913 = vld [vmem:[#allocation14 + $0x30] sm:$0xf]
        %v2914 = vld [vmem:[#allocation14 + $0x34] sm:$0xf]
        %v2915 = vld [vmem:[#allocation14 + $0x38] sm:$0xf]
        %v2916 = vld [vmem:[#allocation14 + $0x3c] sm:$0xf]
        %v2917 = vld [vmem:[%s9] sm:$0x1]
        %v2919 = vperm.slane %v2917, 0
        %v2937 = vunpack.c.l.b16 %v2901
        %v2938 = vunpack.c.l.b16 %v2902
        %v2939 = vunpack.c.l.b16 %v2903
        %v2940 = vunpack.c.l.b16 %v2904
        %v2941 = vunpack.c.l.b16 %v2905
        %v2942 = vunpack.c.l.b16 %v2906
        %v2943 = vunpack.c.l.b16 %v2907
        %v2944 = vunpack.c.l.b16 %v2908
        %v2945 = vunpack.c.l.b16 %v2909
        %v2946 = vunpack.c.l.b16 %v2910
        %v2947 = vunpack.c.l.b16 %v2911
        %v2948 = vunpack.c.l.b16 %v2912
        %v2949 = vunpack.c.l.b16 %v2913
        %v2950 = vunpack.c.l.b16 %v2914
        %v2951 = vunpack.c.l.b16 %v2915
        %v2952 = vunpack.c.l.b16 %v2916
        %v2953 = vpack.c.b16 %v2938, %v2937
        %v2954 = vpack.c.b16 %v2940, %v2939
        %v2955 = vpack.c.b16 %v2942, %v2941
        %v2956 = vpack.c.b16 %v2944, %v2943
        %v2957 = vpack.c.b16 %v2946, %v2945
        %v2958 = vpack.c.b16 %v2948, %v2947
        %v2959 = vpack.c.b16 %v2950, %v2949
        %v2960 = vpack.c.b16 %v2952, %v2951
        %2969 = vmatpush.bf16.msra.mxu0 %v2960
        %2970 = vmatpush.bf16.msra.mxu0 %v2959
        %2971 = vmatpush.bf16.msra.mxu0 %v2958
        %2972 = vmatpush.bf16.msra.mxu0 %v2957
        %2973 = vmatpush.bf16.msra.mxu0 %v2956
        %2974 = vmatpush.bf16.msra.mxu0 %v2955
        %2975 = vmatpush.bf16.msra.mxu0 %v2954
        %2976 = vmatpush.bf16.msra.mxu0 %v2953
        %2977 = vmatmul.bf16.gmra.mxu0 %v2899
        %v2978 = vpop.f32.mrf.mxu0
        %v2979 = vadd.f32 %v2919, %v2978
        %v2980 = vpop.f32.mrf.mxu0
        %v2981 = vadd.f32 %v2919, %v2980
        %2982 = vmatmul.bf16.gmra.mxu0 %v2900
        %v2983 = vpop.f32.mrf.mxu0
        %v2984 = vadd.f32 %v2919, %v2983
        %v2985 = vpop.f32.mrf.mxu0
        %v2986 = vadd.f32 %v2919, %v2985
        %2987 = vdwg.mxu0
        %v2988 = vadd.f32 %v1974, %v2979
        %v2989 = vadd.f32 %v1975, %v2981
        %v2990 = vadd.f32 %v1976, %v2984
        %v2991 = vadd.f32 %v1977, %v2986
        %v2992 = vld [vmem:[%s16] sm:$0x1]
        %v2993 = vld [vmem:[%s17] sm:$0x1]
        %2994 = vadd.xlane.f32.xlu0 %v2988
        %v2995 = vpop.xlane.xlu0 %2994
        %2996 = vadd.xlane.f32.xlu0 %v2989
        %v2997 = vpop.xlane.xlu0 %2996
        %2998 = vadd.xlane.f32.xlu0 %v2990
        %v2999 = vpop.xlane.xlu0 %2998
        %3000 = vadd.xlane.f32.xlu0 %v2991
        %v3001 = vpop.xlane.xlu0 %3000
        %v3002 = vmul.f32 %v2995, %v1891
        %v3003 = vmul.f32 %v2997, %v1891
        %v3004 = vmul.f32 %v2999, %v1891
        %v3005 = vmul.f32 %v3001, %v1891
        %v3006 = vsub.f32 %v2988, %v3002
        %v3007 = vsub.f32 %v2989, %v3003
        %v3008 = vsub.f32 %v2990, %v3004
        %v3009 = vsub.f32 %v2991, %v3005
        %v3010 = vmul.f32 %v3006, %v3006
        %v3011 = vmul.f32 %v3007, %v3007
        %v3012 = vmul.f32 %v3008, %v3008
        %v3013 = vmul.f32 %v3009, %v3009
        %3014 = vadd.xlane.f32.xlu0 %v3010
        %v3015 = vpop.xlane.xlu0 %3014
        %3016 = vadd.xlane.f32.xlu0 %v3011
        %v3017 = vpop.xlane.xlu0 %3016
        %3018 = vadd.xlane.f32.xlu0 %v3012
        %v3019 = vpop.xlane.xlu0 %3018
        %3020 = vadd.xlane.f32.xlu0 %v3013
        %v3021 = vpop.xlane.xlu0 %3020
        %v3022 = vmul.f32 %v3015, %v1891
        %v3023 = vmul.f32 %v3017, %v1891
        %v3024 = vmul.f32 %v3019, %v1891
        %v3025 = vmul.f32 %v3021, %v1891
        %v3026 = vadd.f32 %v3022, 1e-05
        %v3027 = vadd.f32 %v3023, 1e-05
        %v3028 = vadd.f32 %v3024, 1e-05
        %v3029 = vadd.f32 %v3025, 1e-05
        %v3030 = vrsqrt.pop %v3026
        %v3031 = vmul.f32 %v3030, %v3026
        %v3032 = vmul.f32 %v3031, %v3030
        %v3033 = vmul.f32 0.5, %v3032
        %v3034 = vsub.f32 1.5, %v3033
        %v3035 = vmul.f32 %v3030, %v3034
        %vm3036 = vweird.f32 %v3026
        %vm3037 = vweird.f32 %v3030
        %vm3038 = vmor %vm3036, %vm3037
        %v3039 = vsel %vm3038, %v3030, %v3035
        %v3040 = vrsqrt.pop %v3027
        %v3041 = vmul.f32 %v3040, %v3027
        %v3042 = vmul.f32 %v3041, %v3040
        %v3043 = vmul.f32 0.5, %v3042
        %v3044 = vsub.f32 1.5, %v3043
        %v3045 = vmul.f32 %v3040, %v3044
        %vm3046 = vweird.f32 %v3027
        %vm3047 = vweird.f32 %v3040
        %vm3048 = vmor %vm3046, %vm3047
        %v3049 = vsel %vm3048, %v3040, %v3045
        %v3050 = vrsqrt.pop %v3028
        %v3051 = vmul.f32 %v3050, %v3028
        %v3052 = vmul.f32 %v3051, %v3050
        %v3053 = vmul.f32 0.5, %v3052
        %v3054 = vsub.f32 1.5, %v3053
        %v3055 = vmul.f32 %v3050, %v3054
        %vm3056 = vweird.f32 %v3028
        %vm3057 = vweird.f32 %v3050
        %vm3058 = vmor %vm3056, %vm3057
        %v3059 = vsel %vm3058, %v3050, %v3055
        %v3060 = vrsqrt.pop %v3029
        %v3061 = vmul.f32 %v3060, %v3029
        %v3062 = vmul.f32 %v3061, %v3060
        %v3063 = vmul.f32 0.5, %v3062
        %v3064 = vsub.f32 1.5, %v3063
        %v3065 = vmul.f32 %v3060, %v3064
        %vm3066 = vweird.f32 %v3029
        %vm3067 = vweird.f32 %v3060
        %vm3068 = vmor %vm3066, %vm3067
        %v3069 = vsel %vm3068, %v3060, %v3065
        %v3070 = vmul.f32 %v3006, %v3039
        %v3071 = vmul.f32 %v3007, %v3049
        %v3072 = vmul.f32 %v3008, %v3059
        %v3073 = vmul.f32 %v3009, %v3069
        %v3075 = vperm.slane %v2992, 0
        %v3077 = vmul.f32 %v3070, %v3075
        %v3078 = vmul.f32 %v3071, %v3075
        %v3079 = vmul.f32 %v3072, %v3075
        %v3080 = vmul.f32 %v3073, %v3075
        %v3082 = vperm.slane %v2993, 0
        %v3084 = vadd.f32 %v3077, %v3082
        %v3085 = vadd.f32 %v3078, %v3082
        %v3086 = vadd.f32 %v3079, %v3082
        %v3087 = vadd.f32 %v3080, %v3082
        %v3088 = vpack.c.bf16 %v3085, %v3084
        %v3089 = vpack.c.bf16 %v3087, %v3086
        %v3090 = vld [vmem:[#allocation16] sm:$0xff]
        %v3091 = vld [vmem:[#allocation16 + $0x8] sm:$0xff]
        %v3092 = vld [vmem:[#allocation16 + $0x10] sm:$0xff]
        %v3093 = vld [vmem:[#allocation16 + $0x18] sm:$0xff]
        %v3094 = vld [vmem:[#allocation16 + $0x20] sm:$0xff]
        %v3095 = vld [vmem:[#allocation16 + $0x28] sm:$0xff]
        %v3096 = vld [vmem:[#allocation16 + $0x30] sm:$0xff]
        %v3097 = vld [vmem:[#allocation16 + $0x38] sm:$0xff]
        %v3098 = vld [vmem:[#allocation16 + $0x40] sm:$0xff]
        %v3099 = vld [vmem:[#allocation16 + $0x48] sm:$0xff]
        %v3100 = vld [vmem:[#allocation16 + $0x50] sm:$0xff]
        %v3101 = vld [vmem:[#allocation16 + $0x58] sm:$0xff]
        %v3102 = vld [vmem:[#allocation16 + $0x60] sm:$0xff]
        %v3103 = vld [vmem:[#allocation16 + $0x68] sm:$0xff]
        %v3104 = vld [vmem:[#allocation16 + $0x70] sm:$0xff]
        %v3105 = vld [vmem:[#allocation16 + $0x78] sm:$0xff]
        %v3106 = vld [vmem:[%s11] sm:$0x3]
        %v3108 = vperm.slane %v3106, 0
        %v3109 = vperm.slane %v3106, 1
        %v3128 = vunpack.c.l.b16 %v3090
        %v3129 = vunpack.c.h.b16 %v3090
        %v3130 = vunpack.c.l.b16 %v3091
        %v3131 = vunpack.c.h.b16 %v3091
        %v3132 = vunpack.c.l.b16 %v3092
        %v3133 = vunpack.c.h.b16 %v3092
        %v3134 = vunpack.c.l.b16 %v3093
        %v3135 = vunpack.c.h.b16 %v3093
        %v3136 = vunpack.c.l.b16 %v3094
        %v3137 = vunpack.c.h.b16 %v3094
        %v3138 = vunpack.c.l.b16 %v3095
        %v3139 = vunpack.c.h.b16 %v3095
        %v3140 = vunpack.c.l.b16 %v3096
        %v3141 = vunpack.c.h.b16 %v3096
        %v3142 = vunpack.c.l.b16 %v3097
        %v3143 = vunpack.c.h.b16 %v3097
        %v3144 = vunpack.c.l.b16 %v3098
        %v3145 = vunpack.c.h.b16 %v3098
        %v3146 = vunpack.c.l.b16 %v3099
        %v3147 = vunpack.c.h.b16 %v3099
        %v3148 = vunpack.c.l.b16 %v3100
        %v3149 = vunpack.c.h.b16 %v3100
        %v3150 = vunpack.c.l.b16 %v3101
        %v3151 = vunpack.c.h.b16 %v3101
        %v3152 = vunpack.c.l.b16 %v3102
        %v3153 = vunpack.c.h.b16 %v3102
        %v3154 = vunpack.c.l.b16 %v3103
        %v3155 = vunpack.c.h.b16 %v3103
        %v3156 = vunpack.c.l.b16 %v3104
        %v3157 = vunpack.c.h.b16 %v3104
        %v3158 = vunpack.c.l.b16 %v3105
        %v3159 = vunpack.c.h.b16 %v3105
        %v3160 = vpack.c.b16 %v3130, %v3128
        %v3161 = vpack.c.b16 %v3131, %v3129
        %v3162 = vpack.c.b16 %v3134, %v3132
        %v3163 = vpack.c.b16 %v3135, %v3133
        %v3164 = vpack.c.b16 %v3138, %v3136
        %v3165 = vpack.c.b16 %v3139, %v3137
        %v3166 = vpack.c.b16 %v3142, %v3140
        %v3167 = vpack.c.b16 %v3143, %v3141
        %v3168 = vpack.c.b16 %v3146, %v3144
        %v3169 = vpack.c.b16 %v3147, %v3145
        %v3170 = vpack.c.b16 %v3150, %v3148
        %v3171 = vpack.c.b16 %v3151, %v3149
        %v3172 = vpack.c.b16 %v3154, %v3152
        %v3173 = vpack.c.b16 %v3155, %v3153
        %v3174 = vpack.c.b16 %v3158, %v3156
        %v3175 = vpack.c.b16 %v3159, %v3157
        %3192 = vmatpush.bf16.msra.mxu0 %v3174
        %3193 = vmatpush.bf16.msra.mxu0 %v3172
        %3194 = vmatpush.bf16.msra.mxu0 %v3170
        %3195 = vmatpush.bf16.msra.mxu0 %v3168
        %3196 = vmatpush.bf16.msra.mxu0 %v3166
        %3197 = vmatpush.bf16.msra.mxu0 %v3164
        %3198 = vmatpush.bf16.msra.mxu0 %v3162
        %3199 = vmatpush.bf16.msra.mxu0 %v3160
        %3200 = vmatmul.bf16.gmra.mxu0 %v3088
        %v3201 = vpop.f32.mrf.mxu0
        %v3202 = vadd.f32 %v3108, %v3201
        %v3203 = vpop.f32.mrf.mxu0
        %v3204 = vadd.f32 %v3108, %v3203
        %3205 = vmatmul.bf16.gmra.mxu0 %v3089
        %v3206 = vpop.f32.mrf.mxu0
        %v3207 = vadd.f32 %v3108, %v3206
        %v3208 = vpop.f32.mrf.mxu0
        %v3209 = vadd.f32 %v3108, %v3208
        %3210 = vdwg.mxu0
        %3211 = vmatpush.bf16.msra.mxu0 %v3175
        %3212 = vmatpush.bf16.msra.mxu0 %v3173
        %3213 = vmatpush.bf16.msra.mxu0 %v3171
        %3214 = vmatpush.bf16.msra.mxu0 %v3169
        %3215 = vmatpush.bf16.msra.mxu0 %v3167
        %3216 = vmatpush.bf16.msra.mxu0 %v3165
        %3217 = vmatpush.bf16.msra.mxu0 %v3163
        %3218 = vmatpush.bf16.msra.mxu0 %v3161
        %3219 = vmatmul.bf16.gmra.mxu0 %v3088
        %v3220 = vpop.f32.mrf.mxu0
        %v3221 = vadd.f32 %v3109, %v3220
        %v3222 = vpop.f32.mrf.mxu0
        %v3223 = vadd.f32 %v3109, %v3222
        %3224 = vmatmul.bf16.gmra.mxu0 %v3089
        %v3225 = vpop.f32.mrf.mxu0
        %v3226 = vadd.f32 %v3109, %v3225
        %v3227 = vpop.f32.mrf.mxu0
        %v3228 = vadd.f32 %v3109, %v3227
        %3229 = vdwg.mxu0
        %v3230 = vmax.f32 %v3202, 0.0
        %v3231 = vmax.f32 %v3221, 0.0
        %v3232 = vmax.f32 %v3204, 0.0
        %v3233 = vmax.f32 %v3223, 0.0
        %v3234 = vmax.f32 %v3207, 0.0
        %v3235 = vmax.f32 %v3226, 0.0
        %v3236 = vmax.f32 %v3209, 0.0
        %v3237 = vmax.f32 %v3228, 0.0
        %v3238 = vpack.c.bf16 %v3232, %v3230
        %v3239 = vpack.c.bf16 %v3233, %v3231
        %v3240 = vpack.c.bf16 %v3236, %v3234
        %v3241 = vpack.c.bf16 %v3237, %v3235
        %v3242 = vld [vmem:[#allocation17] sm:$0xf]
        %v3243 = vld [vmem:[#allocation17 + $0x4] sm:$0xf]
        %v3244 = vld [vmem:[#allocation17 + $0x8] sm:$0xf]
        %v3245 = vld [vmem:[#allocation17 + $0xc] sm:$0xf]
        %v3246 = vld [vmem:[#allocation17 + $0x10] sm:$0xf]
        %v3247 = vld [vmem:[#allocation17 + $0x14] sm:$0xf]
        %v3248 = vld [vmem:[#allocation17 + $0x18] sm:$0xf]
        %v3249 = vld [vmem:[#allocation17 + $0x1c] sm:$0xf]
        %v3250 = vld [vmem:[#allocation17 + $0x20] sm:$0xf]
        %v3251 = vld [vmem:[#allocation17 + $0x24] sm:$0xf]
        %v3252 = vld [vmem:[#allocation17 + $0x28] sm:$0xf]
        %v3253 = vld [vmem:[#allocation17 + $0x2c] sm:$0xf]
        %v3254 = vld [vmem:[#allocation17 + $0x30] sm:$0xf]
        %v3255 = vld [vmem:[#allocation17 + $0x34] sm:$0xf]
        %v3256 = vld [vmem:[#allocation17 + $0x38] sm:$0xf]
        %v3257 = vld [vmem:[#allocation17 + $0x3c] sm:$0xf]
        %v3258 = vld [vmem:[#allocation17 + $0x40] sm:$0xf]
        %v3259 = vld [vmem:[#allocation17 + $0x44] sm:$0xf]
        %v3260 = vld [vmem:[#allocation17 + $0x48] sm:$0xf]
        %v3261 = vld [vmem:[#allocation17 + $0x4c] sm:$0xf]
        %v3262 = vld [vmem:[#allocation17 + $0x50] sm:$0xf]
        %v3263 = vld [vmem:[#allocation17 + $0x54] sm:$0xf]
        %v3264 = vld [vmem:[#allocation17 + $0x58] sm:$0xf]
        %v3265 = vld [vmem:[#allocation17 + $0x5c] sm:$0xf]
        %v3266 = vld [vmem:[#allocation17 + $0x60] sm:$0xf]
        %v3267 = vld [vmem:[#allocation17 + $0x64] sm:$0xf]
        %v3268 = vld [vmem:[#allocation17 + $0x68] sm:$0xf]
        %v3269 = vld [vmem:[#allocation17 + $0x6c] sm:$0xf]
        %v3270 = vld [vmem:[#allocation17 + $0x70] sm:$0xf]
        %v3271 = vld [vmem:[#allocation17 + $0x74] sm:$0xf]
        %v3272 = vld [vmem:[#allocation17 + $0x78] sm:$0xf]
        %v3273 = vld [vmem:[#allocation17 + $0x7c] sm:$0xf]
        %v3274 = vld [vmem:[%s13] sm:$0x1]
        %v3276 = vperm.slane %v3274, 0
        %v3310 = vunpack.c.l.b16 %v3242
        %v3311 = vunpack.c.l.b16 %v3243
        %v3312 = vunpack.c.l.b16 %v3244
        %v3313 = vunpack.c.l.b16 %v3245
        %v3314 = vunpack.c.l.b16 %v3246
        %v3315 = vunpack.c.l.b16 %v3247
        %v3316 = vunpack.c.l.b16 %v3248
        %v3317 = vunpack.c.l.b16 %v3249
        %v3318 = vunpack.c.l.b16 %v3250
        %v3319 = vunpack.c.l.b16 %v3251
        %v3320 = vunpack.c.l.b16 %v3252
        %v3321 = vunpack.c.l.b16 %v3253
        %v3322 = vunpack.c.l.b16 %v3254
        %v3323 = vunpack.c.l.b16 %v3255
        %v3324 = vunpack.c.l.b16 %v3256
        %v3325 = vunpack.c.l.b16 %v3257
        %v3326 = vunpack.c.l.b16 %v3258
        %v3327 = vunpack.c.l.b16 %v3259
        %v3328 = vunpack.c.l.b16 %v3260
        %v3329 = vunpack.c.l.b16 %v3261
        %v3330 = vunpack.c.l.b16 %v3262
        %v3331 = vunpack.c.l.b16 %v3263
        %v3332 = vunpack.c.l.b16 %v3264
        %v3333 = vunpack.c.l.b16 %v3265
        %v3334 = vunpack.c.l.b16 %v3266
        %v3335 = vunpack.c.l.b16 %v3267
        %v3336 = vunpack.c.l.b16 %v3268
        %v3337 = vunpack.c.l.b16 %v3269
        %v3338 = vunpack.c.l.b16 %v3270
        %v3339 = vunpack.c.l.b16 %v3271
        %v3340 = vunpack.c.l.b16 %v3272
        %v3341 = vunpack.c.l.b16 %v3273
        %v3342 = vpack.c.b16 %v3311, %v3310
        %v3343 = vpack.c.b16 %v3313, %v3312
        %v3344 = vpack.c.b16 %v3315, %v3314
        %v3345 = vpack.c.b16 %v3317, %v3316
        %v3346 = vpack.c.b16 %v3319, %v3318
        %v3347 = vpack.c.b16 %v3321, %v3320
        %v3348 = vpack.c.b16 %v3323, %v3322
        %v3349 = vpack.c.b16 %v3325, %v3324
        %v3350 = vpack.c.b16 %v3327, %v3326
        %v3351 = vpack.c.b16 %v3329, %v3328
        %v3352 = vpack.c.b16 %v3331, %v3330
        %v3353 = vpack.c.b16 %v3333, %v3332
        %v3354 = vpack.c.b16 %v3335, %v3334
        %v3355 = vpack.c.b16 %v3337, %v3336
        %v3356 = vpack.c.b16 %v3339, %v3338
        %v3357 = vpack.c.b16 %v3341, %v3340
        %3374 = vmatpush.bf16.msra.mxu0 %v3349
        %3375 = vmatpush.bf16.msra.mxu0 %v3348
        %3376 = vmatpush.bf16.msra.mxu0 %v3347
        %3377 = vmatpush.bf16.msra.mxu0 %v3346
        %3378 = vmatpush.bf16.msra.mxu0 %v3345
        %3379 = vmatpush.bf16.msra.mxu0 %v3344
        %3380 = vmatpush.bf16.msra.mxu0 %v3343
        %3381 = vmatpush.bf16.msra.mxu0 %v3342
        %3382 = vmatmul.bf16.gmra.mxu0 %v3238
        %v3383 = vpop.f32.mrf.mxu0
        %v3384 = vadd.f32 %v3276, %v3383
        %v3385 = vpop.f32.mrf.mxu0
        %v3386 = vadd.f32 %v3276, %v3385
        %3387 = vmatmul.bf16.gmra.mxu0 %v3240
        %v3388 = vpop.f32.mrf.mxu0
        %v3389 = vadd.f32 %v3276, %v3388
        %v3390 = vpop.f32.mrf.mxu0
        %v3391 = vadd.f32 %v3276, %v3390
        %3392 = vdwg.mxu0
        %3393 = vmatpush.bf16.msra.mxu0 %v3357
        %3394 = vmatpush.bf16.msra.mxu0 %v3356
        %3395 = vmatpush.bf16.msra.mxu0 %v3355
        %3396 = vmatpush.bf16.msra.mxu0 %v3354
        %3397 = vmatpush.bf16.msra.mxu0 %v3353
        %3398 = vmatpush.bf16.msra.mxu0 %v3352
        %3399 = vmatpush.bf16.msra.mxu0 %v3351
        %3400 = vmatpush.bf16.msra.mxu0 %v3350
        %3401 = vmatmul.bf16.gmra.mxu0 %v3239
        %v3402 = vpop.f32.mrf.mxu0
        %v3403 = vadd.f32 %v3384, %v3402
        %v3404 = vpop.f32.mrf.mxu0
        %v3405 = vadd.f32 %v3386, %v3404
        %3406 = vmatmul.bf16.gmra.mxu0 %v3241
        %v3407 = vpop.f32.mrf.mxu0
        %v3408 = vadd.f32 %v3389, %v3407
        %v3409 = vpop.f32.mrf.mxu0
        %v3410 = vadd.f32 %v3391, %v3409
        %3411 = vdwg.mxu0
        %v3412 = vadd.f32 %v3084, %v3403
        %v3413 = vadd.f32 %v3085, %v3405
        %v3414 = vadd.f32 %v3086, %v3408
        %v3415 = vadd.f32 %v3087, %v3410
        %v3416 = vld [vmem:[%s18] sm:$0x1]
        %v3417 = vld [vmem:[%s19] sm:$0x1]
        %3418 = vadd.xlane.f32.xlu0 %v3412
        %v3419 = vpop.xlane.xlu0 %3418
        %3420 = vadd.xlane.f32.xlu0 %v3413
        %v3421 = vpop.xlane.xlu0 %3420
        %3422 = vadd.xlane.f32.xlu0 %v3414
        %v3423 = vpop.xlane.xlu0 %3422
        %3424 = vadd.xlane.f32.xlu0 %v3415
        %v3425 = vpop.xlane.xlu0 %3424
        %v3426 = vmul.f32 %v3419, %v1891
        %v3427 = vmul.f32 %v3421, %v1891
        %v3428 = vmul.f32 %v3423, %v1891
        %v3429 = vmul.f32 %v3425, %v1891
        %v3430 = vsub.f32 %v3412, %v3426
        %v3431 = vsub.f32 %v3413, %v3427
        %v3432 = vsub.f32 %v3414, %v3428
        %v3433 = vsub.f32 %v3415, %v3429
        %v3434 = vmul.f32 %v3430, %v3430
        %v3435 = vmul.f32 %v3431, %v3431
        %v3436 = vmul.f32 %v3432, %v3432
        %v3437 = vmul.f32 %v3433, %v3433
        %3438 = vadd.xlane.f32.xlu0 %v3434
        %v3439 = vpop.xlane.xlu0 %3438
        %3440 = vadd.xlane.f32.xlu0 %v3435
        %v3441 = vpop.xlane.xlu0 %3440
        %3442 = vadd.xlane.f32.xlu0 %v3436
        %v3443 = vpop.xlane.xlu0 %3442
        %3444 = vadd.xlane.f32.xlu0 %v3437
        %v3445 = vpop.xlane.xlu0 %3444
        %v3446 = vmul.f32 %v3439, %v1891
        %v3447 = vmul.f32 %v3441, %v1891
        %v3448 = vmul.f32 %v3443, %v1891
        %v3449 = vmul.f32 %v3445, %v1891
        %v3450 = vadd.f32 %v3446, 1e-05
        %v3451 = vadd.f32 %v3447, 1e-05
        %v3452 = vadd.f32 %v3448, 1e-05
        %v3453 = vadd.f32 %v3449, 1e-05
        %v3454 = vrsqrt.pop %v3450
        %v3455 = vmul.f32 %v3454, %v3450
        %v3456 = vmul.f32 %v3455, %v3454
        %v3457 = vmul.f32 0.5, %v3456
        %v3458 = vsub.f32 1.5, %v3457
        %v3459 = vmul.f32 %v3454, %v3458
        %vm3460 = vweird.f32 %v3450
        %vm3461 = vweird.f32 %v3454
        %vm3462 = vmor %vm3460, %vm3461
        %v3463 = vsel %vm3462, %v3454, %v3459
        %v3464 = vrsqrt.pop %v3451
        %v3465 = vmul.f32 %v3464, %v3451
        %v3466 = vmul.f32 %v3465, %v3464
        %v3467 = vmul.f32 0.5, %v3466
        %v3468 = vsub.f32 1.5, %v3467
        %v3469 = vmul.f32 %v3464, %v3468
        %vm3470 = vweird.f32 %v3451
        %vm3471 = vweird.f32 %v3464
        %vm3472 = vmor %vm3470, %vm3471
        %v3473 = vsel %vm3472, %v3464, %v3469
        %v3474 = vrsqrt.pop %v3452
        %v3475 = vmul.f32 %v3474, %v3452
        %v3476 = vmul.f32 %v3475, %v3474
        %v3477 = vmul.f32 0.5, %v3476
        %v3478 = vsub.f32 1.5, %v3477
        %v3479 = vmul.f32 %v3474, %v3478
        %vm3480 = vweird.f32 %v3452
        %vm3481 = vweird.f32 %v3474
        %vm3482 = vmor %vm3480, %vm3481
        %v3483 = vsel %vm3482, %v3474, %v3479
        %v3484 = vrsqrt.pop %v3453
        %v3485 = vmul.f32 %v3484, %v3453
        %v3486 = vmul.f32 %v3485, %v3484
        %v3487 = vmul.f32 0.5, %v3486
        %v3488 = vsub.f32 1.5, %v3487
        %v3489 = vmul.f32 %v3484, %v3488
        %vm3490 = vweird.f32 %v3453
        %vm3491 = vweird.f32 %v3484
        %vm3492 = vmor %vm3490, %vm3491
        %v3493 = vsel %vm3492, %v3484, %v3489
        %v3494 = vmul.f32 %v3430, %v3463
        %v3495 = vmul.f32 %v3431, %v3473
        %v3496 = vmul.f32 %v3432, %v3483
        %v3497 = vmul.f32 %v3433, %v3493
        %v3499 = vperm.slane %v3416, 0
        %v3501 = vmul.f32 %v3494, %v3499
        %v3502 = vmul.f32 %v3495, %v3499
        %v3503 = vmul.f32 %v3496, %v3499
        %v3504 = vmul.f32 %v3497, %v3499
        %v3506 = vperm.slane %v3417, 0
        %v3508 = vadd.f32 %v3501, %v3506
        %v3509 = vadd.f32 %v3502, %v3506
        %v3510 = vadd.f32 %v3503, %v3506
        %v3511 = vadd.f32 %v3504, %v3506
        %3512 = vst [vmem:[%s821] sm:$0xff] %v3508
        %3513 = vst [vmem:[%s821 + $0x8] sm:$0xff] %v3509
        %3514 = vst [vmem:[%s821 + $0x10] sm:$0xff] %v3510
        %3515 = vst [vmem:[%s821 + $0x18] sm:$0xff] %v3511
        %s3516 = sand.u32 %s482, 1
        %s3517 = scalar_lea.sflag [#allocation4], %s3516
        %s3518 = sand.u32 %s482, 1
        %s3519 = smul.addr %s3518, 32
        %s3520 = scalar_lea.vmem [#allocation19], %s3519
        // Predicated region
        $region141: #{tpu_custom_call.1} parent=99 // pred_check
          %p3521 = pneg %p492
        $region142: #{tpu_custom_call.1} parent=99 // pred_check_branch
          %3523 = sbr.rel (%p3521) target = $region144
        $region143: #{tpu_custom_call.1} parent=99 // pred_region
          %s3524 = smul.u32 2, %s44
          %3526 = vsyncadd %s3517, 0
          %s3527 = smul.addr %s3524, 2
          %s3528 = smul.addr %s3527, 8
          %s3529 = scalar_lea.hbm %s20, %s3528
          %s3530 = sshll.u32 %s3520, 4
          %s3531 = int_to_ptr.vmem [resolvable:$true] %s3530
          %s3532 = sshll.u32 %s3529, 4
          %s3533 = int_to_ptr.hbm [resolvable:$true] %s3532
          %3538 = dma.vmem_to_hbm [thread:$0]  %s3531, 512, %s3533, %s3517, 128, 128, 8
        $region144: #{tpu_custom_call.1} parent=99 // pred_fallthru
          _
      $region100: #{tpu_custom_call.1} parent=5 // pred_fallthru
        _
      %p3539 = scmp.le.s32.totalorder 2, %s39
      // Predicated region
      $region145: #{tpu_custom_call.1} parent=5 // pred_check
        %p3540 = pneg %p3539
      $region146: #{tpu_custom_call.1} parent=5 // pred_check_branch
        %3542 = sbr.rel (%p3540) target = $region148
      $region147: #{tpu_custom_call.1} parent=5 // pred_region
        %s3543 = ssub.s32 %s39, 2
        // Predicated region
        $region149: #{tpu_custom_call.1} parent=147 // pred_check
          %p3544 = pneg %p498
        $region150: #{tpu_custom_call.1} parent=147 // pred_check_branch
          %3546 = sbr.rel (%p3544) target = $region152
        $region151: #{tpu_custom_call.1} parent=147 // pred_region
          %s3547 = sand.u32 %s483, 1
          %s3548 = scalar_lea.sflag [#allocation4], %s3547
          %s3549 = sand.u32 %s483, 1
          %s3550 = smul.addr %s3549, 32
          %s3551 = scalar_lea.vmem [#allocation19], %s3550
          %3553 = dma.done %s3548, 512
        $region152: #{tpu_custom_call.1} parent=147 // pred_fallthru
          _
      $region148: #{tpu_custom_call.1} parent=5 // pred_fallthru
        _
    $region6: #{tpu_custom_call.1} parent=1 // loop_footer
      %s43 = sadd.s32 1, %s39
    $region7: #{tpu_custom_call.1} parent=1 // loop_footer_branch
      %38 = sbr.rel target = $region3
    $region8: #{tpu_custom_call.1} parent=1 // loop_exit
      _
    %3554 = vsyncpa [#allocation3], 1
    %s3555 = scalar_lea.sflag [#allocation3], 1
    %3556 = vsyncpa %s3555, 1
    %3557 = vsyncpa [#allocation6], 1
    %s3558 = scalar_lea.sflag [#allocation6], 1
    %3559 = vsyncpa %s3558, 1
    %3560 = vsyncpa [#allocation9], 1
    %3561 = vsyncpa [#allocation12], 1
    %3562 = vsyncpa [#allocation15], 1
    %3563 = vsyncpa [#allocation18], 1
    %3564 = vsyncpa [#allocation4], 1
    %s3565 = scalar_lea.sflag [#allocation4], 1
    %3566 = vsyncpa %s3565, 1

</llo_original>
